<compile_context>
chip_gen: v5e
topology: v5e:2x2
jax: 0.10.0
libtpu: 0.0.40
codegen_flags: <defaults>
</compile_context>

<pallas_src>
import functools

import jax
import jax.numpy as jnp
from jax import lax
from jax.experimental import pallas as pl
from jax.experimental.pallas import tpu as pltpu


# ----------------------------- in-kernel helpers -----------------------------

def _layernorm(x, gamma, beta, eps=1e-5):
    """Row-wise LayerNorm in f32."""
    mu = jnp.mean(x, axis=-1, keepdims=True)
    var = jnp.mean((x - mu) ** 2, axis=-1, keepdims=True)
    return (x - mu) * lax.rsqrt(var + eps) * gamma + beta


def _mha_core(q, kv_ref, wo_ref, bo, bias, num_heads):
    """Multi-head attention core.

    q: (TQ, D) f32 (softmax scale already folded into Wq/bq on the host),
    kv_ref: (Skv, 2D) bf16 VMEM ref (K in lanes [:D], V in lanes [D:]),
    wo_ref: (D, D) bf16 ref, bo: (1, D) f32,
    bias: (TQ, Skv) f32 additive mask bias or None.
    Returns (TQ, D) f32.  Per-head PV results are pushed straight through the
    matching sublane slice of Wo and accumulated in f32 -> no lane-masked
    stores, no ctx scratch.
    """
    tq, d = q.shape
    hd = d // num_heads
    qs = q.astype(jnp.bfloat16)

    acc = jnp.zeros((tq, d), jnp.float32)
    for h in range(num_heads):          # static, small
        lo = h * hd
        qh = qs[:, lo:lo + hd]
        kh = kv_ref[:, lo:lo + hd]           # bf16 (Skv, hd)
        vh = kv_ref[:, d + lo:d + lo + hd]   # bf16 (Skv, hd)
        # q @ k^T without materializing the transpose.
        s = lax.dot_general(qh, kh, (((1,), (1,)), ((), ())),
                            preferred_element_type=jnp.float32)
        if bias is not None:
            s = s + bias                 # hoisted mask (compare done once)
        s = s - jnp.max(s, axis=-1, keepdims=True)
        p = jnp.exp(s)
        denom = jnp.sum(p, axis=-1, keepdims=True)
        p = p * pl.reciprocal(denom, approx=True)      # EUP, not VALU divides
        pv = jnp.dot(p.astype(jnp.bfloat16), vh,
                     preferred_element_type=jnp.float32)
        # Sublane slice of Wo (cheap); accumulate the output projection.
        acc = acc + jnp.dot(pv.astype(jnp.bfloat16), wo_ref[lo:lo + hd, :],
                            preferred_element_type=jnp.float32)
    return acc + bo


# ----------------------------- the Pallas kernel -----------------------------

def decoder_block_kernel(
        xq_ref, xkv_ref, enc_ref, mask_ref,
        a1_wq_ref, a1_bq_ref, a1_wkv_ref, a1_bkv_ref, a1_wo_ref, a1_bo_ref,
        a2_wq_ref, a2_bq_ref, a2_wkv_ref, a2_bkv_ref, a2_wo_ref, a2_bo_ref,
        lng_ref, lnb_ref,
        w1_ref, fb1_ref, w2_ref, fb2_ref,
        out_ref,
        kv1_ref, kv2_ref,
        *, num_heads):
    bf16 = jnp.bfloat16

    gamma = lng_ref[...]       # (1, D) shared LayerNorm params
    beta = lnb_ref[...]

    # ---- per-batch work (hoisted off the q axis): K/V for both attentions --
    @pl.when(pl.program_id(1) == 0)
    def _():
        # Self-attention K/V source: LayerNorm of the full decoder sequence.
        x_kv = xkv_ref[0].astype(jnp.float32)          # (S, D) from bf16
        ln_kv = _layernorm(x_kv, gamma, beta)
        kv1 = jnp.dot(ln_kv.astype(bf16), a1_wkv_ref[...],
                      preferred_element_type=jnp.float32) + a1_bkv_ref[...]
        kv1_ref[...] = kv1.astype(bf16)
        # Cross-attention K/V source: raw encoder outputs (no LayerNorm).
        enc = enc_ref[0]                               # (Se, D) bf16
        kv2 = jnp.dot(enc, a2_wkv_ref[...],
                      preferred_element_type=jnp.float32) + a2_bkv_ref[...]
        kv2_ref[...] = kv2.astype(bf16)

    x_q = xq_ref[0]            # (TQ, D) f32 query tile (also the residual)

    # Mask -> additive bias, computed once per tile (int path, no f32 cast).
    keep = mask_ref[0].astype(jnp.int32) != 0                  # (TQ, S)
    bias = jnp.where(keep, jnp.float32(0.0), jnp.float32(-1e9))

    # --- sublayer 1: masked self-attention (dropout == identity in eval) ----
    ln_q = _layernorm(x_q, gamma, beta)
    q1 = jnp.dot(ln_q.astype(bf16), a1_wq_ref[...],
                 preferred_element_type=jnp.float32) + a1_bq_ref[...]
    attn1 = _mha_core(q1, kv1_ref, a1_wo_ref, a1_bo_ref[...], bias, num_heads)
    x1 = attn1 + x_q

    # --- sublayer 2: cross-attention over raw encoder outputs (no mask) -----
    ln1 = _layernorm(x1, gamma, beta)
    q2 = jnp.dot(ln1.astype(bf16), a2_wq_ref[...],
                 preferred_element_type=jnp.float32) + a2_bq_ref[...]
    attn2 = _mha_core(q2, kv2_ref, a2_wo_ref, a2_bo_ref[...], None, num_heads)
    x2 = attn2 + x1

    # --- sublayer 3: position-wise FFNN (Linear -> ReLU -> Linear) ----------
    ln2 = _layernorm(x2, gamma, beta)
    h = jnp.dot(ln2.astype(bf16), w1_ref[...],
                preferred_element_type=jnp.float32) + fb1_ref[...]
    h = jnp.maximum(h, 0.0)
    h = jnp.dot(h.astype(bf16), w2_ref[...],
                preferred_element_type=jnp.float32) + fb2_ref[...]
    out_ref[0] = (h + x2).astype(out_ref.dtype)


# ----------------------------- wrapper ---------------------------------------

def decoder_block(x, enc, mask, params, *, num_heads, tq=None):
    """params: packed kernel params (see pack_kernel_params)."""
    B, S, D = x.shape
    _, Se, _ = enc.shape
    dff = params["ffn_w1"].shape[1]
    assert D % num_heads == 0

    if tq is None:
        for cand in (256, 128):        # prefer 256 (fills v6e/v7x MXU rows)
            if S % cand == 0:
                tq = cand
                break
        else:
            tq = S                     # tiny S: one tile for the whole seq
    assert S % tq == 0
    nq = S // tq

    # Compact mask (4x smaller DMA than f32); K/V activations in bf16.
    mask_i8 = (mask != 0).astype(jnp.int8)
    x_kv_bf16 = x.astype(jnp.bfloat16)
    enc_bf16 = enc.astype(jnp.bfloat16)

    # Constant-index (weight) blocks: single-buffered -> pure VMEM headroom.
    def const(shape):
        return pl.BlockSpec(shape, lambda b, q: (0,) * len(shape),
                            pipeline_mode=pl.Buffered(1))

    # Full-sequence blocks: constant along q -> only re-fetched on b change;
    # double-buffering them just burns VMEM.
    def per_batch(shape):
        return pl.BlockSpec(shape, lambda b, q: (b, 0, 0),
                            pipeline_mode=pl.Buffered(1))

    # Per-q-tile blocks: deeper pipeline when there are enough q steps.
    def per_tile(shape):
        kw = {"pipeline_mode": pl.Buffered(3)} if nq >= 3 else {}
        return pl.BlockSpec(shape, lambda b, q: (b, q, 0), **kw)

    grid_spec = pltpu.PrefetchScalarGridSpec(
        num_scalar_prefetch=0,
        grid=(B, nq),
        in_specs=[
            per_tile((1, tq, D)),                     # x query tile (f32)
            per_batch((1, S, D)),                     # x full seq (bf16, K/V)
            per_batch((1, Se, D)),                    # encoder (bf16)
            per_tile((1, tq, S)),                     # mask tile (int8)
            const((D, D)), const((1, D)),             # attn1 Wq, bq (scaled)
            const((D, 2 * D)), const((1, 2 * D)),     # attn1 W{k,v} fused
            const((D, D)), const((1, D)),             # attn1 Wo, bo
            const((D, D)), const((1, D)),             # attn2 Wq, bq (scaled)
            const((D, 2 * D)), const((1, 2 * D)),     # attn2 W{k,v} fused
            const((D, D)), const((1, D)),             # attn2 Wo, bo
            const((1, D)), const((1, D)),             # shared LN gamma, beta
            const((D, dff)), const((1, dff)),         # FFN W1, b1
            const((dff, D)), const((1, D)),           # FFN W2, b2
        ],
        out_specs=pl.BlockSpec((1, tq, D), lambda b, q: (b, q, 0)),
        scratch_shapes=[
            pltpu.VMEM((S, 2 * D), jnp.bfloat16),     # self-attn K|V (per-b)
            pltpu.VMEM((Se, 2 * D), jnp.bfloat16),    # cross-attn K|V (per-b)
        ],
    )

    # Advisory cost estimate for the XLA scheduler (K/V projections now 1x).
    def mm(m, k, n):
        return 2 * m * k * n
    flops_per_b = (
        mm(S, D, 2 * D) + mm(Se, D, 2 * D)                   # hoisted K/V
        + mm(S, D, D) + 2 * mm(S, S, D) + mm(S, D, D)        # self-attn
        + mm(S, D, D) + 2 * mm(S, Se, D) + mm(S, D, D)       # cross-attn
        + mm(S, D, dff) + mm(S, dff, D))                     # FFN
    param_bytes = sum(int(v.size) * v.dtype.itemsize for v in params.values())
    bytes_accessed = int(
        x.size * 4                       # f32 query tiles
        + x.size * 2 + enc.size * 2      # bf16 K/V sources (once per batch)
        + mask_i8.size
        + param_bytes
        + x.size * 4)                    # f32 output
    cost = pl.CostEstimate(
        flops=int(B * flops_per_b),
        transcendentals=int(B * num_heads * S * (S + Se)),
        bytes_accessed=bytes_accessed)

    # VMEM budget per generation: 75% of physical, capped at 96 MiB
    # (v5e/v6e: 96 MiB of 128; v7x: 48 MiB of 64).
    try:
        vmem_cap = int(getattr(pltpu.get_tpu_info(), "vmem_capacity_bytes",
                               64 * 1024 * 1024))
    except Exception:  # pragma: no cover - conservative fallback
        vmem_cap = 64 * 1024 * 1024
    vmem_limit = min(96 * 1024 * 1024, (vmem_cap * 3) // 4)

    return pl.pallas_call(
        functools.partial(decoder_block_kernel, num_heads=num_heads),
        out_shape=jax.ShapeDtypeStruct((B, S, D), x.dtype),
        grid_spec=grid_spec,
        compiler_params=pltpu.CompilerParams(
            # q axis carries the per-batch K/V scratch dependency -> arbitrary;
            # batch axis stays parallel so both v7x TensorCores are fed.
            dimension_semantics=("parallel", "arbitrary"),
            vmem_limit_bytes=vmem_limit),
        cost_estimate=cost,
    )(x, x_kv_bf16, enc_bf16, mask_i8,
      params["a1_wq"], params["a1_bq"], params["a1_wkv"], params["a1_bkv"],
      params["a1_wo"], params["a1_bo"],
      params["a2_wq"], params["a2_bq"], params["a2_wkv"], params["a2_bkv"],
      params["a2_wo"], params["a2_bo"],
      params["ln_g"], params["ln_b"],
      params["ffn_w1"], params["ffn_b1"], params["ffn_w2"], params["ffn_b2"])


def pack_kernel_params(p, *, num_heads):
    """Host-side, one-time repack: fuse K/V weights, fold the 1/sqrt(hd)
    softmax scale into Wq AND bq, cast MXU operands to bf16."""
    bf16 = jnp.bfloat16
    d_model = p["a1_w"].shape[-1]
    hd = d_model // num_heads
    scale = 1.0 / float(hd) ** 0.5

    def attn(W, b):
        return {
            "wq": (W[0] * scale).astype(bf16),
            "bq": b[0:1, :] * scale,
            "wkv": jnp.concatenate([W[1], W[2]], axis=1).astype(bf16),
            "bkv": jnp.concatenate([b[1], b[2]], axis=0)[None, :],
            "wo": W[3].astype(bf16),
            "bo": b[3:4, :],
        }

    a1 = attn(p["a1_w"], p["a1_b"])
    a2 = attn(p["a2_w"], p["a2_b"])
    return {
        "a1_wq": a1["wq"], "a1_bq": a1["bq"], "a1_wkv": a1["wkv"],
        "a1_bkv": a1["bkv"], "a1_wo": a1["wo"], "a1_bo": a1["bo"],
        "a2_wq": a2["wq"], "a2_bq": a2["bq"], "a2_wkv": a2["wkv"],
        "a2_bkv": a2["bkv"], "a2_wo": a2["wo"], "a2_bo": a2["bo"],
        "ln_g": p["ln_g"], "ln_b": p["ln_b"],
        "ffn_w1": p["ffn_w1"].astype(bf16), "ffn_b1": p["ffn_b1"],
        "ffn_w2": p["ffn_w2"].astype(bf16), "ffn_b2": p["ffn_b2"],
    }


# ----------------------------- pure-JAX reference (f32) ----------------------

def ref_decoder_block(x, enc, mask, params, num_heads):
    def ln(t):
        mu = t.mean(-1, keepdims=True)
        var = ((t - mu) ** 2).mean(-1, keepdims=True)
        return (t - mu) / jnp.sqrt(var + 1e-5) * params["ln_g"][0] + params["ln_b"][0]

    def mha(qi, ki, vi, W, b, m=None):
        D = qi.shape[-1]
        hd = D // num_heads
        q = qi @ W[0] + b[0]
        k = ki @ W[1] + b[1]
        v = vi @ W[2] + b[2]
        outs = []
        for h in range(num_heads):
            s = (q[:, h * hd:(h + 1) * hd] @ k[:, h * hd:(h + 1) * hd].T) / jnp.sqrt(
                jnp.float32(hd))
            if m is not None:
                s = jnp.where(m, s, -1e9)
            p = jax.nn.softmax(s, axis=-1)
            outs.append(p @ v[:, h * hd:(h + 1) * hd])
        return jnp.concatenate(outs, -1) @ W[3] + b[3]

    def one(xb, eb, mb):
        h1 = mha(ln(xb), ln(xb), ln(xb), params["a1_w"], params["a1_b"], mb)
        x1 = h1 + xb
        h2 = mha(ln(x1), eb, eb, params["a2_w"], params["a2_b"])
        x2 = h2 + x1
        h3 = ln(x2)
        h3 = jnp.maximum(h3 @ params["ffn_w1"] + params["ffn_b1"][0], 0.0)
        h3 = h3 @ params["ffn_w2"] + params["ffn_b2"][0]
        return h3 + x2

    return jax.vmap(one)(x, enc, mask)


# ----------------------------- main -------------------------------------------

if __name__ == "__main__":
    B, S, Se, D, H, DFF = 2, 16, 16, 128, 4, 256   # D lane-dense (128)

    key = jax.random.PRNGKey(0)
    keys = jax.random.split(key, 12)

    params = {
        "a1_w": 0.05 * jax.random.normal(keys[0], (4, D, D), jnp.float32),
        "a1_b": 0.05 * jax.random.normal(keys[1], (4, D), jnp.float32),
        "a2_w": 0.05 * jax.random.normal(keys[2], (4, D, D), jnp.float32),
        "a2_b": 0.05 * jax.random.normal(keys[3], (4, D), jnp.float32),
        "ln_g": 1.0 + 0.05 * jax.random.normal(keys[4], (1, D), jnp.float32),
        "ln_b": 0.05 * jax.random.normal(keys[5], (1, D), jnp.float32),
        "ffn_w1": 0.05 * jax.random.normal(keys[6], (D, DFF), jnp.float32),
        "ffn_b1": 0.05 * jax.random.normal(keys[7], (1, DFF), jnp.float32),
        "ffn_w2": 0.05 * jax.random.normal(keys[8], (DFF, D), jnp.float32),
        "ffn_b2": 0.05 * jax.random.normal(keys[9], (1, D), jnp.float32),
    }

    x = jax.random.normal(keys[10], (B, S, D), jnp.float32)
    enc = jax.random.normal(keys[11], (B, Se, D), jnp.float32)

    # Causal boolean mask (True = attend), as the module expects.
    causal = jnp.tril(jnp.ones((S, S), jnp.bool_))
    mask = jnp.broadcast_to(causal, (B, S, S))

    kparams = pack_kernel_params(params, num_heads=H)
    out = decoder_block(x, enc, mask, kparams, num_heads=H)
    out = jax.block_until_ready(out)

    ref = ref_decoder_block(x, enc, mask, params, H)
    assert out.shape == (B, S, D)
    max_err = float(jnp.max(jnp.abs(out - ref)))
    # bf16 MXU operands / bf16 K-V activations -> tolerance loosened vs. f32 ref.
    assert jnp.allclose(out, ref, atol=2e-2, rtol=2e-2), max_err

    print("KERNEL_OK")
</pallas_src>

<mosaic_0001>
module attributes {stable_mosaic.version = 11 : i64} {
  func.func @decoder_block_kernel(%arg0: i32, %arg1: i32, %arg2: memref<1x16x128xf32, #tpu.memory_space<vmem>>, %arg3: memref<1x16x128xbf16, #tpu.memory_space<vmem>>, %arg4: memref<1x16x128xbf16, #tpu.memory_space<vmem>>, %arg5: memref<1x16x16xi8, #tpu.memory_space<vmem>>, %arg6: memref<128x128xbf16, #tpu.memory_space<vmem>>, %arg7: memref<1x128xf32, #tpu.memory_space<vmem>>, %arg8: memref<128x256xbf16, #tpu.memory_space<vmem>>, %arg9: memref<1x256xf32, #tpu.memory_space<vmem>>, %arg10: memref<128x128xbf16, #tpu.memory_space<vmem>>, %arg11: memref<1x128xf32, #tpu.memory_space<vmem>>, %arg12: memref<128x128xbf16, #tpu.memory_space<vmem>>, %arg13: memref<1x128xf32, #tpu.memory_space<vmem>>, %arg14: memref<128x256xbf16, #tpu.memory_space<vmem>>, %arg15: memref<1x256xf32, #tpu.memory_space<vmem>>, %arg16: memref<128x128xbf16, #tpu.memory_space<vmem>>, %arg17: memref<1x128xf32, #tpu.memory_space<vmem>>, %arg18: memref<1x128xf32, #tpu.memory_space<vmem>>, %arg19: memref<1x128xf32, #tpu.memory_space<vmem>>, %arg20: memref<128x256xbf16, #tpu.memory_space<vmem>>, %arg21: memref<1x256xf32, #tpu.memory_space<vmem>>, %arg22: memref<256x128xbf16, #tpu.memory_space<vmem>>, %arg23: memref<1x128xf32, #tpu.memory_space<vmem>>, %arg24: memref<1x16x128xf32, #tpu.memory_space<vmem>>, %arg25: memref<16x256xbf16, #tpu.memory_space<vmem>>, %arg26: memref<16x256xbf16, #tpu.memory_space<vmem>>) attributes {dimension_semantics = [#tpu.dimension_semantics<parallel>, #tpu.dimension_semantics<arbitrary>], iteration_bounds = array<i64: 2, 1>, scalar_prefetch = 0 : i64, scratch_operands = 2 : i64, tpu.core_type = #tpu.core_type<tc>, window_params = [{transform_indices = @transform_0, window_bounds = array<i64: 1, 16, 128>}, {pipeline_mode = #tpu.pipeline_mode<synchronous>, transform_indices = @transform_1, window_bounds = array<i64: 1, 16, 128>}, {pipeline_mode = #tpu.pipeline_mode<synchronous>, transform_indices = @transform_2, window_bounds = array<i64: 1, 16, 128>}, {transform_indices = @transform_3, window_bounds = array<i64: 1, 16, 16>}, {pipeline_mode = #tpu.pipeline_mode<synchronous>, transform_indices = @transform_4, window_bounds = array<i64: 128, 128>}, {pipeline_mode = #tpu.pipeline_mode<synchronous>, transform_indices = @transform_5, window_bounds = array<i64: 1, 128>}, {pipeline_mode = #tpu.pipeline_mode<synchronous>, transform_indices = @transform_6, window_bounds = array<i64: 128, 256>}, {pipeline_mode = #tpu.pipeline_mode<synchronous>, transform_indices = @transform_7, window_bounds = array<i64: 1, 256>}, {pipeline_mode = #tpu.pipeline_mode<synchronous>, transform_indices = @transform_8, window_bounds = array<i64: 128, 128>}, {pipeline_mode = #tpu.pipeline_mode<synchronous>, transform_indices = @transform_9, window_bounds = array<i64: 1, 128>}, {pipeline_mode = #tpu.pipeline_mode<synchronous>, transform_indices = @transform_10, window_bounds = array<i64: 128, 128>}, {pipeline_mode = #tpu.pipeline_mode<synchronous>, transform_indices = @transform_11, window_bounds = array<i64: 1, 128>}, {pipeline_mode = #tpu.pipeline_mode<synchronous>, transform_indices = @transform_12, window_bounds = array<i64: 128, 256>}, {pipeline_mode = #tpu.pipeline_mode<synchronous>, transform_indices = @transform_13, window_bounds = array<i64: 1, 256>}, {pipeline_mode = #tpu.pipeline_mode<synchronous>, transform_indices = @transform_14, window_bounds = array<i64: 128, 128>}, {pipeline_mode = #tpu.pipeline_mode<synchronous>, transform_indices = @transform_15, window_bounds = array<i64: 1, 128>}, {pipeline_mode = #tpu.pipeline_mode<synchronous>, transform_indices = @transform_16, window_bounds = array<i64: 1, 128>}, {pipeline_mode = #tpu.pipeline_mode<synchronous>, transform_indices = @transform_17, window_bounds = array<i64: 1, 128>}, {pipeline_mode = #tpu.pipeline_mode<synchronous>, transform_indices = @transform_18, window_bounds = array<i64: 128, 256>}, {pipeline_mode = #tpu.pipeline_mode<synchronous>, transform_indices = @transform_19, window_bounds = array<i64: 1, 256>}, {pipeline_mode = #tpu.pipeline_mode<synchronous>, transform_indices = @transform_20, window_bounds = array<i64: 256, 128>}, {pipeline_mode = #tpu.pipeline_mode<synchronous>, transform_indices = @transform_21, window_bounds = array<i64: 1, 128>}, {transform_indices = @transform_22, window_bounds = array<i64: 1, 16, 128>}]} {
    %c0 = arith.constant 0 : index
    %c0_0 = arith.constant 0 : index
    %0 = vector.load %arg18[%c0, %c0_0] : memref<1x128xf32, #tpu.memory_space<vmem>>, vector<1x128xf32>
    %c0_1 = arith.constant 0 : index
    %c0_2 = arith.constant 0 : index
    %1 = vector.load %arg19[%c0_1, %c0_2] : memref<1x128xf32, #tpu.memory_space<vmem>>, vector<1x128xf32>
    %c0_i32 = arith.constant 0 : i32
    %2 = arith.cmpi eq, %arg1, %c0_i32 : i32
    %3 = arith.extui %2 : i1 to i32
    %c0_i32_3 = arith.constant 0 : i32
    %4 = arith.cmpi ne, %3, %c0_i32_3 : i32
    scf.if %4 {
      %c0_138 = arith.constant 0 : index
      %c0_139 = arith.constant 0 : index
      %c0_140 = arith.constant 0 : index
      %287 = vector.load %arg3[%c0_138, %c0_139, %c0_140] : memref<1x16x128xbf16, #tpu.memory_space<vmem>>, vector<1x16x128xbf16>
      %288 = vector.shape_cast %287 : vector<1x16x128xbf16> to vector<16x128xbf16>
      %289 = arith.extf %288 : vector<16x128xbf16> to vector<16x128xf32>
      %cst_141 = arith.constant dense<0.000000e+00> : vector<16xf32>
      %290 = vector.multi_reduction <add>, %289, %cst_141 [1] : vector<16x128xf32> to vector<16xf32>
      %291 = vector.shape_cast %290 : vector<16xf32> to vector<16x1xf32>
      %cst_142 = arith.constant 1.280000e+02 : f32
      %292 = vector.broadcast %cst_142 : f32 to vector<16x1xf32>
      %293 = arith.divf %291, %292 : vector<16x1xf32>
      %294 = vector.broadcast %293 : vector<16x1xf32> to vector<16x128xf32>
      %295 = arith.subf %289, %294 : vector<16x128xf32>
      %296 = arith.mulf %295, %295 : vector<16x128xf32>
      %cst_143 = arith.constant dense<0.000000e+00> : vector<16xf32>
      %297 = vector.multi_reduction <add>, %296, %cst_143 [1] : vector<16x128xf32> to vector<16xf32>
      %298 = vector.shape_cast %297 : vector<16xf32> to vector<16x1xf32>
      %cst_144 = arith.constant 1.280000e+02 : f32
      %299 = vector.broadcast %cst_144 : f32 to vector<16x1xf32>
      %300 = arith.divf %298, %299 : vector<16x1xf32>
      %301 = vector.broadcast %293 : vector<16x1xf32> to vector<16x128xf32>
      %302 = arith.subf %289, %301 : vector<16x128xf32>
      %cst_145 = arith.constant 9.99999974E-6 : f32
      %303 = vector.broadcast %cst_145 : f32 to vector<16x1xf32>
      %304 = arith.addf %300, %303 : vector<16x1xf32>
      %305 = math.rsqrt %304 : vector<16x1xf32>
      %306 = vector.broadcast %305 : vector<16x1xf32> to vector<16x128xf32>
      %307 = arith.mulf %302, %306 : vector<16x128xf32>
      %308 = vector.broadcast %0 : vector<1x128xf32> to vector<16x128xf32>
      %309 = arith.mulf %307, %308 : vector<16x128xf32>
      %310 = vector.broadcast %1 : vector<1x128xf32> to vector<16x128xf32>
      %311 = arith.addf %309, %310 : vector<16x128xf32>
      %312 = arith.truncf %311 : vector<16x128xf32> to vector<16x128xbf16>
      %c0_146 = arith.constant 0 : index
      %c0_147 = arith.constant 0 : index
      %313 = vector.load %arg8[%c0_146, %c0_147] : memref<128x256xbf16, #tpu.memory_space<vmem>>, vector<128x256xbf16>
      %cst_148 = arith.constant dense<0.000000e+00> : vector<16x256xf32>
      %314 = tpu.matmul %312, %313, %cst_148 {dimension_numbers = #tpu.dot_dimension_numbers<[1], [0], [0], [1], [0, 0, 1, 1], [], []>} : vector<16x128xbf16>, vector<128x256xbf16>, vector<16x256xf32> -> vector<16x256xf32>
      %c0_149 = arith.constant 0 : index
      %c0_150 = arith.constant 0 : index
      %315 = vector.load %arg9[%c0_149, %c0_150] : memref<1x256xf32, #tpu.memory_space<vmem>>, vector<1x256xf32>
      %316 = vector.broadcast %315 : vector<1x256xf32> to vector<16x256xf32>
      %317 = arith.addf %314, %316 : vector<16x256xf32>
      %318 = arith.truncf %317 : vector<16x256xf32> to vector<16x256xbf16>
      %c0_151 = arith.constant 0 : index
      %c0_152 = arith.constant 0 : index
      %319 = vector.load %arg25[%c0_151, %c0_152] : memref<16x256xbf16, #tpu.memory_space<vmem>>, vector<16x256xbf16>
      tpu.vector_store %arg25[%c0_151, %c0_152], %318 {strides = array<i32>} : memref<16x256xbf16, #tpu.memory_space<vmem>>, vector<16x256xbf16>,
      %c0_153 = arith.constant 0 : index
      %c0_154 = arith.constant 0 : index
      %c0_155 = arith.constant 0 : index
      %320 = vector.load %arg4[%c0_153, %c0_154, %c0_155] : memref<1x16x128xbf16, #tpu.memory_space<vmem>>, vector<1x16x128xbf16>
      %321 = vector.shape_cast %320 : vector<1x16x128xbf16> to vector<16x128xbf16>
      %c0_156 = arith.constant 0 : index
      %c0_157 = arith.constant 0 : index
      %322 = vector.load %arg14[%c0_156, %c0_157] : memref<128x256xbf16, #tpu.memory_space<vmem>>, vector<128x256xbf16>
      %cst_158 = arith.constant dense<0.000000e+00> : vector<16x256xf32>
      %323 = tpu.matmul %321, %322, %cst_158 {dimension_numbers = #tpu.dot_dimension_numbers<[1], [0], [0], [1], [0, 0, 1, 1], [], []>} : vector<16x128xbf16>, vector<128x256xbf16>, vector<16x256xf32> -> vector<16x256xf32>
      %c0_159 = arith.constant 0 : index
      %c0_160 = arith.constant 0 : index
      %324 = vector.load %arg15[%c0_159, %c0_160] : memref<1x256xf32, #tpu.memory_space<vmem>>, vector<1x256xf32>
      %325 = vector.broadcast %324 : vector<1x256xf32> to vector<16x256xf32>
      %326 = arith.addf %323, %325 : vector<16x256xf32>
      %327 = arith.truncf %326 : vector<16x256xf32> to vector<16x256xbf16>
      %c0_161 = arith.constant 0 : index
      %c0_162 = arith.constant 0 : index
      %328 = vector.load %arg26[%c0_161, %c0_162] : memref<16x256xbf16, #tpu.memory_space<vmem>>, vector<16x256xbf16>
      tpu.vector_store %arg26[%c0_161, %c0_162], %327 {strides = array<i32>} : memref<16x256xbf16, #tpu.memory_space<vmem>>, vector<16x256xbf16>,
    } else {
    }
    %c0_4 = arith.constant 0 : index
    %c0_5 = arith.constant 0 : index
    %c0_6 = arith.constant 0 : index
    %5 = vector.load %arg2[%c0_4, %c0_5, %c0_6] : memref<1x16x128xf32, #tpu.memory_space<vmem>>, vector<1x16x128xf32>
    %6 = vector.shape_cast %5 : vector<1x16x128xf32> to vector<16x128xf32>
    %c0_7 = arith.constant 0 : index
    %c0_8 = arith.constant 0 : index
    %c0_9 = arith.constant 0 : index
    %7 = vector.load %arg5[%c0_7, %c0_8, %c0_9] : memref<1x16x16xi8, #tpu.memory_space<vmem>>, vector<1x16x16xi8>
    %8 = vector.shape_cast %7 : vector<1x16x16xi8> to vector<16x16xi8>
    %9 = arith.extsi %8 : vector<16x16xi8> to vector<16x16xi32>
    %c0_i32_10 = arith.constant 0 : i32
    %10 = vector.broadcast %c0_i32_10 : i32 to vector<16x16xi32>
    %11 = arith.cmpi ne, %9, %10 : vector<16x16xi32>
    %cst = arith.constant 0.000000e+00 : f32
    %cst_11 = arith.constant -1.000000e+09 : f32
    %12 = vector.broadcast %cst : f32 to vector<16x16xf32>
    %13 = vector.broadcast %cst_11 : f32 to vector<16x16xf32>
    %14 = arith.select %11, %12, %13 : vector<16x16xi1>, vector<16x16xf32>
    %cst_12 = arith.constant dense<0.000000e+00> : vector<16xf32>
    %15 = vector.multi_reduction <add>, %6, %cst_12 [1] : vector<16x128xf32> to vector<16xf32>
    %16 = vector.shape_cast %15 : vector<16xf32> to vector<16x1xf32>
    %cst_13 = arith.constant 1.280000e+02 : f32
    %17 = vector.broadcast %cst_13 : f32 to vector<16x1xf32>
    %18 = arith.divf %16, %17 : vector<16x1xf32>
    %19 = vector.broadcast %18 : vector<16x1xf32> to vector<16x128xf32>
    %20 = arith.subf %6, %19 : vector<16x128xf32>
    %21 = arith.mulf %20, %20 : vector<16x128xf32>
    %cst_14 = arith.constant dense<0.000000e+00> : vector<16xf32>
    %22 = vector.multi_reduction <add>, %21, %cst_14 [1] : vector<16x128xf32> to vector<16xf32>
    %23 = vector.shape_cast %22 : vector<16xf32> to vector<16x1xf32>
    %cst_15 = arith.constant 1.280000e+02 : f32
    %24 = vector.broadcast %cst_15 : f32 to vector<16x1xf32>
    %25 = arith.divf %23, %24 : vector<16x1xf32>
    %26 = vector.broadcast %18 : vector<16x1xf32> to vector<16x128xf32>
    %27 = arith.subf %6, %26 : vector<16x128xf32>
    %cst_16 = arith.constant 9.99999974E-6 : f32
    %28 = vector.broadcast %cst_16 : f32 to vector<16x1xf32>
    %29 = arith.addf %25, %28 : vector<16x1xf32>
    %30 = math.rsqrt %29 : vector<16x1xf32>
    %31 = vector.broadcast %30 : vector<16x1xf32> to vector<16x128xf32>
    %32 = arith.mulf %27, %31 : vector<16x128xf32>
    %33 = vector.broadcast %0 : vector<1x128xf32> to vector<16x128xf32>
    %34 = arith.mulf %32, %33 : vector<16x128xf32>
    %35 = vector.broadcast %1 : vector<1x128xf32> to vector<16x128xf32>
    %36 = arith.addf %34, %35 : vector<16x128xf32>
    %37 = arith.truncf %36 : vector<16x128xf32> to vector<16x128xbf16>
    %c0_17 = arith.constant 0 : index
    %c0_18 = arith.constant 0 : index
    %38 = vector.load %arg6[%c0_17, %c0_18] : memref<128x128xbf16, #tpu.memory_space<vmem>>, vector<128x128xbf16>
    %cst_19 = arith.constant dense<0.000000e+00> : vector<16x128xf32>
    %39 = tpu.matmul %37, %38, %cst_19 {dimension_numbers = #tpu.dot_dimension_numbers<[1], [0], [0], [1], [0, 0, 1, 1], [], []>} : vector<16x128xbf16>, vector<128x128xbf16>, vector<16x128xf32> -> vector<16x128xf32>
    %c0_20 = arith.constant 0 : index
    %c0_21 = arith.constant 0 : index
    %40 = vector.load %arg7[%c0_20, %c0_21] : memref<1x128xf32, #tpu.memory_space<vmem>>, vector<1x128xf32>
    %41 = vector.broadcast %40 : vector<1x128xf32> to vector<16x128xf32>
    %42 = arith.addf %39, %41 : vector<16x128xf32>
    %c0_22 = arith.constant 0 : index
    %c0_23 = arith.constant 0 : index
    %43 = vector.load %arg11[%c0_22, %c0_23] : memref<1x128xf32, #tpu.memory_space<vmem>>, vector<1x128xf32>
    %44 = arith.truncf %42 : vector<16x128xf32> to vector<16x128xbf16>
    %cst_24 = arith.constant 0.000000e+00 : f32
    %45 = vector.broadcast %cst_24 : f32 to vector<16x128xf32>
    %46 = vector.extract_strided_slice %44 {offsets = [0, 0], sizes = [16, 32], strides = [1, 1]} : vector<16x128xbf16> to vector<16x32xbf16>
    %c0_25 = arith.constant 0 : index
    %c0_26 = arith.constant 0 : index
    %47 = vector.load %arg25[%c0_25, %c0_26] : memref<16x256xbf16, #tpu.memory_space<vmem>>, vector<16x32xbf16>
    %c0_27 = arith.constant 0 : index
    %c128 = arith.constant 128 : index
    %48 = vector.load %arg25[%c0_27, %c128] : memref<16x256xbf16, #tpu.memory_space<vmem>>, vector<16x32xbf16>
    %cst_28 = arith.constant dense<0.000000e+00> : vector<16x16xf32>
    %49 = tpu.matmul %46, %47, %cst_28 {dimension_numbers = #tpu.dot_dimension_numbers<[1], [1], [0], [0], [0, 0, 1, 0], [], []>} : vector<16x32xbf16>, vector<16x32xbf16>, vector<16x16xf32> -> vector<16x16xf32>
    %50 = arith.addf %49, %14 : vector<16x16xf32>
    %cst_29 = arith.constant dense<0xFF800000> : vector<16xf32>
    %51 = vector.multi_reduction <maximumf>, %50, %cst_29 [1] : vector<16x16xf32> to vector<16xf32>
    %52 = vector.shape_cast %51 : vector<16xf32> to vector<16x1xf32>
    %53 = vector.broadcast %52 : vector<16x1xf32> to vector<16x16xf32>
    %54 = arith.subf %50, %53 : vector<16x16xf32>
    %55 = math.exp %54 : vector<16x16xf32>
    %cst_30 = arith.constant dense<0.000000e+00> : vector<16xf32>
    %56 = vector.multi_reduction <add>, %55, %cst_30 [1] : vector<16x16xf32> to vector<16xf32>
    %57 = vector.shape_cast %56 : vector<16xf32> to vector<16x1xf32>
    %58 = tpu.reciprocal %57 {approx = true} : vector<16x1xf32> -> vector<16x1xf32>
    %59 = vector.broadcast %58 : vector<16x1xf32> to vector<16x16xf32>
    %60 = arith.mulf %55, %59 : vector<16x16xf32>
    %61 = arith.truncf %60 : vector<16x16xf32> to vector<16x16xbf16>
    %cst_31 = arith.constant dense<0.000000e+00> : vector<16x32xf32>
    %62 = tpu.matmul %61, %48, %cst_31 {dimension_numbers = #tpu.dot_dimension_numbers<[1], [0], [0], [1], [0, 0, 1, 1], [], []>} : vector<16x16xbf16>, vector<16x32xbf16>, vector<16x32xf32> -> vector<16x32xf32>
    %63 = arith.truncf %62 : vector<16x32xf32> to vector<16x32xbf16>
    %c0_32 = arith.constant 0 : index
    %c0_33 = arith.constant 0 : index
    %64 = vector.load %arg10[%c0_32, %c0_33] : memref<128x128xbf16, #tpu.memory_space<vmem>>, vector<32x128xbf16>
    %cst_34 = arith.constant dense<0.000000e+00> : vector<16x128xf32>
    %65 = tpu.matmul %63, %64, %cst_34 {dimension_numbers = #tpu.dot_dimension_numbers<[1], [0], [0], [1], [0, 0, 1, 1], [], []>} : vector<16x32xbf16>, vector<32x128xbf16>, vector<16x128xf32> -> vector<16x128xf32>
    %66 = arith.addf %45, %65 : vector<16x128xf32>
    %67 = vector.extract_strided_slice %44 {offsets = [0, 32], sizes = [16, 32], strides = [1, 1]} : vector<16x128xbf16> to vector<16x32xbf16>
    %c0_35 = arith.constant 0 : index
    %c32 = arith.constant 32 : index
    %68 = vector.load %arg25[%c0_35, %c32] : memref<16x256xbf16, #tpu.memory_space<vmem>>, vector<16x32xbf16>
    %c0_36 = arith.constant 0 : index
    %c160 = arith.constant 160 : index
    %69 = vector.load %arg25[%c0_36, %c160] : memref<16x256xbf16, #tpu.memory_space<vmem>>, vector<16x32xbf16>
    %cst_37 = arith.constant dense<0.000000e+00> : vector<16x16xf32>
    %70 = tpu.matmul %67, %68, %cst_37 {dimension_numbers = #tpu.dot_dimension_numbers<[1], [1], [0], [0], [0, 0, 1, 0], [], []>} : vector<16x32xbf16>, vector<16x32xbf16>, vector<16x16xf32> -> vector<16x16xf32>
    %71 = arith.addf %70, %14 : vector<16x16xf32>
    %cst_38 = arith.constant dense<0xFF800000> : vector<16xf32>
    %72 = vector.multi_reduction <maximumf>, %71, %cst_38 [1] : vector<16x16xf32> to vector<16xf32>
    %73 = vector.shape_cast %72 : vector<16xf32> to vector<16x1xf32>
    %74 = vector.broadcast %73 : vector<16x1xf32> to vector<16x16xf32>
    %75 = arith.subf %71, %74 : vector<16x16xf32>
    %76 = math.exp %75 : vector<16x16xf32>
    %cst_39 = arith.constant dense<0.000000e+00> : vector<16xf32>
    %77 = vector.multi_reduction <add>, %76, %cst_39 [1] : vector<16x16xf32> to vector<16xf32>
    %78 = vector.shape_cast %77 : vector<16xf32> to vector<16x1xf32>
    %79 = tpu.reciprocal %78 {approx = true} : vector<16x1xf32> -> vector<16x1xf32>
    %80 = vector.broadcast %79 : vector<16x1xf32> to vector<16x16xf32>
    %81 = arith.mulf %76, %80 : vector<16x16xf32>
    %82 = arith.truncf %81 : vector<16x16xf32> to vector<16x16xbf16>
    %cst_40 = arith.constant dense<0.000000e+00> : vector<16x32xf32>
    %83 = tpu.matmul %82, %69, %cst_40 {dimension_numbers = #tpu.dot_dimension_numbers<[1], [0], [0], [1], [0, 0, 1, 1], [], []>} : vector<16x16xbf16>, vector<16x32xbf16>, vector<16x32xf32> -> vector<16x32xf32>
    %84 = arith.truncf %83 : vector<16x32xf32> to vector<16x32xbf16>
    %c32_41 = arith.constant 32 : index
    %c0_42 = arith.constant 0 : index
    %85 = vector.load %arg10[%c32_41, %c0_42] : memref<128x128xbf16, #tpu.memory_space<vmem>>, vector<32x128xbf16>
    %cst_43 = arith.constant dense<0.000000e+00> : vector<16x128xf32>
    %86 = tpu.matmul %84, %85, %cst_43 {dimension_numbers = #tpu.dot_dimension_numbers<[1], [0], [0], [1], [0, 0, 1, 1], [], []>} : vector<16x32xbf16>, vector<32x128xbf16>, vector<16x128xf32> -> vector<16x128xf32>
    %87 = arith.addf %66, %86 : vector<16x128xf32>
    %88 = vector.extract_strided_slice %44 {offsets = [0, 64], sizes = [16, 32], strides = [1, 1]} : vector<16x128xbf16> to vector<16x32xbf16>
    %c0_44 = arith.constant 0 : index
    %c64 = arith.constant 64 : index
    %89 = vector.load %arg25[%c0_44, %c64] : memref<16x256xbf16, #tpu.memory_space<vmem>>, vector<16x32xbf16>
    %c0_45 = arith.constant 0 : index
    %c192 = arith.constant 192 : index
    %90 = vector.load %arg25[%c0_45, %c192] : memref<16x256xbf16, #tpu.memory_space<vmem>>, vector<16x32xbf16>
    %cst_46 = arith.constant dense<0.000000e+00> : vector<16x16xf32>
    %91 = tpu.matmul %88, %89, %cst_46 {dimension_numbers = #tpu.dot_dimension_numbers<[1], [1], [0], [0], [0, 0, 1, 0], [], []>} : vector<16x32xbf16>, vector<16x32xbf16>, vector<16x16xf32> -> vector<16x16xf32>
    %92 = arith.addf %91, %14 : vector<16x16xf32>
    %cst_47 = arith.constant dense<0xFF800000> : vector<16xf32>
    %93 = vector.multi_reduction <maximumf>, %92, %cst_47 [1] : vector<16x16xf32> to vector<16xf32>
    %94 = vector.shape_cast %93 : vector<16xf32> to vector<16x1xf32>
    %95 = vector.broadcast %94 : vector<16x1xf32> to vector<16x16xf32>
    %96 = arith.subf %92, %95 : vector<16x16xf32>
    %97 = math.exp %96 : vector<16x16xf32>
    %cst_48 = arith.constant dense<0.000000e+00> : vector<16xf32>
    %98 = vector.multi_reduction <add>, %97, %cst_48 [1] : vector<16x16xf32> to vector<16xf32>
    %99 = vector.shape_cast %98 : vector<16xf32> to vector<16x1xf32>
    %100 = tpu.reciprocal %99 {approx = true} : vector<16x1xf32> -> vector<16x1xf32>
    %101 = vector.broadcast %100 : vector<16x1xf32> to vector<16x16xf32>
    %102 = arith.mulf %97, %101 : vector<16x16xf32>
    %103 = arith.truncf %102 : vector<16x16xf32> to vector<16x16xbf16>
    %cst_49 = arith.constant dense<0.000000e+00> : vector<16x32xf32>
    %104 = tpu.matmul %103, %90, %cst_49 {dimension_numbers = #tpu.dot_dimension_numbers<[1], [0], [0], [1], [0, 0, 1, 1], [], []>} : vector<16x16xbf16>, vector<16x32xbf16>, vector<16x32xf32> -> vector<16x32xf32>
    %105 = arith.truncf %104 : vector<16x32xf32> to vector<16x32xbf16>
    %c64_50 = arith.constant 64 : index
    %c0_51 = arith.constant 0 : index
    %106 = vector.load %arg10[%c64_50, %c0_51] : memref<128x128xbf16, #tpu.memory_space<vmem>>, vector<32x128xbf16>
    %cst_52 = arith.constant dense<0.000000e+00> : vector<16x128xf32>
    %107 = tpu.matmul %105, %106, %cst_52 {dimension_numbers = #tpu.dot_dimension_numbers<[1], [0], [0], [1], [0, 0, 1, 1], [], []>} : vector<16x32xbf16>, vector<32x128xbf16>, vector<16x128xf32> -> vector<16x128xf32>
    %108 = arith.addf %87, %107 : vector<16x128xf32>
    %109 = vector.extract_strided_slice %44 {offsets = [0, 96], sizes = [16, 32], strides = [1, 1]} : vector<16x128xbf16> to vector<16x32xbf16>
    %c0_53 = arith.constant 0 : index
    %c96 = arith.constant 96 : index
    %110 = vector.load %arg25[%c0_53, %c96] : memref<16x256xbf16, #tpu.memory_space<vmem>>, vector<16x32xbf16>
    %c0_54 = arith.constant 0 : index
    %c224 = arith.constant 224 : index
    %111 = vector.load %arg25[%c0_54, %c224] : memref<16x256xbf16, #tpu.memory_space<vmem>>, vector<16x32xbf16>
    %cst_55 = arith.constant dense<0.000000e+00> : vector<16x16xf32>
    %112 = tpu.matmul %109, %110, %cst_55 {dimension_numbers = #tpu.dot_dimension_numbers<[1], [1], [0], [0], [0, 0, 1, 0], [], []>} : vector<16x32xbf16>, vector<16x32xbf16>, vector<16x16xf32> -> vector<16x16xf32>
    %113 = arith.addf %112, %14 : vector<16x16xf32>
    %cst_56 = arith.constant dense<0xFF800000> : vector<16xf32>
    %114 = vector.multi_reduction <maximumf>, %113, %cst_56 [1] : vector<16x16xf32> to vector<16xf32>
    %115 = vector.shape_cast %114 : vector<16xf32> to vector<16x1xf32>
    %116 = vector.broadcast %115 : vector<16x1xf32> to vector<16x16xf32>
    %117 = arith.subf %113, %116 : vector<16x16xf32>
    %118 = math.exp %117 : vector<16x16xf32>
    %cst_57 = arith.constant dense<0.000000e+00> : vector<16xf32>
    %119 = vector.multi_reduction <add>, %118, %cst_57 [1] : vector<16x16xf32> to vector<16xf32>
    %120 = vector.shape_cast %119 : vector<16xf32> to vector<16x1xf32>
    %121 = tpu.reciprocal %120 {approx = true} : vector<16x1xf32> -> vector<16x1xf32>
    %122 = vector.broadcast %121 : vector<16x1xf32> to vector<16x16xf32>
    %123 = arith.mulf %118, %122 : vector<16x16xf32>
    %124 = arith.truncf %123 : vector<16x16xf32> to vector<16x16xbf16>
    %cst_58 = arith.constant dense<0.000000e+00> : vector<16x32xf32>
    %125 = tpu.matmul %124, %111, %cst_58 {dimension_numbers = #tpu.dot_dimension_numbers<[1], [0], [0], [1], [0, 0, 1, 1], [], []>} : vector<16x16xbf16>, vector<16x32xbf16>, vector<16x32xf32> -> vector<16x32xf32>
    %126 = arith.truncf %125 : vector<16x32xf32> to vector<16x32xbf16>
    %c96_59 = arith.constant 96 : index
    %c0_60 = arith.constant 0 : index
    %127 = vector.load %arg10[%c96_59, %c0_60] : memref<128x128xbf16, #tpu.memory_space<vmem>>, vector<32x128xbf16>
    %cst_61 = arith.constant dense<0.000000e+00> : vector<16x128xf32>
    %128 = tpu.matmul %126, %127, %cst_61 {dimension_numbers = #tpu.dot_dimension_numbers<[1], [0], [0], [1], [0, 0, 1, 1], [], []>} : vector<16x32xbf16>, vector<32x128xbf16>, vector<16x128xf32> -> vector<16x128xf32>
    %129 = arith.addf %108, %128 : vector<16x128xf32>
    %130 = vector.broadcast %43 : vector<1x128xf32> to vector<16x128xf32>
    %131 = arith.addf %129, %130 : vector<16x128xf32>
    %132 = arith.addf %131, %6 : vector<16x128xf32>
    %cst_62 = arith.constant dense<0.000000e+00> : vector<16xf32>
    %133 = vector.multi_reduction <add>, %132, %cst_62 [1] : vector<16x128xf32> to vector<16xf32>
    %134 = vector.shape_cast %133 : vector<16xf32> to vector<16x1xf32>
    %cst_63 = arith.constant 1.280000e+02 : f32
    %135 = vector.broadcast %cst_63 : f32 to vector<16x1xf32>
    %136 = arith.divf %134, %135 : vector<16x1xf32>
    %137 = vector.broadcast %136 : vector<16x1xf32> to vector<16x128xf32>
    %138 = arith.subf %132, %137 : vector<16x128xf32>
    %139 = arith.mulf %138, %138 : vector<16x128xf32>
    %cst_64 = arith.constant dense<0.000000e+00> : vector<16xf32>
    %140 = vector.multi_reduction <add>, %139, %cst_64 [1] : vector<16x128xf32> to vector<16xf32>
    %141 = vector.shape_cast %140 : vector<16xf32> to vector<16x1xf32>
    %cst_65 = arith.constant 1.280000e+02 : f32
    %142 = vector.broadcast %cst_65 : f32 to vector<16x1xf32>
    %143 = arith.divf %141, %142 : vector<16x1xf32>
    %144 = vector.broadcast %136 : vector<16x1xf32> to vector<16x128xf32>
    %145 = arith.subf %132, %144 : vector<16x128xf32>
    %cst_66 = arith.constant 9.99999974E-6 : f32
    %146 = vector.broadcast %cst_66 : f32 to vector<16x1xf32>
    %147 = arith.addf %143, %146 : vector<16x1xf32>
    %148 = math.rsqrt %147 : vector<16x1xf32>
    %149 = vector.broadcast %148 : vector<16x1xf32> to vector<16x128xf32>
    %150 = arith.mulf %145, %149 : vector<16x128xf32>
    %151 = vector.broadcast %0 : vector<1x128xf32> to vector<16x128xf32>
    %152 = arith.mulf %150, %151 : vector<16x128xf32>
    %153 = vector.broadcast %1 : vector<1x128xf32> to vector<16x128xf32>
    %154 = arith.addf %152, %153 : vector<16x128xf32>
    %155 = arith.truncf %154 : vector<16x128xf32> to vector<16x128xbf16>
    %c0_67 = arith.constant 0 : index
    %c0_68 = arith.constant 0 : index
    %156 = vector.load %arg12[%c0_67, %c0_68] : memref<128x128xbf16, #tpu.memory_space<vmem>>, vector<128x128xbf16>
    %cst_69 = arith.constant dense<0.000000e+00> : vector<16x128xf32>
    %157 = tpu.matmul %155, %156, %cst_69 {dimension_numbers = #tpu.dot_dimension_numbers<[1], [0], [0], [1], [0, 0, 1, 1], [], []>} : vector<16x128xbf16>, vector<128x128xbf16>, vector<16x128xf32> -> vector<16x128xf32>
    %c0_70 = arith.constant 0 : index
    %c0_71 = arith.constant 0 : index
    %158 = vector.load %arg13[%c0_70, %c0_71] : memref<1x128xf32, #tpu.memory_space<vmem>>, vector<1x128xf32>
    %159 = vector.broadcast %158 : vector<1x128xf32> to vector<16x128xf32>
    %160 = arith.addf %157, %159 : vector<16x128xf32>
    %c0_72 = arith.constant 0 : index
    %c0_73 = arith.constant 0 : index
    %161 = vector.load %arg17[%c0_72, %c0_73] : memref<1x128xf32, #tpu.memory_space<vmem>>, vector<1x128xf32>
    %162 = arith.truncf %160 : vector<16x128xf32> to vector<16x128xbf16>
    %cst_74 = arith.constant 0.000000e+00 : f32
    %163 = vector.broadcast %cst_74 : f32 to vector<16x128xf32>
    %164 = vector.extract_strided_slice %162 {offsets = [0, 0], sizes = [16, 32], strides = [1, 1]} : vector<16x128xbf16> to vector<16x32xbf16>
    %c0_75 = arith.constant 0 : index
    %c0_76 = arith.constant 0 : index
    %165 = vector.load %arg26[%c0_75, %c0_76] : memref<16x256xbf16, #tpu.memory_space<vmem>>, vector<16x32xbf16>
    %c0_77 = arith.constant 0 : index
    %c128_78 = arith.constant 128 : index
    %166 = vector.load %arg26[%c0_77, %c128_78] : memref<16x256xbf16, #tpu.memory_space<vmem>>, vector<16x32xbf16>
    %cst_79 = arith.constant dense<0.000000e+00> : vector<16x16xf32>
    %167 = tpu.matmul %164, %165, %cst_79 {dimension_numbers = #tpu.dot_dimension_numbers<[1], [1], [0], [0], [0, 0, 1, 0], [], []>} : vector<16x32xbf16>, vector<16x32xbf16>, vector<16x16xf32> -> vector<16x16xf32>
    %cst_80 = arith.constant dense<0xFF800000> : vector<16xf32>
    %168 = vector.multi_reduction <maximumf>, %167, %cst_80 [1] : vector<16x16xf32> to vector<16xf32>
    %169 = vector.shape_cast %168 : vector<16xf32> to vector<16x1xf32>
    %170 = vector.broadcast %169 : vector<16x1xf32> to vector<16x16xf32>
    %171 = arith.subf %167, %170 : vector<16x16xf32>
    %172 = math.exp %171 : vector<16x16xf32>
    %cst_81 = arith.constant dense<0.000000e+00> : vector<16xf32>
    %173 = vector.multi_reduction <add>, %172, %cst_81 [1] : vector<16x16xf32> to vector<16xf32>
    %174 = vector.shape_cast %173 : vector<16xf32> to vector<16x1xf32>
    %175 = tpu.reciprocal %174 {approx = true} : vector<16x1xf32> -> vector<16x1xf32>
    %176 = vector.broadcast %175 : vector<16x1xf32> to vector<16x16xf32>
    %177 = arith.mulf %172, %176 : vector<16x16xf32>
    %178 = arith.truncf %177 : vector<16x16xf32> to vector<16x16xbf16>
    %cst_82 = arith.constant dense<0.000000e+00> : vector<16x32xf32>
    %179 = tpu.matmul %178, %166, %cst_82 {dimension_numbers = #tpu.dot_dimension_numbers<[1], [0], [0], [1], [0, 0, 1, 1], [], []>} : vector<16x16xbf16>, vector<16x32xbf16>, vector<16x32xf32> -> vector<16x32xf32>
    %180 = arith.truncf %179 : vector<16x32xf32> to vector<16x32xbf16>
    %c0_83 = arith.constant 0 : index
    %c0_84 = arith.constant 0 : index
    %181 = vector.load %arg16[%c0_83, %c0_84] : memref<128x128xbf16, #tpu.memory_space<vmem>>, vector<32x128xbf16>
    %cst_85 = arith.constant dense<0.000000e+00> : vector<16x128xf32>
    %182 = tpu.matmul %180, %181, %cst_85 {dimension_numbers = #tpu.dot_dimension_numbers<[1], [0], [0], [1], [0, 0, 1, 1], [], []>} : vector<16x32xbf16>, vector<32x128xbf16>, vector<16x128xf32> -> vector<16x128xf32>
    %183 = arith.addf %163, %182 : vector<16x128xf32>
    %184 = vector.extract_strided_slice %162 {offsets = [0, 32], sizes = [16, 32], strides = [1, 1]} : vector<16x128xbf16> to vector<16x32xbf16>
    %c0_86 = arith.constant 0 : index
    %c32_87 = arith.constant 32 : index
    %185 = vector.load %arg26[%c0_86, %c32_87] : memref<16x256xbf16, #tpu.memory_space<vmem>>, vector<16x32xbf16>
    %c0_88 = arith.constant 0 : index
    %c160_89 = arith.constant 160 : index
    %186 = vector.load %arg26[%c0_88, %c160_89] : memref<16x256xbf16, #tpu.memory_space<vmem>>, vector<16x32xbf16>
    %cst_90 = arith.constant dense<0.000000e+00> : vector<16x16xf32>
    %187 = tpu.matmul %184, %185, %cst_90 {dimension_numbers = #tpu.dot_dimension_numbers<[1], [1], [0], [0], [0, 0, 1, 0], [], []>} : vector<16x32xbf16>, vector<16x32xbf16>, vector<16x16xf32> -> vector<16x16xf32>
    %cst_91 = arith.constant dense<0xFF800000> : vector<16xf32>
    %188 = vector.multi_reduction <maximumf>, %187, %cst_91 [1] : vector<16x16xf32> to vector<16xf32>
    %189 = vector.shape_cast %188 : vector<16xf32> to vector<16x1xf32>
    %190 = vector.broadcast %189 : vector<16x1xf32> to vector<16x16xf32>
    %191 = arith.subf %187, %190 : vector<16x16xf32>
    %192 = math.exp %191 : vector<16x16xf32>
    %cst_92 = arith.constant dense<0.000000e+00> : vector<16xf32>
    %193 = vector.multi_reduction <add>, %192, %cst_92 [1] : vector<16x16xf32> to vector<16xf32>
    %194 = vector.shape_cast %193 : vector<16xf32> to vector<16x1xf32>
    %195 = tpu.reciprocal %194 {approx = true} : vector<16x1xf32> -> vector<16x1xf32>
    %196 = vector.broadcast %195 : vector<16x1xf32> to vector<16x16xf32>
    %197 = arith.mulf %192, %196 : vector<16x16xf32>
    %198 = arith.truncf %197 : vector<16x16xf32> to vector<16x16xbf16>
    %cst_93 = arith.constant dense<0.000000e+00> : vector<16x32xf32>
    %199 = tpu.matmul %198, %186, %cst_93 {dimension_numbers = #tpu.dot_dimension_numbers<[1], [0], [0], [1], [0, 0, 1, 1], [], []>} : vector<16x16xbf16>, vector<16x32xbf16>, vector<16x32xf32> -> vector<16x32xf32>
    %200 = arith.truncf %199 : vector<16x32xf32> to vector<16x32xbf16>
    %c32_94 = arith.constant 32 : index
    %c0_95 = arith.constant 0 : index
    %201 = vector.load %arg16[%c32_94, %c0_95] : memref<128x128xbf16, #tpu.memory_space<vmem>>, vector<32x128xbf16>
    %cst_96 = arith.constant dense<0.000000e+00> : vector<16x128xf32>
    %202 = tpu.matmul %200, %201, %cst_96 {dimension_numbers = #tpu.dot_dimension_numbers<[1], [0], [0], [1], [0, 0, 1, 1], [], []>} : vector<16x32xbf16>, vector<32x128xbf16>, vector<16x128xf32> -> vector<16x128xf32>
    %203 = arith.addf %183, %202 : vector<16x128xf32>
    %204 = vector.extract_strided_slice %162 {offsets = [0, 64], sizes = [16, 32], strides = [1, 1]} : vector<16x128xbf16> to vector<16x32xbf16>
    %c0_97 = arith.constant 0 : index
    %c64_98 = arith.constant 64 : index
    %205 = vector.load %arg26[%c0_97, %c64_98] : memref<16x256xbf16, #tpu.memory_space<vmem>>, vector<16x32xbf16>
    %c0_99 = arith.constant 0 : index
    %c192_100 = arith.constant 192 : index
    %206 = vector.load %arg26[%c0_99, %c192_100] : memref<16x256xbf16, #tpu.memory_space<vmem>>, vector<16x32xbf16>
    %cst_101 = arith.constant dense<0.000000e+00> : vector<16x16xf32>
    %207 = tpu.matmul %204, %205, %cst_101 {dimension_numbers = #tpu.dot_dimension_numbers<[1], [1], [0], [0], [0, 0, 1, 0], [], []>} : vector<16x32xbf16>, vector<16x32xbf16>, vector<16x16xf32> -> vector<16x16xf32>
    %cst_102 = arith.constant dense<0xFF800000> : vector<16xf32>
    %208 = vector.multi_reduction <maximumf>, %207, %cst_102 [1] : vector<16x16xf32> to vector<16xf32>
    %209 = vector.shape_cast %208 : vector<16xf32> to vector<16x1xf32>
    %210 = vector.broadcast %209 : vector<16x1xf32> to vector<16x16xf32>
    %211 = arith.subf %207, %210 : vector<16x16xf32>
    %212 = math.exp %211 : vector<16x16xf32>
    %cst_103 = arith.constant dense<0.000000e+00> : vector<16xf32>
    %213 = vector.multi_reduction <add>, %212, %cst_103 [1] : vector<16x16xf32> to vector<16xf32>
    %214 = vector.shape_cast %213 : vector<16xf32> to vector<16x1xf32>
    %215 = tpu.reciprocal %214 {approx = true} : vector<16x1xf32> -> vector<16x1xf32>
    %216 = vector.broadcast %215 : vector<16x1xf32> to vector<16x16xf32>
    %217 = arith.mulf %212, %216 : vector<16x16xf32>
    %218 = arith.truncf %217 : vector<16x16xf32> to vector<16x16xbf16>
    %cst_104 = arith.constant dense<0.000000e+00> : vector<16x32xf32>
    %219 = tpu.matmul %218, %206, %cst_104 {dimension_numbers = #tpu.dot_dimension_numbers<[1], [0], [0], [1], [0, 0, 1, 1], [], []>} : vector<16x16xbf16>, vector<16x32xbf16>, vector<16x32xf32> -> vector<16x32xf32>
    %220 = arith.truncf %219 : vector<16x32xf32> to vector<16x32xbf16>
    %c64_105 = arith.constant 64 : index
    %c0_106 = arith.constant 0 : index
    %221 = vector.load %arg16[%c64_105, %c0_106] : memref<128x128xbf16, #tpu.memory_space<vmem>>, vector<32x128xbf16>
    %cst_107 = arith.constant dense<0.000000e+00> : vector<16x128xf32>
    %222 = tpu.matmul %220, %221, %cst_107 {dimension_numbers = #tpu.dot_dimension_numbers<[1], [0], [0], [1], [0, 0, 1, 1], [], []>} : vector<16x32xbf16>, vector<32x128xbf16>, vector<16x128xf32> -> vector<16x128xf32>
    %223 = arith.addf %203, %222 : vector<16x128xf32>
    %224 = vector.extract_strided_slice %162 {offsets = [0, 96], sizes = [16, 32], strides = [1, 1]} : vector<16x128xbf16> to vector<16x32xbf16>
    %c0_108 = arith.constant 0 : index
    %c96_109 = arith.constant 96 : index
    %225 = vector.load %arg26[%c0_108, %c96_109] : memref<16x256xbf16, #tpu.memory_space<vmem>>, vector<16x32xbf16>
    %c0_110 = arith.constant 0 : index
    %c224_111 = arith.constant 224 : index
    %226 = vector.load %arg26[%c0_110, %c224_111] : memref<16x256xbf16, #tpu.memory_space<vmem>>, vector<16x32xbf16>
    %cst_112 = arith.constant dense<0.000000e+00> : vector<16x16xf32>
    %227 = tpu.matmul %224, %225, %cst_112 {dimension_numbers = #tpu.dot_dimension_numbers<[1], [1], [0], [0], [0, 0, 1, 0], [], []>} : vector<16x32xbf16>, vector<16x32xbf16>, vector<16x16xf32> -> vector<16x16xf32>
    %cst_113 = arith.constant dense<0xFF800000> : vector<16xf32>
    %228 = vector.multi_reduction <maximumf>, %227, %cst_113 [1] : vector<16x16xf32> to vector<16xf32>
    %229 = vector.shape_cast %228 : vector<16xf32> to vector<16x1xf32>
    %230 = vector.broadcast %229 : vector<16x1xf32> to vector<16x16xf32>
    %231 = arith.subf %227, %230 : vector<16x16xf32>
    %232 = math.exp %231 : vector<16x16xf32>
    %cst_114 = arith.constant dense<0.000000e+00> : vector<16xf32>
    %233 = vector.multi_reduction <add>, %232, %cst_114 [1] : vector<16x16xf32> to vector<16xf32>
    %234 = vector.shape_cast %233 : vector<16xf32> to vector<16x1xf32>
    %235 = tpu.reciprocal %234 {approx = true} : vector<16x1xf32> -> vector<16x1xf32>
    %236 = vector.broadcast %235 : vector<16x1xf32> to vector<16x16xf32>
    %237 = arith.mulf %232, %236 : vector<16x16xf32>
    %238 = arith.truncf %237 : vector<16x16xf32> to vector<16x16xbf16>
    %cst_115 = arith.constant dense<0.000000e+00> : vector<16x32xf32>
    %239 = tpu.matmul %238, %226, %cst_115 {dimension_numbers = #tpu.dot_dimension_numbers<[1], [0], [0], [1], [0, 0, 1, 1], [], []>} : vector<16x16xbf16>, vector<16x32xbf16>, vector<16x32xf32> -> vector<16x32xf32>
    %240 = arith.truncf %239 : vector<16x32xf32> to vector<16x32xbf16>
    %c96_116 = arith.constant 96 : index
    %c0_117 = arith.constant 0 : index
    %241 = vector.load %arg16[%c96_116, %c0_117] : memref<128x128xbf16, #tpu.memory_space<vmem>>, vector<32x128xbf16>
    %cst_118 = arith.constant dense<0.000000e+00> : vector<16x128xf32>
    %242 = tpu.matmul %240, %241, %cst_118 {dimension_numbers = #tpu.dot_dimension_numbers<[1], [0], [0], [1], [0, 0, 1, 1], [], []>} : vector<16x32xbf16>, vector<32x128xbf16>, vector<16x128xf32> -> vector<16x128xf32>
    %243 = arith.addf %223, %242 : vector<16x128xf32>
    %244 = vector.broadcast %161 : vector<1x128xf32> to vector<16x128xf32>
    %245 = arith.addf %243, %244 : vector<16x128xf32>
    %246 = arith.addf %245, %132 : vector<16x128xf32>
    %cst_119 = arith.constant dense<0.000000e+00> : vector<16xf32>
    %247 = vector.multi_reduction <add>, %246, %cst_119 [1] : vector<16x128xf32> to vector<16xf32>
    %248 = vector.shape_cast %247 : vector<16xf32> to vector<16x1xf32>
    %cst_120 = arith.constant 1.280000e+02 : f32
    %249 = vector.broadcast %cst_120 : f32 to vector<16x1xf32>
    %250 = arith.divf %248, %249 : vector<16x1xf32>
    %251 = vector.broadcast %250 : vector<16x1xf32> to vector<16x128xf32>
    %252 = arith.subf %246, %251 : vector<16x128xf32>
    %253 = arith.mulf %252, %252 : vector<16x128xf32>
    %cst_121 = arith.constant dense<0.000000e+00> : vector<16xf32>
    %254 = vector.multi_reduction <add>, %253, %cst_121 [1] : vector<16x128xf32> to vector<16xf32>
    %255 = vector.shape_cast %254 : vector<16xf32> to vector<16x1xf32>
    %cst_122 = arith.constant 1.280000e+02 : f32
    %256 = vector.broadcast %cst_122 : f32 to vector<16x1xf32>
    %257 = arith.divf %255, %256 : vector<16x1xf32>
    %258 = vector.broadcast %250 : vector<16x1xf32> to vector<16x128xf32>
    %259 = arith.subf %246, %258 : vector<16x128xf32>
    %cst_123 = arith.constant 9.99999974E-6 : f32
    %260 = vector.broadcast %cst_123 : f32 to vector<16x1xf32>
    %261 = arith.addf %257, %260 : vector<16x1xf32>
    %262 = math.rsqrt %261 : vector<16x1xf32>
    %263 = vector.broadcast %262 : vector<16x1xf32> to vector<16x128xf32>
    %264 = arith.mulf %259, %263 : vector<16x128xf32>
    %265 = vector.broadcast %0 : vector<1x128xf32> to vector<16x128xf32>
    %266 = arith.mulf %264, %265 : vector<16x128xf32>
    %267 = vector.broadcast %1 : vector<1x128xf32> to vector<16x128xf32>
    %268 = arith.addf %266, %267 : vector<16x128xf32>
    %269 = arith.truncf %268 : vector<16x128xf32> to vector<16x128xbf16>
    %c0_124 = arith.constant 0 : index
    %c0_125 = arith.constant 0 : index
    %270 = vector.load %arg20[%c0_124, %c0_125] : memref<128x256xbf16, #tpu.memory_space<vmem>>, vector<128x256xbf16>
    %cst_126 = arith.constant dense<0.000000e+00> : vector<16x256xf32>
    %271 = tpu.matmul %269, %270, %cst_126 {dimension_numbers = #tpu.dot_dimension_numbers<[1], [0], [0], [1], [0, 0, 1, 1], [], []>} : vector<16x128xbf16>, vector<128x256xbf16>, vector<16x256xf32> -> vector<16x256xf32>
    %c0_127 = arith.constant 0 : index
    %c0_128 = arith.constant 0 : index
    %272 = vector.load %arg21[%c0_127, %c0_128] : memref<1x256xf32, #tpu.memory_space<vmem>>, vector<1x256xf32>
    %273 = vector.broadcast %272 : vector<1x256xf32> to vector<16x256xf32>
    %274 = arith.addf %271, %273 : vector<16x256xf32>
    %cst_129 = arith.constant 0.000000e+00 : f32
    %275 = vector.broadcast %cst_129 : f32 to vector<16x256xf32>
    %276 = arith.maximumf %274, %275 : vector<16x256xf32>
    %277 = arith.truncf %276 : vector<16x256xf32> to vector<16x256xbf16>
    %c0_130 = arith.constant 0 : index
    %c0_131 = arith.constant 0 : index
    %278 = vector.load %arg22[%c0_130, %c0_131] : memref<256x128xbf16, #tpu.memory_space<vmem>>, vector<256x128xbf16>
    %cst_132 = arith.constant dense<0.000000e+00> : vector<16x128xf32>
    %279 = tpu.matmul %277, %278, %cst_132 {dimension_numbers = #tpu.dot_dimension_numbers<[1], [0], [0], [1], [0, 0, 1, 1], [], []>} : vector<16x256xbf16>, vector<256x128xbf16>, vector<16x128xf32> -> vector<16x128xf32>
    %c0_133 = arith.constant 0 : index
    %c0_134 = arith.constant 0 : index
    %280 = vector.load %arg23[%c0_133, %c0_134] : memref<1x128xf32, #tpu.memory_space<vmem>>, vector<1x128xf32>
    %281 = vector.broadcast %280 : vector<1x128xf32> to vector<16x128xf32>
    %282 = arith.addf %279, %281 : vector<16x128xf32>
    %283 = arith.addf %282, %246 : vector<16x128xf32>
    %c0_135 = arith.constant 0 : index
    %c0_136 = arith.constant 0 : index
    %c0_137 = arith.constant 0 : index
    %284 = vector.load %arg24[%c0_135, %c0_136, %c0_137] : memref<1x16x128xf32, #tpu.memory_space<vmem>>, vector<1x16x128xf32>
    %285 = vector.shape_cast %284 : vector<1x16x128xf32> to vector<16x128xf32>
    %286 = vector.shape_cast %283 : vector<16x128xf32> to vector<1x16x128xf32>
    tpu.vector_store %arg24[%c0_135, %c0_136, %c0_137], %286 {strides = array<i32>} : memref<1x16x128xf32, #tpu.memory_space<vmem>>, vector<1x16x128xf32>,
    return
  }
  func.func @transform_0(%arg0: i32, %arg1: i32) -> (i32, i32, i32) {
    %c0_i32 = arith.constant 0 : i32
    %c0_i32_0 = arith.constant 0 : i32
    return %arg0, %arg1, %c0_i32 : i32, i32, i32
  }
  func.func @transform_1(%arg0: i32, %arg1: i32) -> (i32, i32, i32) {
    %c0_i32 = arith.constant 0 : i32
    %c0_i32_0 = arith.constant 0 : i32
    %c0_i32_1 = arith.constant 0 : i32
    return %arg0, %c0_i32, %c0_i32_0 : i32, i32, i32
  }
  func.func @transform_2(%arg0: i32, %arg1: i32) -> (i32, i32, i32) {
    %c0_i32 = arith.constant 0 : i32
    %c0_i32_0 = arith.constant 0 : i32
    %c0_i32_1 = arith.constant 0 : i32
    return %arg0, %c0_i32, %c0_i32_0 : i32, i32, i32
  }
  func.func @transform_3(%arg0: i32, %arg1: i32) -> (i32, i32, i32) {
    %c0_i32 = arith.constant 0 : i32
    %c0_i32_0 = arith.constant 0 : i32
    return %arg0, %arg1, %c0_i32 : i32, i32, i32
  }
  func.func @transform_4(%arg0: i32, %arg1: i32) -> (i32, i32) {
    %c0_i32 = arith.constant 0 : i32
    %c0_i32_0 = arith.constant 0 : i32
    %c0_i32_1 = arith.constant 0 : i32
    return %c0_i32, %c0_i32_0 : i32, i32
  }
  func.func @transform_5(%arg0: i32, %arg1: i32) -> (i32, i32) {
    %c0_i32 = arith.constant 0 : i32
    %c0_i32_0 = arith.constant 0 : i32
    %c0_i32_1 = arith.constant 0 : i32
    return %c0_i32, %c0_i32_0 : i32, i32
  }
  func.func @transform_6(%arg0: i32, %arg1: i32) -> (i32, i32) {
    %c0_i32 = arith.constant 0 : i32
    %c0_i32_0 = arith.constant 0 : i32
    %c0_i32_1 = arith.constant 0 : i32
    return %c0_i32, %c0_i32_0 : i32, i32
  }
  func.func @transform_7(%arg0: i32, %arg1: i32) -> (i32, i32) {
    %c0_i32 = arith.constant 0 : i32
    %c0_i32_0 = arith.constant 0 : i32
    %c0_i32_1 = arith.constant 0 : i32
    return %c0_i32, %c0_i32_0 : i32, i32
  }
  func.func @transform_8(%arg0: i32, %arg1: i32) -> (i32, i32) {
    %c0_i32 = arith.constant 0 : i32
    %c0_i32_0 = arith.constant 0 : i32
    %c0_i32_1 = arith.constant 0 : i32
    return %c0_i32, %c0_i32_0 : i32, i32
  }
  func.func @transform_9(%arg0: i32, %arg1: i32) -> (i32, i32) {
    %c0_i32 = arith.constant 0 : i32
    %c0_i32_0 = arith.constant 0 : i32
    %c0_i32_1 = arith.constant 0 : i32
    return %c0_i32, %c0_i32_0 : i32, i32
  }
  func.func @transform_10(%arg0: i32, %arg1: i32) -> (i32, i32) {
    %c0_i32 = arith.constant 0 : i32
    %c0_i32_0 = arith.constant 0 : i32
    %c0_i32_1 = arith.constant 0 : i32
    return %c0_i32, %c0_i32_0 : i32, i32
  }
  func.func @transform_11(%arg0: i32, %arg1: i32) -> (i32, i32) {
    %c0_i32 = arith.constant 0 : i32
    %c0_i32_0 = arith.constant 0 : i32
    %c0_i32_1 = arith.constant 0 : i32
    return %c0_i32, %c0_i32_0 : i32, i32
  }
  func.func @transform_12(%arg0: i32, %arg1: i32) -> (i32, i32) {
    %c0_i32 = arith.constant 0 : i32
    %c0_i32_0 = arith.constant 0 : i32
    %c0_i32_1 = arith.constant 0 : i32
    return %c0_i32, %c0_i32_0 : i32, i32
  }
  func.func @transform_13(%arg0: i32, %arg1: i32) -> (i32, i32) {
    %c0_i32 = arith.constant 0 : i32
    %c0_i32_0 = arith.constant 0 : i32
    %c0_i32_1 = arith.constant 0 : i32
    return %c0_i32, %c0_i32_0 : i32, i32
  }
  func.func @transform_14(%arg0: i32, %arg1: i32) -> (i32, i32) {
    %c0_i32 = arith.constant 0 : i32
    %c0_i32_0 = arith.constant 0 : i32
    %c0_i32_1 = arith.constant 0 : i32
    return %c0_i32, %c0_i32_0 : i32, i32
  }
  func.func @transform_15(%arg0: i32, %arg1: i32) -> (i32, i32) {
    %c0_i32 = arith.constant 0 : i32
    %c0_i32_0 = arith.constant 0 : i32
    %c0_i32_1 = arith.constant 0 : i32
    return %c0_i32, %c0_i32_0 : i32, i32
  }
  func.func @transform_16(%arg0: i32, %arg1: i32) -> (i32, i32) {
    %c0_i32 = arith.constant 0 : i32
    %c0_i32_0 = arith.constant 0 : i32
    %c0_i32_1 = arith.constant 0 : i32
    return %c0_i32, %c0_i32_0 : i32, i32
  }
  func.func @transform_17(%arg0: i32, %arg1: i32) -> (i32, i32) {
    %c0_i32 = arith.constant 0 : i32
    %c0_i32_0 = arith.constant 0 : i32
    %c0_i32_1 = arith.constant 0 : i32
    return %c0_i32, %c0_i32_0 : i32, i32
  }
  func.func @transform_18(%arg0: i32, %arg1: i32) -> (i32, i32) {
    %c0_i32 = arith.constant 0 : i32
    %c0_i32_0 = arith.constant 0 : i32
    %c0_i32_1 = arith.constant 0 : i32
    return %c0_i32, %c0_i32_0 : i32, i32
  }
  func.func @transform_19(%arg0: i32, %arg1: i32) -> (i32, i32) {
    %c0_i32 = arith.constant 0 : i32
    %c0_i32_0 = arith.constant 0 : i32
    %c0_i32_1 = arith.constant 0 : i32
    return %c0_i32, %c0_i32_0 : i32, i32
  }
  func.func @transform_20(%arg0: i32, %arg1: i32) -> (i32, i32) {
    %c0_i32 = arith.constant 0 : i32
    %c0_i32_0 = arith.constant 0 : i32
    %c0_i32_1 = arith.constant 0 : i32
    return %c0_i32, %c0_i32_0 : i32, i32
  }
  func.func @transform_21(%arg0: i32, %arg1: i32) -> (i32, i32) {
    %c0_i32 = arith.constant 0 : i32
    %c0_i32_0 = arith.constant 0 : i32
    %c0_i32_1 = arith.constant 0 : i32
    return %c0_i32, %c0_i32_0 : i32, i32
  }
  func.func @transform_22(%arg0: i32, %arg1: i32) -> (i32, i32, i32) {
    %c0_i32 = arith.constant 0 : i32
    %c0_i32_0 = arith.constant 0 : i32
    return %arg0, %arg1, %c0_i32 : i32, i32, i32
  }
}

</mosaic_0001>

<llo_original>
// kernel: tpu_custom_call.1
$region0: #{tpu_custom_call.1}
  #allocation0 [shape = 'u32[]', space=smem, size = 0x4, offset = 0x4, fixed_abs, tag = 'smem constant byte address 0x4 - core index']
  #allocation1 [shape = 'u32[72,128]{1,0:T(1,128)}', space=vmem, size = 0x9000, scoped, tag = 'internal scratch']
  #allocation2 [shape = 'bf16[16,256]{1,0:T(8,128)(2,1)}', space=vmem, size = 0x2000, scoped, tag = 'scratch operand']
  #allocation3 [shape = 'bf16[16,256]{1,0:T(8,128)(2,1)}', space=vmem, size = 0x2000, scoped, tag = 'scratch operand']
  %s0 = inlined_call_operand.hbm [shape: f32[2,16,128], index: 0, kind: input, shape index: {}]
  %s1 = inlined_call_operand.hbm [shape: bf16[2,16,128], index: 1, kind: input, shape index: {}]
  %s2 = inlined_call_operand.hbm [shape: bf16[2,16,128], index: 2, kind: input, shape index: {}]
  %s3 = inlined_call_operand.hbm [shape: s8[2,16,16], index: 3, kind: input, shape index: {}]
  %s4 = inlined_call_operand.hbm [shape: bf16[128,128], index: 4, kind: input, shape index: {}]
  %s5 = inlined_call_operand.hbm [shape: f32[1,128], index: 5, kind: input, shape index: {}]
  %s6 = inlined_call_operand.hbm [shape: bf16[128,256], index: 6, kind: input, shape index: {}]
  %s7 = inlined_call_operand.vmem [shape: f32[1,256], index: 7, kind: input, shape index: {}]
  %s8 = inlined_call_operand.hbm [shape: bf16[128,128], index: 8, kind: input, shape index: {}]
  %s9 = inlined_call_operand.vmem [shape: f32[1,128], index: 9, kind: input, shape index: {}]
  %s10 = inlined_call_operand.hbm [shape: bf16[128,128], index: 10, kind: input, shape index: {}]
  %s11 = inlined_call_operand.vmem [shape: f32[1,128], index: 11, kind: input, shape index: {}]
  %s12 = inlined_call_operand.hbm [shape: bf16[128,256], index: 12, kind: input, shape index: {}]
  %s13 = inlined_call_operand.vmem [shape: f32[1,256], index: 13, kind: input, shape index: {}]
  %s14 = inlined_call_operand.hbm [shape: bf16[128,128], index: 14, kind: input, shape index: {}]
  %s15 = inlined_call_operand.vmem [shape: f32[1,128], index: 15, kind: input, shape index: {}]
  %s16 = inlined_call_operand.vmem [shape: f32[1,128], index: 16, kind: input, shape index: {}]
  %s17 = inlined_call_operand.vmem [shape: f32[1,128], index: 17, kind: input, shape index: {}]
  %s18 = inlined_call_operand.hbm [shape: bf16[128,256], index: 18, kind: input, shape index: {}]
  %s19 = inlined_call_operand.vmem [shape: f32[1,256], index: 19, kind: input, shape index: {}]
  %s20 = inlined_call_operand.hbm [shape: bf16[256,128], index: 20, kind: input, shape index: {}]
  %s21 = inlined_call_operand.vmem [shape: f32[1,128], index: 21, kind: input, shape index: {}]
  %s22 = inlined_call_operand.hbm [shape: f32[2,16,128], index: 22, kind: output, shape index: {}]
  %s23 = sld [smem:[#allocation0]]
  $region177: #{tpu_custom_call.1} parent=0
    _
  %s25 = ssub.s32 1, %s23
  %s26 = scalar_select 0, %s25, %s23
  $region1: #{tpu_custom_call.1} parent=0
    #allocation4 [shape = 'u8[16384]{0}', space=vmem, size = 0x4000, scoped, tag = 'input window, operand 0']
    #allocation5 [shape = 's32[2]{0}', space=sflag, size = 0x8, scoped, tag = 'scoped memory for tpu_custom_call.1']
    #allocation6 [shape = 's32[2]{0}', space=sflag, size = 0x8, scoped, tag = 'scoped memory for tpu_custom_call.1']
    #allocation7 [shape = 'u8[4096]{0}', space=vmem, size = 0x1000, scoped, tag = 'input window, operand 1, single buffered']
    #allocation8 [shape = 's32[1]{0}', space=sflag, size = 0x4, scoped, tag = 'scoped memory for tpu_custom_call.1']
    #allocation9 [shape = 'u8[4096]{0}', space=vmem, size = 0x1000, scoped, tag = 'input window, operand 2, single buffered']
    #allocation10 [shape = 'u8[4096]{0}', space=vmem, size = 0x1000, scoped, tag = 'input window, operand 3']
    #allocation11 [shape = 's32[2]{0}', space=sflag, size = 0x8, scoped, tag = 'scoped memory for tpu_custom_call.1']
    #allocation12 [shape = 'u8[32768]{0}', space=vmem, size = 0x8000, scoped, tag = 'input window, operand 4, single buffered']
    #allocation13 [shape = 'u8[512]{0}', space=vmem, size = 0x400, scoped, tag = 'input window, operand 5, single buffered']
    #allocation14 [shape = 's32[1]{0}', space=sflag, size = 0x4, scoped, tag = 'scoped memory for tpu_custom_call.1']
    #allocation15 [shape = 'u8[65536]{0}', space=vmem, size = 0x10000, scoped, tag = 'input window, operand 6, single buffered']
    #allocation16 [shape = 'u8[32768]{0}', space=vmem, size = 0x8000, scoped, tag = 'input window, operand 8, single buffered']
    #allocation17 [shape = 's32[1]{0}', space=sflag, size = 0x4, scoped, tag = 'scoped memory for tpu_custom_call.1']
    #allocation18 [shape = 'u8[32768]{0}', space=vmem, size = 0x8000, scoped, tag = 'input window, operand 10, single buffered']
    #allocation19 [shape = 'u8[65536]{0}', space=vmem, size = 0x10000, scoped, tag = 'input window, operand 12, single buffered']
    #allocation20 [shape = 's32[1]{0}', space=sflag, size = 0x4, scoped, tag = 'scoped memory for tpu_custom_call.1']
    #allocation21 [shape = 'u8[32768]{0}', space=vmem, size = 0x8000, scoped, tag = 'input window, operand 14, single buffered']
    #allocation22 [shape = 'u8[65536]{0}', space=vmem, size = 0x10000, scoped, tag = 'input window, operand 18, single buffered']
    #allocation23 [shape = 's32[1]{0}', space=sflag, size = 0x4, scoped, tag = 'scoped memory for tpu_custom_call.1']
    #allocation24 [shape = 'u8[65536]{0}', space=vmem, size = 0x10000, scoped, tag = 'input window, operand 20, single buffered']
    #allocation25 [shape = 'u8[16384]{0}', space=vmem, size = 0x4000, scoped, tag = 'output window, operand 0']
    %27 = vsyncpa [#allocation5], 0
    %s28 = scalar_lea.sflag [#allocation5], 1
    %29 = vsyncpa %s28, 0
    %30 = vsyncpa [#allocation8], 0
    %31 = vsyncpa [#allocation11], 0
    %s32 = scalar_lea.sflag [#allocation11], 1
    %33 = vsyncpa %s32, 0
    %34 = vsyncpa [#allocation14], 0
    %35 = vsyncpa [#allocation17], 0
    %36 = vsyncpa [#allocation20], 0
    %37 = vsyncpa [#allocation23], 0
    %38 = vsyncpa [#allocation6], 0
    %s39 = scalar_lea.sflag [#allocation6], 1
    %40 = vsyncpa %s39, 0
    loop: start=0, step=1, limit=4
    $region2: #{tpu_custom_call.1} parent=1 // loop_pre_header
      _
    $region3: #{tpu_custom_call.1} parent=1 // loop_header
      %s42 = sphi 0, %s46
      %p43 = scmp.ge.s32.totalorder %s42, 4
      %s49 = sphi 0, %s61
      %s50 = sphi 0, %s57
      %s51 = sphi 0, %s49
      %s52 = sphi 0, %s50
      %s53 = sphi 0, %s51
      %s54 = sphi 0, %s52
      %s66 = sphi 0, %s68
      %s69 = sphi 0, %s66
      %s70 = sphi 0, %s69
      %s86 = sphi 0, %s70
      %s92 = sphi 0, %s94
      %s95 = sphi 0, %s92
      %s96 = sphi 0, %s95
      %s112 = sphi 0, %s96
      %s118 = sphi 0, %s120
      %s121 = sphi 0, %s118
      %s122 = sphi 0, %s121
      %s138 = sphi 0, %s122
      %s146 = sphi 0, %s148
      %s149 = sphi 0, %s146
      %s150 = sphi 0, %s149
      %s166 = sphi 0, %s150
      %s170 = sphi 0, %s170
      %s172 = sphi 0, %s170
      %s173 = sphi 0, %s172
      %s187 = sphi 0, %s173
      %s191 = sphi 0, %s191
      %s193 = sphi 0, %s191
      %s194 = sphi 0, %s193
      %s208 = sphi 0, %s194
      %s212 = sphi 0, %s212
      %s214 = sphi 0, %s212
      %s215 = sphi 0, %s214
      %s229 = sphi 0, %s215
      %s233 = sphi 0, %s233
      %s235 = sphi 0, %s233
      %s236 = sphi 0, %s235
      %s250 = sphi 0, %s236
      %s254 = sphi 0, %s254
      %s256 = sphi 0, %s254
      %s257 = sphi 0, %s256
      %s271 = sphi 0, %s257
      %s275 = sphi 0, %s275
      %s277 = sphi 0, %s275
      %s278 = sphi 0, %s277
      %s292 = sphi 0, %s278
      %s296 = sphi 0, %s296
      %s298 = sphi 0, %s296
      %s299 = sphi 0, %s298
      %s313 = sphi 0, %s299
      %s317 = sphi 0, %s317
      %s319 = sphi 0, %s317
      %s320 = sphi 0, %s319
      %s334 = sphi 0, %s320
      %s338 = sphi 0, %s338
      %s340 = sphi 0, %s338
      %s341 = sphi 0, %s340
      %s355 = sphi 0, %s341
      %s359 = sphi 0, %s359
      %s361 = sphi 0, %s359
      %s362 = sphi 0, %s361
      %s376 = sphi 0, %s362
      %s380 = sphi 0, %s380
      %s382 = sphi 0, %s380
      %s383 = sphi 0, %s382
      %s397 = sphi 0, %s383
      %s401 = sphi 0, %s401
      %s403 = sphi 0, %s401
      %s404 = sphi 0, %s403
      %s418 = sphi 0, %s404
      %s422 = sphi 0, %s422
      %s424 = sphi 0, %s422
      %s425 = sphi 0, %s424
      %s439 = sphi 0, %s425
      %s443 = sphi 0, %s443
      %s445 = sphi 0, %s443
      %s446 = sphi 0, %s445
      %s460 = sphi 0, %s446
      %s464 = sphi 0, %s464
      %s466 = sphi 0, %s464
      %s467 = sphi 0, %s466
      %s481 = sphi 0, %s467
      %s485 = sphi 0, %s485
      %s487 = sphi 0, %s485
      %s488 = sphi 0, %s487
      %s502 = sphi 0, %s488
      %s506 = sphi 0, %s506
      %s508 = sphi 0, %s506
      %s509 = sphi 0, %s508
      %s523 = sphi 0, %s509
      %s527 = sphi 0, %s527
      %s529 = sphi 0, %s527
      %s530 = sphi 0, %s529
      %s544 = sphi 0, %s530
      %s552 = sphi 0, %s554
      %s555 = sphi 0, %s552
      %s556 = sphi 0, %s555
      %s572 = sphi 0, %s556
    $region4: #{tpu_custom_call.1} parent=1 // loop_header_branch
      %45 = sbr.rel (%p43) target = $region8
    $region5: #{tpu_custom_call.1} parent=1 // loop_body
      %s47 = ssub.s32 %s42, 1
      %s48 = ssub.s32 %s42, 2
      %s55 = sadd.s32 1, %s50
      %p56 = scmp.ge.s32.totalorder %s55, 1
      %s57 = scalar_select %p56, 0, %s55
      %s58 = sadd.s32 1, %s49
      %s59 = scalar_select %p56, %s58, %s49
      %p60 = scmp.ge.s32.totalorder %s59, 2
      %s61 = scalar_select %p60, 0, %s59
      %s62 = ssub.s32 %s49, %s61
      %s63 = ssub.s32 %s50, %s57
      %s64 = sor.u32 %s62, %s63
      %p65 = scmp.eq.s32.totalorder %s64, 0
      %s67 = sadd.s32 %s66, 1
      %s68 = scalar_select %p65, %s66, %s67
      %p71 = pneg %p65
      %p72 = scmp.eq.s32.totalorder %s42, 1
      %p73 = por %p71, %p72
      %p74 = scmp.ne.s32.totalorder %s66, %s69
      %p75 = scmp.eq.s32.totalorder %s42, 0
      %p76 = por %p74, %p75
      %p77 = scmp.ne.s32.totalorder %s66, %s69
      %p78 = scmp.eq.s32.totalorder %s47, 1
      %p79 = por %p77, %p78
      %p80 = scmp.ne.s32.totalorder %s69, %s70
      %p81 = scmp.eq.s32.totalorder %s47, 0
      %p82 = por %p80, %p81
      %p83 = scmp.ne.s32.totalorder %s69, %s70
      %p84 = scmp.eq.s32.totalorder %s48, 1
      %p85 = por %p83, %p84
      %p87 = scmp.ne.s32.totalorder %s70, %s86
      %p88 = scmp.eq.s32.totalorder %s48, 0
      %p89 = por %p87, %p88
      %s90 = ssub.s32 %s49, %s61
      %p91 = scmp.eq.s32.totalorder %s90, 0
      %s93 = sadd.s32 %s92, 1
      %s94 = scalar_select %p91, %s92, %s93
      %p97 = pneg %p91
      %p98 = scmp.eq.s32.totalorder %s42, 1
      %p99 = por %p97, %p98
      %p100 = scmp.ne.s32.totalorder %s92, %s95
      %p101 = scmp.eq.s32.totalorder %s42, 0
      %p102 = por %p100, %p101
      %p103 = scmp.ne.s32.totalorder %s92, %s95
      %p104 = scmp.eq.s32.totalorder %s47, 1
      %p105 = por %p103, %p104
      %p106 = scmp.ne.s32.totalorder %s95, %s96
      %p107 = scmp.eq.s32.totalorder %s47, 0
      %p108 = por %p106, %p107
      %p109 = scmp.ne.s32.totalorder %s95, %s96
      %p110 = scmp.eq.s32.totalorder %s48, 1
      %p111 = por %p109, %p110
      %p113 = scmp.ne.s32.totalorder %s96, %s112
      %p114 = scmp.eq.s32.totalorder %s48, 0
      %p115 = por %p113, %p114
      %s116 = ssub.s32 %s49, %s61
      %p117 = scmp.eq.s32.totalorder %s116, 0
      %s119 = sadd.s32 %s118, 1
      %s120 = scalar_select %p117, %s118, %s119
      %p123 = pneg %p117
      %p124 = scmp.eq.s32.totalorder %s42, 1
      %p125 = por %p123, %p124
      %p126 = scmp.ne.s32.totalorder %s118, %s121
      %p127 = scmp.eq.s32.totalorder %s42, 0
      %p128 = por %p126, %p127
      %p129 = scmp.ne.s32.totalorder %s118, %s121
      %p130 = scmp.eq.s32.totalorder %s47, 1
      %p131 = por %p129, %p130
      %p132 = scmp.ne.s32.totalorder %s121, %s122
      %p133 = scmp.eq.s32.totalorder %s47, 0
      %p134 = por %p132, %p133
      %p135 = scmp.ne.s32.totalorder %s121, %s122
      %p136 = scmp.eq.s32.totalorder %s48, 1
      %p137 = por %p135, %p136
      %p139 = scmp.ne.s32.totalorder %s122, %s138
      %p140 = scmp.eq.s32.totalorder %s48, 0
      %p141 = por %p139, %p140
      %s142 = ssub.s32 %s49, %s61
      %s143 = ssub.s32 %s50, %s57
      %s144 = sor.u32 %s142, %s143
      %p145 = scmp.eq.s32.totalorder %s144, 0
      %s147 = sadd.s32 %s146, 1
      %s148 = scalar_select %p145, %s146, %s147
      %p151 = pneg %p145
      %p152 = scmp.eq.s32.totalorder %s42, 1
      %p153 = por %p151, %p152
      %p154 = scmp.ne.s32.totalorder %s146, %s149
      %p155 = scmp.eq.s32.totalorder %s42, 0
      %p156 = por %p154, %p155
      %p157 = scmp.ne.s32.totalorder %s146, %s149
      %p158 = scmp.eq.s32.totalorder %s47, 1
      %p159 = por %p157, %p158
      %p160 = scmp.ne.s32.totalorder %s149, %s150
      %p161 = scmp.eq.s32.totalorder %s47, 0
      %p162 = por %p160, %p161
      %p163 = scmp.ne.s32.totalorder %s149, %s150
      %p164 = scmp.eq.s32.totalorder %s48, 1
      %p165 = por %p163, %p164
      %p167 = scmp.ne.s32.totalorder %s150, %s166
      %p168 = scmp.eq.s32.totalorder %s48, 0
      %p169 = por %p167, %p168
      %s171 = sadd.s32 %s170, 1
      %p174 = scmp.eq.s32.totalorder %s42, 1
      %p175 = scmp.ne.s32.totalorder %s170, %s172
      %p176 = scmp.eq.s32.totalorder %s42, 0
      %p177 = por %p175, %p176
      %p178 = scmp.ne.s32.totalorder %s170, %s172
      %p179 = scmp.eq.s32.totalorder %s47, 1
      %p180 = por %p178, %p179
      %p181 = scmp.ne.s32.totalorder %s172, %s173
      %p182 = scmp.eq.s32.totalorder %s47, 0
      %p183 = por %p181, %p182
      %p184 = scmp.ne.s32.totalorder %s172, %s173
      %p185 = scmp.eq.s32.totalorder %s48, 1
      %p186 = por %p184, %p185
      %p188 = scmp.ne.s32.totalorder %s173, %s187
      %p189 = scmp.eq.s32.totalorder %s48, 0
      %p190 = por %p188, %p189
      %s192 = sadd.s32 %s191, 1
      %p195 = scmp.eq.s32.totalorder %s42, 1
      %p196 = scmp.ne.s32.totalorder %s191, %s193
      %p197 = scmp.eq.s32.totalorder %s42, 0
      %p198 = por %p196, %p197
      %p199 = scmp.ne.s32.totalorder %s191, %s193
      %p200 = scmp.eq.s32.totalorder %s47, 1
      %p201 = por %p199, %p200
      %p202 = scmp.ne.s32.totalorder %s193, %s194
      %p203 = scmp.eq.s32.totalorder %s47, 0
      %p204 = por %p202, %p203
      %p205 = scmp.ne.s32.totalorder %s193, %s194
      %p206 = scmp.eq.s32.totalorder %s48, 1
      %p207 = por %p205, %p206
      %p209 = scmp.ne.s32.totalorder %s194, %s208
      %p210 = scmp.eq.s32.totalorder %s48, 0
      %p211 = por %p209, %p210
      %s213 = sadd.s32 %s212, 1
      %p216 = scmp.eq.s32.totalorder %s42, 1
      %p217 = scmp.ne.s32.totalorder %s212, %s214
      %p218 = scmp.eq.s32.totalorder %s42, 0
      %p219 = por %p217, %p218
      %p220 = scmp.ne.s32.totalorder %s212, %s214
      %p221 = scmp.eq.s32.totalorder %s47, 1
      %p222 = por %p220, %p221
      %p223 = scmp.ne.s32.totalorder %s214, %s215
      %p224 = scmp.eq.s32.totalorder %s47, 0
      %p225 = por %p223, %p224
      %p226 = scmp.ne.s32.totalorder %s214, %s215
      %p227 = scmp.eq.s32.totalorder %s48, 1
      %p228 = por %p226, %p227
      %p230 = scmp.ne.s32.totalorder %s215, %s229
      %p231 = scmp.eq.s32.totalorder %s48, 0
      %p232 = por %p230, %p231
      %s234 = sadd.s32 %s233, 1
      %p237 = scmp.eq.s32.totalorder %s42, 1
      %p238 = scmp.ne.s32.totalorder %s233, %s235
      %p239 = scmp.eq.s32.totalorder %s42, 0
      %p240 = por %p238, %p239
      %p241 = scmp.ne.s32.totalorder %s233, %s235
      %p242 = scmp.eq.s32.totalorder %s47, 1
      %p243 = por %p241, %p242
      %p244 = scmp.ne.s32.totalorder %s235, %s236
      %p245 = scmp.eq.s32.totalorder %s47, 0
      %p246 = por %p244, %p245
      %p247 = scmp.ne.s32.totalorder %s235, %s236
      %p248 = scmp.eq.s32.totalorder %s48, 1
      %p249 = por %p247, %p248
      %p251 = scmp.ne.s32.totalorder %s236, %s250
      %p252 = scmp.eq.s32.totalorder %s48, 0
      %p253 = por %p251, %p252
      %s255 = sadd.s32 %s254, 1
      %p258 = scmp.eq.s32.totalorder %s42, 1
      %p259 = scmp.ne.s32.totalorder %s254, %s256
      %p260 = scmp.eq.s32.totalorder %s42, 0
      %p261 = por %p259, %p260
      %p262 = scmp.ne.s32.totalorder %s254, %s256
      %p263 = scmp.eq.s32.totalorder %s47, 1
      %p264 = por %p262, %p263
      %p265 = scmp.ne.s32.totalorder %s256, %s257
      %p266 = scmp.eq.s32.totalorder %s47, 0
      %p267 = por %p265, %p266
      %p268 = scmp.ne.s32.totalorder %s256, %s257
      %p269 = scmp.eq.s32.totalorder %s48, 1
      %p270 = por %p268, %p269
      %p272 = scmp.ne.s32.totalorder %s257, %s271
      %p273 = scmp.eq.s32.totalorder %s48, 0
      %p274 = por %p272, %p273
      %s276 = sadd.s32 %s275, 1
      %p279 = scmp.eq.s32.totalorder %s42, 1
      %p280 = scmp.ne.s32.totalorder %s275, %s277
      %p281 = scmp.eq.s32.totalorder %s42, 0
      %p282 = por %p280, %p281
      %p283 = scmp.ne.s32.totalorder %s275, %s277
      %p284 = scmp.eq.s32.totalorder %s47, 1
      %p285 = por %p283, %p284
      %p286 = scmp.ne.s32.totalorder %s277, %s278
      %p287 = scmp.eq.s32.totalorder %s47, 0
      %p288 = por %p286, %p287
      %p289 = scmp.ne.s32.totalorder %s277, %s278
      %p290 = scmp.eq.s32.totalorder %s48, 1
      %p291 = por %p289, %p290
      %p293 = scmp.ne.s32.totalorder %s278, %s292
      %p294 = scmp.eq.s32.totalorder %s48, 0
      %p295 = por %p293, %p294
      %s297 = sadd.s32 %s296, 1
      %p300 = scmp.eq.s32.totalorder %s42, 1
      %p301 = scmp.ne.s32.totalorder %s296, %s298
      %p302 = scmp.eq.s32.totalorder %s42, 0
      %p303 = por %p301, %p302
      %p304 = scmp.ne.s32.totalorder %s296, %s298
      %p305 = scmp.eq.s32.totalorder %s47, 1
      %p306 = por %p304, %p305
      %p307 = scmp.ne.s32.totalorder %s298, %s299
      %p308 = scmp.eq.s32.totalorder %s47, 0
      %p309 = por %p307, %p308
      %p310 = scmp.ne.s32.totalorder %s298, %s299
      %p311 = scmp.eq.s32.totalorder %s48, 1
      %p312 = por %p310, %p311
      %p314 = scmp.ne.s32.totalorder %s299, %s313
      %p315 = scmp.eq.s32.totalorder %s48, 0
      %p316 = por %p314, %p315
      %s318 = sadd.s32 %s317, 1
      %p321 = scmp.eq.s32.totalorder %s42, 1
      %p322 = scmp.ne.s32.totalorder %s317, %s319
      %p323 = scmp.eq.s32.totalorder %s42, 0
      %p324 = por %p322, %p323
      %p325 = scmp.ne.s32.totalorder %s317, %s319
      %p326 = scmp.eq.s32.totalorder %s47, 1
      %p327 = por %p325, %p326
      %p328 = scmp.ne.s32.totalorder %s319, %s320
      %p329 = scmp.eq.s32.totalorder %s47, 0
      %p330 = por %p328, %p329
      %p331 = scmp.ne.s32.totalorder %s319, %s320
      %p332 = scmp.eq.s32.totalorder %s48, 1
      %p333 = por %p331, %p332
      %p335 = scmp.ne.s32.totalorder %s320, %s334
      %p336 = scmp.eq.s32.totalorder %s48, 0
      %p337 = por %p335, %p336
      %s339 = sadd.s32 %s338, 1
      %p342 = scmp.eq.s32.totalorder %s42, 1
      %p343 = scmp.ne.s32.totalorder %s338, %s340
      %p344 = scmp.eq.s32.totalorder %s42, 0
      %p345 = por %p343, %p344
      %p346 = scmp.ne.s32.totalorder %s338, %s340
      %p347 = scmp.eq.s32.totalorder %s47, 1
      %p348 = por %p346, %p347
      %p349 = scmp.ne.s32.totalorder %s340, %s341
      %p350 = scmp.eq.s32.totalorder %s47, 0
      %p351 = por %p349, %p350
      %p352 = scmp.ne.s32.totalorder %s340, %s341
      %p353 = scmp.eq.s32.totalorder %s48, 1
      %p354 = por %p352, %p353
      %p356 = scmp.ne.s32.totalorder %s341, %s355
      %p357 = scmp.eq.s32.totalorder %s48, 0
      %p358 = por %p356, %p357
      %s360 = sadd.s32 %s359, 1
      %p363 = scmp.eq.s32.totalorder %s42, 1
      %p364 = scmp.ne.s32.totalorder %s359, %s361
      %p365 = scmp.eq.s32.totalorder %s42, 0
      %p366 = por %p364, %p365
      %p367 = scmp.ne.s32.totalorder %s359, %s361
      %p368 = scmp.eq.s32.totalorder %s47, 1
      %p369 = por %p367, %p368
      %p370 = scmp.ne.s32.totalorder %s361, %s362
      %p371 = scmp.eq.s32.totalorder %s47, 0
      %p372 = por %p370, %p371
      %p373 = scmp.ne.s32.totalorder %s361, %s362
      %p374 = scmp.eq.s32.totalorder %s48, 1
      %p375 = por %p373, %p374
      %p377 = scmp.ne.s32.totalorder %s362, %s376
      %p378 = scmp.eq.s32.totalorder %s48, 0
      %p379 = por %p377, %p378
      %s381 = sadd.s32 %s380, 1
      %p384 = scmp.eq.s32.totalorder %s42, 1
      %p385 = scmp.ne.s32.totalorder %s380, %s382
      %p386 = scmp.eq.s32.totalorder %s42, 0
      %p387 = por %p385, %p386
      %p388 = scmp.ne.s32.totalorder %s380, %s382
      %p389 = scmp.eq.s32.totalorder %s47, 1
      %p390 = por %p388, %p389
      %p391 = scmp.ne.s32.totalorder %s382, %s383
      %p392 = scmp.eq.s32.totalorder %s47, 0
      %p393 = por %p391, %p392
      %p394 = scmp.ne.s32.totalorder %s382, %s383
      %p395 = scmp.eq.s32.totalorder %s48, 1
      %p396 = por %p394, %p395
      %p398 = scmp.ne.s32.totalorder %s383, %s397
      %p399 = scmp.eq.s32.totalorder %s48, 0
      %p400 = por %p398, %p399
      %s402 = sadd.s32 %s401, 1
      %p405 = scmp.eq.s32.totalorder %s42, 1
      %p406 = scmp.ne.s32.totalorder %s401, %s403
      %p407 = scmp.eq.s32.totalorder %s42, 0
      %p408 = por %p406, %p407
      %p409 = scmp.ne.s32.totalorder %s401, %s403
      %p410 = scmp.eq.s32.totalorder %s47, 1
      %p411 = por %p409, %p410
      %p412 = scmp.ne.s32.totalorder %s403, %s404
      %p413 = scmp.eq.s32.totalorder %s47, 0
      %p414 = por %p412, %p413
      %p415 = scmp.ne.s32.totalorder %s403, %s404
      %p416 = scmp.eq.s32.totalorder %s48, 1
      %p417 = por %p415, %p416
      %p419 = scmp.ne.s32.totalorder %s404, %s418
      %p420 = scmp.eq.s32.totalorder %s48, 0
      %p421 = por %p419, %p420
      %s423 = sadd.s32 %s422, 1
      %p426 = scmp.eq.s32.totalorder %s42, 1
      %p427 = scmp.ne.s32.totalorder %s422, %s424
      %p428 = scmp.eq.s32.totalorder %s42, 0
      %p429 = por %p427, %p428
      %p430 = scmp.ne.s32.totalorder %s422, %s424
      %p431 = scmp.eq.s32.totalorder %s47, 1
      %p432 = por %p430, %p431
      %p433 = scmp.ne.s32.totalorder %s424, %s425
      %p434 = scmp.eq.s32.totalorder %s47, 0
      %p435 = por %p433, %p434
      %p436 = scmp.ne.s32.totalorder %s424, %s425
      %p437 = scmp.eq.s32.totalorder %s48, 1
      %p438 = por %p436, %p437
      %p440 = scmp.ne.s32.totalorder %s425, %s439
      %p441 = scmp.eq.s32.totalorder %s48, 0
      %p442 = por %p440, %p441
      %s444 = sadd.s32 %s443, 1
      %p447 = scmp.eq.s32.totalorder %s42, 1
      %p448 = scmp.ne.s32.totalorder %s443, %s445
      %p449 = scmp.eq.s32.totalorder %s42, 0
      %p450 = por %p448, %p449
      %p451 = scmp.ne.s32.totalorder %s443, %s445
      %p452 = scmp.eq.s32.totalorder %s47, 1
      %p453 = por %p451, %p452
      %p454 = scmp.ne.s32.totalorder %s445, %s446
      %p455 = scmp.eq.s32.totalorder %s47, 0
      %p456 = por %p454, %p455
      %p457 = scmp.ne.s32.totalorder %s445, %s446
      %p458 = scmp.eq.s32.totalorder %s48, 1
      %p459 = por %p457, %p458
      %p461 = scmp.ne.s32.totalorder %s446, %s460
      %p462 = scmp.eq.s32.totalorder %s48, 0
      %p463 = por %p461, %p462
      %s465 = sadd.s32 %s464, 1
      %p468 = scmp.eq.s32.totalorder %s42, 1
      %p469 = scmp.ne.s32.totalorder %s464, %s466
      %p470 = scmp.eq.s32.totalorder %s42, 0
      %p471 = por %p469, %p470
      %p472 = scmp.ne.s32.totalorder %s464, %s466
      %p473 = scmp.eq.s32.totalorder %s47, 1
      %p474 = por %p472, %p473
      %p475 = scmp.ne.s32.totalorder %s466, %s467
      %p476 = scmp.eq.s32.totalorder %s47, 0
      %p477 = por %p475, %p476
      %p478 = scmp.ne.s32.totalorder %s466, %s467
      %p479 = scmp.eq.s32.totalorder %s48, 1
      %p480 = por %p478, %p479
      %p482 = scmp.ne.s32.totalorder %s467, %s481
      %p483 = scmp.eq.s32.totalorder %s48, 0
      %p484 = por %p482, %p483
      %s486 = sadd.s32 %s485, 1
      %p489 = scmp.eq.s32.totalorder %s42, 1
      %p490 = scmp.ne.s32.totalorder %s485, %s487
      %p491 = scmp.eq.s32.totalorder %s42, 0
      %p492 = por %p490, %p491
      %p493 = scmp.ne.s32.totalorder %s485, %s487
      %p494 = scmp.eq.s32.totalorder %s47, 1
      %p495 = por %p493, %p494
      %p496 = scmp.ne.s32.totalorder %s487, %s488
      %p497 = scmp.eq.s32.totalorder %s47, 0
      %p498 = por %p496, %p497
      %p499 = scmp.ne.s32.totalorder %s487, %s488
      %p500 = scmp.eq.s32.totalorder %s48, 1
      %p501 = por %p499, %p500
      %p503 = scmp.ne.s32.totalorder %s488, %s502
      %p504 = scmp.eq.s32.totalorder %s48, 0
      %p505 = por %p503, %p504
      %s507 = sadd.s32 %s506, 1
      %p510 = scmp.eq.s32.totalorder %s42, 1
      %p511 = scmp.ne.s32.totalorder %s506, %s508
      %p512 = scmp.eq.s32.totalorder %s42, 0
      %p513 = por %p511, %p512
      %p514 = scmp.ne.s32.totalorder %s506, %s508
      %p515 = scmp.eq.s32.totalorder %s47, 1
      %p516 = por %p514, %p515
      %p517 = scmp.ne.s32.totalorder %s508, %s509
      %p518 = scmp.eq.s32.totalorder %s47, 0
      %p519 = por %p517, %p518
      %p520 = scmp.ne.s32.totalorder %s508, %s509
      %p521 = scmp.eq.s32.totalorder %s48, 1
      %p522 = por %p520, %p521
      %p524 = scmp.ne.s32.totalorder %s509, %s523
      %p525 = scmp.eq.s32.totalorder %s48, 0
      %p526 = por %p524, %p525
      %s528 = sadd.s32 %s527, 1
      %p531 = scmp.eq.s32.totalorder %s42, 1
      %p532 = scmp.ne.s32.totalorder %s527, %s529
      %p533 = scmp.eq.s32.totalorder %s42, 0
      %p534 = por %p532, %p533
      %p535 = scmp.ne.s32.totalorder %s527, %s529
      %p536 = scmp.eq.s32.totalorder %s47, 1
      %p537 = por %p535, %p536
      %p538 = scmp.ne.s32.totalorder %s529, %s530
      %p539 = scmp.eq.s32.totalorder %s47, 0
      %p540 = por %p538, %p539
      %p541 = scmp.ne.s32.totalorder %s529, %s530
      %p542 = scmp.eq.s32.totalorder %s48, 1
      %p543 = por %p541, %p542
      %p545 = scmp.ne.s32.totalorder %s530, %s544
      %p546 = scmp.eq.s32.totalorder %s48, 0
      %p547 = por %p545, %p546
      %s548 = ssub.s32 %s49, %s61
      %s549 = ssub.s32 %s50, %s57
      %s550 = sor.u32 %s548, %s549
      %p551 = scmp.eq.s32.totalorder %s550, 0
      %s553 = sadd.s32 %s552, 1
      %s554 = scalar_select %p551, %s552, %s553
      %p557 = pneg %p551
      %p558 = scmp.eq.s32.totalorder %s42, 1
      %p559 = por %p557, %p558
      %p560 = scmp.ne.s32.totalorder %s552, %s555
      %p561 = scmp.eq.s32.totalorder %s42, 0
      %p562 = por %p560, %p561
      %p563 = scmp.ne.s32.totalorder %s552, %s555
      %p564 = scmp.eq.s32.totalorder %s47, 1
      %p565 = por %p563, %p564
      %p566 = scmp.ne.s32.totalorder %s555, %s556
      %p567 = scmp.eq.s32.totalorder %s47, 0
      %p568 = por %p566, %p567
      %p569 = scmp.ne.s32.totalorder %s555, %s556
      %p570 = scmp.eq.s32.totalorder %s48, 1
      %p571 = por %p569, %p570
      %p573 = scmp.ne.s32.totalorder %s556, %s572
      %p574 = scmp.eq.s32.totalorder %s48, 0
      %p575 = por %p573, %p574
      %p576 = scmp.le.s32.totalorder 1, %s42
      %p577 = scmp.lt.s32.totalorder %s42, 3
      %p578 = pnand %p576, %p577
      %p579 = pneg %p578
      // Predicated region
      $region9: #{tpu_custom_call.1} parent=5 // pred_check
        _
      $region10: #{tpu_custom_call.1} parent=5 // pred_check_branch
        %581 = sbr.rel (%p578) target = $region12
      $region11: #{tpu_custom_call.1} parent=5 // pred_region
        %s582 = ssub.s32 %s42, 1
        // Predicated region
        $region13: #{tpu_custom_call.1} parent=11 // pred_check
          %p583 = pneg %p108
        $region14: #{tpu_custom_call.1} parent=11 // pred_check_branch
          %585 = sbr.rel (%p583) target = $region16
        $region15: #{tpu_custom_call.1} parent=11 // pred_region
          %587 = vsyncadd [#allocation8], 0
          %s588 = smul.addr %s51, 2
          %s589 = smul.addr %s588, 4
          %s590 = scalar_lea.hbm %s1, %s589
          %s591 = sshll.u32 %s590, 4
          %s592 = int_to_ptr.hbm [resolvable:$true] %s591
          %s593 = sshll.u32 [#allocation7], 4
          %s594 = int_to_ptr.vmem [resolvable:$true] %s593
          %599 = dma.hbm_to_vmem [thread:$0]  %s592, 128, %s594, [#allocation8], 64, 64, 4
        $region16: #{tpu_custom_call.1} parent=11 // pred_fallthru
          _
        // Predicated region
        $region17: #{tpu_custom_call.1} parent=11 // pred_check
          %p600 = pneg %p134
        $region18: #{tpu_custom_call.1} parent=11 // pred_check_branch
          %602 = sbr.rel (%p600) target = $region20
        $region19: #{tpu_custom_call.1} parent=11 // pred_region
          %604 = vsyncadd [#allocation8], 0
          %s605 = smul.addr %s51, 2
          %s606 = smul.addr %s605, 4
          %s607 = scalar_lea.hbm %s2, %s606
          %s608 = sshll.u32 %s607, 4
          %s609 = int_to_ptr.hbm [resolvable:$true] %s608
          %s610 = sshll.u32 [#allocation9], 4
          %s611 = int_to_ptr.vmem [resolvable:$true] %s610
          %616 = dma.hbm_to_vmem [thread:$0]  %s609, 128, %s611, [#allocation8], 64, 64, 4
        $region20: #{tpu_custom_call.1} parent=11 // pred_fallthru
          _
        // Predicated region
        $region21: #{tpu_custom_call.1} parent=11 // pred_check
          %p617 = pneg %p183
        $region22: #{tpu_custom_call.1} parent=11 // pred_check_branch
          %619 = sbr.rel (%p617) target = $region24
        $region23: #{tpu_custom_call.1} parent=11 // pred_region
          %621 = vsyncadd [#allocation11], 0
          %s622 = sshll.u32 %s4, 4
          %s623 = int_to_ptr.hbm [resolvable:$true] %s622
          %s624 = sshll.u32 [#allocation12], 4
          %s625 = int_to_ptr.vmem [resolvable:$true] %s624
          %630 = dma.hbm_to_vmem [thread:$0]  %s623, 1024, %s625, [#allocation11], 64, 64, 4
        $region24: #{tpu_custom_call.1} parent=11 // pred_fallthru
          _
        // Predicated region
        $region25: #{tpu_custom_call.1} parent=11 // pred_check
          %p631 = pneg %p204
        $region26: #{tpu_custom_call.1} parent=11 // pred_check_branch
          %633 = sbr.rel (%p631) target = $region28
        $region27: #{tpu_custom_call.1} parent=11 // pred_region
          %635 = vsyncadd [#allocation14], 0
          %s637 = sshll.u32 %s5, 4
          %s638 = int_to_ptr.hbm [resolvable:$true] %s637
          %s639 = sshll.u32 [#allocation13], 4
          %s640 = int_to_ptr.vmem [resolvable:$true] %s639
          %642 = dma.hbm_to_vmem [thread:$0]  %s638, 16, %s640, [#allocation14]
        $region28: #{tpu_custom_call.1} parent=11 // pred_fallthru
          _
        // Predicated region
        $region29: #{tpu_custom_call.1} parent=11 // pred_check
          %p643 = pneg %p225
        $region30: #{tpu_custom_call.1} parent=11 // pred_check_branch
          %645 = sbr.rel (%p643) target = $region32
        $region31: #{tpu_custom_call.1} parent=11 // pred_region
          %647 = vsyncadd [#allocation14], 0
          %s648 = sshll.u32 %s6, 4
          %s649 = int_to_ptr.hbm [resolvable:$true] %s648
          %s650 = sshll.u32 [#allocation15], 4
          %s651 = int_to_ptr.vmem [resolvable:$true] %s650
          %656 = dma.hbm_to_vmem [thread:$0]  %s649, 2048, %s651, [#allocation14], 128, 128, 8
        $region32: #{tpu_custom_call.1} parent=11 // pred_fallthru
          _
        // Predicated region
        $region33: #{tpu_custom_call.1} parent=11 // pred_check
          %p657 = pneg %p246
        $region34: #{tpu_custom_call.1} parent=11 // pred_check_branch
          %659 = sbr.rel (%p657) target = $region36
        $region35: #{tpu_custom_call.1} parent=11 // pred_region
          _
        $region36: #{tpu_custom_call.1} parent=11 // pred_fallthru
          _
        // Predicated region
        $region37: #{tpu_custom_call.1} parent=11 // pred_check
          %p660 = pneg %p267
        $region38: #{tpu_custom_call.1} parent=11 // pred_check_branch
          %662 = sbr.rel (%p660) target = $region40
        $region39: #{tpu_custom_call.1} parent=11 // pred_region
          %664 = vsyncadd [#allocation17], 0
          %s665 = sshll.u32 %s8, 4
          %s666 = int_to_ptr.hbm [resolvable:$true] %s665
          %s667 = sshll.u32 [#allocation16], 4
          %s668 = int_to_ptr.vmem [resolvable:$true] %s667
          %673 = dma.hbm_to_vmem [thread:$0]  %s666, 1024, %s668, [#allocation17], 64, 64, 4
        $region40: #{tpu_custom_call.1} parent=11 // pred_fallthru
          _
        // Predicated region
        $region41: #{tpu_custom_call.1} parent=11 // pred_check
          %p674 = pneg %p288
        $region42: #{tpu_custom_call.1} parent=11 // pred_check_branch
          %676 = sbr.rel (%p674) target = $region44
        $region43: #{tpu_custom_call.1} parent=11 // pred_region
          _
        $region44: #{tpu_custom_call.1} parent=11 // pred_fallthru
          _
        // Predicated region
        $region45: #{tpu_custom_call.1} parent=11 // pred_check
          %p677 = pneg %p309
        $region46: #{tpu_custom_call.1} parent=11 // pred_check_branch
          %679 = sbr.rel (%p677) target = $region48
        $region47: #{tpu_custom_call.1} parent=11 // pred_region
          %681 = vsyncadd [#allocation17], 0
          %s682 = sshll.u32 %s10, 4
          %s683 = int_to_ptr.hbm [resolvable:$true] %s682
          %s684 = sshll.u32 [#allocation18], 4
          %s685 = int_to_ptr.vmem [resolvable:$true] %s684
          %690 = dma.hbm_to_vmem [thread:$0]  %s683, 1024, %s685, [#allocation17], 64, 64, 4
        $region48: #{tpu_custom_call.1} parent=11 // pred_fallthru
          _
        // Predicated region
        $region49: #{tpu_custom_call.1} parent=11 // pred_check
          %p691 = pneg %p330
        $region50: #{tpu_custom_call.1} parent=11 // pred_check_branch
          %693 = sbr.rel (%p691) target = $region52
        $region51: #{tpu_custom_call.1} parent=11 // pred_region
          _
        $region52: #{tpu_custom_call.1} parent=11 // pred_fallthru
          _
        // Predicated region
        $region53: #{tpu_custom_call.1} parent=11 // pred_check
          %p694 = pneg %p351
        $region54: #{tpu_custom_call.1} parent=11 // pred_check_branch
          %696 = sbr.rel (%p694) target = $region56
        $region55: #{tpu_custom_call.1} parent=11 // pred_region
          %698 = vsyncadd [#allocation20], 0
          %s699 = sshll.u32 %s12, 4
          %s700 = int_to_ptr.hbm [resolvable:$true] %s699
          %s701 = sshll.u32 [#allocation19], 4
          %s702 = int_to_ptr.vmem [resolvable:$true] %s701
          %707 = dma.hbm_to_vmem [thread:$0]  %s700, 2048, %s702, [#allocation20], 128, 128, 8
        $region56: #{tpu_custom_call.1} parent=11 // pred_fallthru
          _
        // Predicated region
        $region57: #{tpu_custom_call.1} parent=11 // pred_check
          %p708 = pneg %p372
        $region58: #{tpu_custom_call.1} parent=11 // pred_check_branch
          %710 = sbr.rel (%p708) target = $region60
        $region59: #{tpu_custom_call.1} parent=11 // pred_region
          _
        $region60: #{tpu_custom_call.1} parent=11 // pred_fallthru
          _
        // Predicated region
        $region61: #{tpu_custom_call.1} parent=11 // pred_check
          %p711 = pneg %p393
        $region62: #{tpu_custom_call.1} parent=11 // pred_check_branch
          %713 = sbr.rel (%p711) target = $region64
        $region63: #{tpu_custom_call.1} parent=11 // pred_region
          %715 = vsyncadd [#allocation20], 0
          %s716 = sshll.u32 %s14, 4
          %s717 = int_to_ptr.hbm [resolvable:$true] %s716
          %s718 = sshll.u32 [#allocation21], 4
          %s719 = int_to_ptr.vmem [resolvable:$true] %s718
          %724 = dma.hbm_to_vmem [thread:$0]  %s717, 1024, %s719, [#allocation20], 64, 64, 4
        $region64: #{tpu_custom_call.1} parent=11 // pred_fallthru
          _
        // Predicated region
        $region65: #{tpu_custom_call.1} parent=11 // pred_check
          %p725 = pneg %p414
        $region66: #{tpu_custom_call.1} parent=11 // pred_check_branch
          %727 = sbr.rel (%p725) target = $region68
        $region67: #{tpu_custom_call.1} parent=11 // pred_region
          _
        $region68: #{tpu_custom_call.1} parent=11 // pred_fallthru
          _
        // Predicated region
        $region69: #{tpu_custom_call.1} parent=11 // pred_check
          %p728 = pneg %p435
        $region70: #{tpu_custom_call.1} parent=11 // pred_check_branch
          %730 = sbr.rel (%p728) target = $region72
        $region71: #{tpu_custom_call.1} parent=11 // pred_region
          _
        $region72: #{tpu_custom_call.1} parent=11 // pred_fallthru
          _
        // Predicated region
        $region73: #{tpu_custom_call.1} parent=11 // pred_check
          %p731 = pneg %p456
        $region74: #{tpu_custom_call.1} parent=11 // pred_check_branch
          %733 = sbr.rel (%p731) target = $region76
        $region75: #{tpu_custom_call.1} parent=11 // pred_region
          _
        $region76: #{tpu_custom_call.1} parent=11 // pred_fallthru
          _
        // Predicated region
        $region77: #{tpu_custom_call.1} parent=11 // pred_check
          %p734 = pneg %p477
        $region78: #{tpu_custom_call.1} parent=11 // pred_check_branch
          %736 = sbr.rel (%p734) target = $region80
        $region79: #{tpu_custom_call.1} parent=11 // pred_region
          %738 = vsyncadd [#allocation23], 0
          %s739 = sshll.u32 %s18, 4
          %s740 = int_to_ptr.hbm [resolvable:$true] %s739
          %s741 = sshll.u32 [#allocation22], 4
          %s742 = int_to_ptr.vmem [resolvable:$true] %s741
          %747 = dma.hbm_to_vmem [thread:$0]  %s740, 2048, %s742, [#allocation23], 128, 128, 8
        $region80: #{tpu_custom_call.1} parent=11 // pred_fallthru
          _
        // Predicated region
        $region81: #{tpu_custom_call.1} parent=11 // pred_check
          %p748 = pneg %p498
        $region82: #{tpu_custom_call.1} parent=11 // pred_check_branch
          %750 = sbr.rel (%p748) target = $region84
        $region83: #{tpu_custom_call.1} parent=11 // pred_region
          _
        $region84: #{tpu_custom_call.1} parent=11 // pred_fallthru
          _
        // Predicated region
        $region85: #{tpu_custom_call.1} parent=11 // pred_check
          %p751 = pneg %p519
        $region86: #{tpu_custom_call.1} parent=11 // pred_check_branch
          %753 = sbr.rel (%p751) target = $region88
        $region87: #{tpu_custom_call.1} parent=11 // pred_region
          %755 = vsyncadd [#allocation23], 0
          %s756 = sshll.u32 %s20, 4
          %s757 = int_to_ptr.hbm [resolvable:$true] %s756
          %s758 = sshll.u32 [#allocation24], 4
          %s759 = int_to_ptr.vmem [resolvable:$true] %s758
          %764 = dma.hbm_to_vmem [thread:$0]  %s757, 2048, %s759, [#allocation23], 64, 64, 4
        $region88: #{tpu_custom_call.1} parent=11 // pred_fallthru
          _
        // Predicated region
        $region89: #{tpu_custom_call.1} parent=11 // pred_check
          %p765 = pneg %p540
        $region90: #{tpu_custom_call.1} parent=11 // pred_check_branch
          %767 = sbr.rel (%p765) target = $region92
        $region91: #{tpu_custom_call.1} parent=11 // pred_region
          _
        $region92: #{tpu_custom_call.1} parent=11 // pred_fallthru
          _
      $region12: #{tpu_custom_call.1} parent=5 // pred_fallthru
        _
      %p768 = scmp.lt.s32.totalorder %s42, 2
      // Predicated region
      $region93: #{tpu_custom_call.1} parent=5 // pred_check
        %p769 = pneg %p768
      $region94: #{tpu_custom_call.1} parent=5 // pred_check_branch
        %771 = sbr.rel (%p769) target = $region96
      $region95: #{tpu_custom_call.1} parent=5 // pred_region
        // Predicated region
        $region97: #{tpu_custom_call.1} parent=95 // pred_check
          %p772 = pneg %p76
        $region98: #{tpu_custom_call.1} parent=95 // pred_check_branch
          %774 = sbr.rel (%p772) target = $region100
        $region99: #{tpu_custom_call.1} parent=95 // pred_region
          %s775 = sand.u32 %s66, 1
          %s776 = scalar_lea.sflag [#allocation5], %s775
          %s777 = sand.u32 %s66, 1
          %s778 = smul.addr %s777, 16
          %s779 = scalar_lea.vmem [#allocation4], %s778
          %s780 = smul.u32 2, %s50
          %782 = vsyncadd %s776, 0
          %s783 = smul.addr %s49, 2
          %s784 = sadd.s32 %s780, %s783
          %s785 = smul.addr %s784, 8
          %s786 = scalar_lea.hbm %s0, %s785
          %s787 = sshll.u32 %s786, 4
          %s788 = int_to_ptr.hbm [resolvable:$true] %s787
          %s789 = sshll.u32 %s779, 4
          %s790 = int_to_ptr.vmem [resolvable:$true] %s789
          %795 = dma.hbm_to_vmem [thread:$0]  %s788, 256, %s790, %s776, 128, 128, 8
        $region100: #{tpu_custom_call.1} parent=95 // pred_fallthru
          _
        // Predicated region
        $region101: #{tpu_custom_call.1} parent=95 // pred_check
          %p796 = pneg %p156
        $region102: #{tpu_custom_call.1} parent=95 // pred_check_branch
          %798 = sbr.rel (%p796) target = $region104
        $region103: #{tpu_custom_call.1} parent=95 // pred_region
          %s799 = sand.u32 %s42, 1
          %s800 = scalar_lea.sflag [#allocation11], %s799
          %s801 = sand.u32 %s146, 1
          %s802 = smul.addr %s801, 4
          %s803 = scalar_lea.vmem [#allocation10], %s802
          %s804 = smul.u32 2, %s50
          %806 = vsyncadd %s800, 0
          %s807 = smul.addr %s49, 2
          %s808 = sadd.s32 %s804, %s807
          %s809 = smul.addr %s808, 2
          %s810 = scalar_lea.hbm %s3, %s809
          %s811 = sshll.u32 %s810, 4
          %s812 = int_to_ptr.hbm [resolvable:$true] %s811
          %s813 = sshll.u32 %s803, 4
          %s814 = int_to_ptr.vmem [resolvable:$true] %s813
          %819 = dma.hbm_to_vmem [thread:$0]  %s812, 64, %s814, %s800, 32, 32, 2
        $region104: #{tpu_custom_call.1} parent=95 // pred_fallthru
          _
      $region96: #{tpu_custom_call.1} parent=5 // pred_fallthru
        _
      %p820 = scmp.le.s32.totalorder 1, %s42
      %p821 = scmp.lt.s32.totalorder %s42, 3
      %p822 = pnand %p820, %p821
      %p823 = pneg %p822
      // Predicated region
      $region105: #{tpu_custom_call.1} parent=5 // pred_check
        _
      $region106: #{tpu_custom_call.1} parent=5 // pred_check_branch
        %825 = sbr.rel (%p822) target = $region108
      $region107: #{tpu_custom_call.1} parent=5 // pred_region
        %s826 = ssub.s32 %s42, 1
        %s827 = sand.u32 %s69, 1
        %s828 = scalar_lea.sflag [#allocation5], %s827
        %s829 = sand.u32 %s69, 1
        %s830 = smul.addr %s829, 16
        %s831 = scalar_lea.vmem [#allocation4], %s830
        // Predicated region
        $region109: #{tpu_custom_call.1} parent=107 // pred_check
          %p832 = pneg %p82
        $region110: #{tpu_custom_call.1} parent=107 // pred_check_branch
          %834 = sbr.rel (%p832) target = $region112
        $region111: #{tpu_custom_call.1} parent=107 // pred_region
          %836 = dma.done %s828, 256
        $region112: #{tpu_custom_call.1} parent=107 // pred_fallthru
          _
        // Predicated region
        $region113: #{tpu_custom_call.1} parent=107 // pred_check
          %p837 = pneg %p108
        $region114: #{tpu_custom_call.1} parent=107 // pred_check_branch
          %839 = sbr.rel (%p837) target = $region116
        $region115: #{tpu_custom_call.1} parent=107 // pred_region
          %841 = dma.done [#allocation8], 128
        $region116: #{tpu_custom_call.1} parent=107 // pred_fallthru
          _
        // Predicated region
        $region117: #{tpu_custom_call.1} parent=107 // pred_check
          %p842 = pneg %p134
        $region118: #{tpu_custom_call.1} parent=107 // pred_check_branch
          %844 = sbr.rel (%p842) target = $region120
        $region119: #{tpu_custom_call.1} parent=107 // pred_region
          %846 = dma.done [#allocation8], 128
        $region120: #{tpu_custom_call.1} parent=107 // pred_fallthru
          _
        %s847 = sand.u32 %s47, 1
        %s848 = scalar_lea.sflag [#allocation11], %s847
        %s849 = sand.u32 %s149, 1
        %s850 = smul.addr %s849, 4
        %s851 = scalar_lea.vmem [#allocation10], %s850
        // Predicated region
        $region121: #{tpu_custom_call.1} parent=107 // pred_check
          %p852 = pneg %p162
        $region122: #{tpu_custom_call.1} parent=107 // pred_check_branch
          %854 = sbr.rel (%p852) target = $region124
        $region123: #{tpu_custom_call.1} parent=107 // pred_region
          %856 = dma.done %s848, 64
        $region124: #{tpu_custom_call.1} parent=107 // pred_fallthru
          _
        // Predicated region
        $region125: #{tpu_custom_call.1} parent=107 // pred_check
          %p857 = pneg %p183
        $region126: #{tpu_custom_call.1} parent=107 // pred_check_branch
          %859 = sbr.rel (%p857) target = $region128
        $region127: #{tpu_custom_call.1} parent=107 // pred_region
          %861 = dma.done [#allocation11], 1024
        $region128: #{tpu_custom_call.1} parent=107 // pred_fallthru
          _
        // Predicated region
        $region129: #{tpu_custom_call.1} parent=107 // pred_check
          %p862 = pneg %p204
        $region130: #{tpu_custom_call.1} parent=107 // pred_check_branch
          %864 = sbr.rel (%p862) target = $region132
        $region131: #{tpu_custom_call.1} parent=107 // pred_region
          %866 = dma.done [#allocation14], 16
        $region132: #{tpu_custom_call.1} parent=107 // pred_fallthru
          _
        // Predicated region
        $region133: #{tpu_custom_call.1} parent=107 // pred_check
          %p867 = pneg %p225
        $region134: #{tpu_custom_call.1} parent=107 // pred_check_branch
          %869 = sbr.rel (%p867) target = $region136
        $region135: #{tpu_custom_call.1} parent=107 // pred_region
          %871 = dma.done [#allocation14], 2048
        $region136: #{tpu_custom_call.1} parent=107 // pred_fallthru
          _
        // Predicated region
        $region137: #{tpu_custom_call.1} parent=107 // pred_check
          %p872 = pneg %p267
        $region138: #{tpu_custom_call.1} parent=107 // pred_check_branch
          %874 = sbr.rel (%p872) target = $region140
        $region139: #{tpu_custom_call.1} parent=107 // pred_region
          %876 = dma.done [#allocation17], 1024
        $region140: #{tpu_custom_call.1} parent=107 // pred_fallthru
          _
        // Predicated region
        $region141: #{tpu_custom_call.1} parent=107 // pred_check
          %p877 = pneg %p309
        $region142: #{tpu_custom_call.1} parent=107 // pred_check_branch
          %879 = sbr.rel (%p877) target = $region144
        $region143: #{tpu_custom_call.1} parent=107 // pred_region
          %881 = dma.done [#allocation17], 1024
        $region144: #{tpu_custom_call.1} parent=107 // pred_fallthru
          _
        // Predicated region
        $region145: #{tpu_custom_call.1} parent=107 // pred_check
          %p882 = pneg %p351
        $region146: #{tpu_custom_call.1} parent=107 // pred_check_branch
          %884 = sbr.rel (%p882) target = $region148
        $region147: #{tpu_custom_call.1} parent=107 // pred_region
          %886 = dma.done [#allocation20], 2048
        $region148: #{tpu_custom_call.1} parent=107 // pred_fallthru
          _
        // Predicated region
        $region149: #{tpu_custom_call.1} parent=107 // pred_check
          %p887 = pneg %p393
        $region150: #{tpu_custom_call.1} parent=107 // pred_check_branch
          %889 = sbr.rel (%p887) target = $region152
        $region151: #{tpu_custom_call.1} parent=107 // pred_region
          %891 = dma.done [#allocation20], 1024
        $region152: #{tpu_custom_call.1} parent=107 // pred_fallthru
          _
        // Predicated region
        $region153: #{tpu_custom_call.1} parent=107 // pred_check
          %p892 = pneg %p477
        $region154: #{tpu_custom_call.1} parent=107 // pred_check_branch
          %894 = sbr.rel (%p892) target = $region156
        $region155: #{tpu_custom_call.1} parent=107 // pred_region
          %896 = dma.done [#allocation23], 2048
        $region156: #{tpu_custom_call.1} parent=107 // pred_fallthru
          _
        // Predicated region
        $region157: #{tpu_custom_call.1} parent=107 // pred_check
          %p897 = pneg %p519
        $region158: #{tpu_custom_call.1} parent=107 // pred_check_branch
          %899 = sbr.rel (%p897) target = $region160
        $region159: #{tpu_custom_call.1} parent=107 // pred_region
          %901 = dma.done [#allocation23], 2048
        $region160: #{tpu_custom_call.1} parent=107 // pred_fallthru
          _
        %s902 = sand.u32 %s69, 1
        %s903 = scalar_lea.sflag [#allocation5], %s902
        %s904 = sand.u32 %s69, 1
        %s905 = smul.addr %s904, 16
        %s906 = scalar_lea.vmem [#allocation4], %s905
        %p907 = pneg %p82
        %p908 = pneg %p79
        %p909 = pneg %p108
        %p910 = pneg %p105
        %p911 = pneg %p134
        %p912 = pneg %p131
        %s913 = sand.u32 %s47, 1
        %s914 = scalar_lea.sflag [#allocation11], %s913
        %s915 = sand.u32 %s149, 1
        %s916 = smul.addr %s915, 4
        %s917 = scalar_lea.vmem [#allocation10], %s916
        %p918 = pneg %p162
        %p919 = pneg %p159
        %p920 = pneg %p183
        %p921 = pneg %p180
        %p922 = pneg %p204
        %p923 = pneg %p201
        %p924 = pneg %p225
        %p925 = pneg %p222
        %p926 = pneg %p246
        %p927 = pneg %p243
        %p928 = pneg %p267
        %p929 = pneg %p264
        %p930 = pneg %p288
        %p931 = pneg %p285
        %p932 = pneg %p309
        %p933 = pneg %p306
        %p934 = pneg %p330
        %p935 = pneg %p327
        %p936 = pneg %p351
        %p937 = pneg %p348
        %p938 = pneg %p372
        %p939 = pneg %p369
        %p940 = pneg %p393
        %p941 = pneg %p390
        %p942 = pneg %p414
        %p943 = pneg %p411
        %p944 = pneg %p435
        %p945 = pneg %p432
        %p946 = pneg %p456
        %p947 = pneg %p453
        %p948 = pneg %p477
        %p949 = pneg %p474
        %p950 = pneg %p498
        %p951 = pneg %p495
        %p952 = pneg %p519
        %p953 = pneg %p516
        %p954 = pneg %p540
        %p955 = pneg %p537
        %p956 = pneg %p568
        %p957 = pneg %p565
        %s958 = sand.u32 %s555, 1
        %s959 = scalar_lea.sflag [#allocation6], %s958
        %s960 = sand.u32 %s555, 1
        %s961 = smul.addr %s960, 16
        %s962 = scalar_lea.vmem [#allocation25], %s961
        %s963 = smul.u32 2, %s52
        %s964 = smul.u32 2, %s52
        %s965 = smul.u32 2, %s52
        %v967 = vld [vmem:[%s16] sm:$0x1]
        %v968 = vld [vmem:[%s17] sm:$0x1]
        %p969 = scmp.eq.s32.totalorder %s52, 0
        // Predicated region
        $region161: #{tpu_custom_call.1} parent=107 // pred_check
          %p970 = pneg %p969
        $region162: #{tpu_custom_call.1} parent=107 // pred_check_branch
          %972 = sbr.rel (%p970) target = $region164
        $region163: #{tpu_custom_call.1} parent=107 // pred_region
          %v973 = vld [vmem:[#allocation7] sm:$0xf]
          %v974 = vld [vmem:[#allocation7 + $0x4] sm:$0xf]
          %v975 = vunpack.c.l.bf16 %v973
          %v976 = vunpack.c.l.bf16 %v974
          %977 = vadd.xlane.f32.xlu0 %v975
          %v978 = vpop.xlane.xlu0 %977
          %979 = vadd.xlane.f32.xlu0 %v976
          %v980 = vpop.xlane.xlu0 %979
          %v981 = vrcp.pop 128.0
          %v982 = vmul.f32 128.0, %v981
          %v983 = vsub.f32 1.0, %v982
          %v984 = vmul.f32 %v981, %v983
          %v985 = vadd.f32 %v981, %v984
          %vm986 = vweird.f32 %v981
          %v987 = vsel %vm986, %v981, %v985
          %v988 = vmul.f32 %v978, %v987
          %v989 = vmul.f32 %v980, %v987
          %v990 = vsub.f32 %v975, %v988
          %v991 = vsub.f32 %v976, %v989
          %v992 = vmul.f32 %v990, %v990
          %v993 = vmul.f32 %v991, %v991
          %994 = vadd.xlane.f32.xlu0 %v992
          %v995 = vpop.xlane.xlu0 %994
          %996 = vadd.xlane.f32.xlu0 %v993
          %v997 = vpop.xlane.xlu0 %996
          %v998 = vmul.f32 %v995, %v987
          %v999 = vmul.f32 %v997, %v987
          %v1000 = vadd.f32 %v998, 1e-05
          %v1001 = vadd.f32 %v999, 1e-05
          %v1002 = vrsqrt.pop %v1000
          %v1003 = vmul.f32 %v1002, %v1000
          %v1004 = vmul.f32 %v1003, %v1002
          %v1005 = vmul.f32 0.5, %v1004
          %v1006 = vsub.f32 1.5, %v1005
          %v1007 = vmul.f32 %v1002, %v1006
          %vm1008 = vweird.f32 %v1000
          %vm1009 = vweird.f32 %v1002
          %vm1010 = vmor %vm1008, %vm1009
          %v1011 = vsel %vm1010, %v1002, %v1007
          %v1012 = vrsqrt.pop %v1001
          %v1013 = vmul.f32 %v1012, %v1001
          %v1014 = vmul.f32 %v1013, %v1012
          %v1015 = vmul.f32 0.5, %v1014
          %v1016 = vsub.f32 1.5, %v1015
          %v1017 = vmul.f32 %v1012, %v1016
          %vm1018 = vweird.f32 %v1001
          %vm1019 = vweird.f32 %v1012
          %vm1020 = vmor %vm1018, %vm1019
          %v1021 = vsel %vm1020, %v1012, %v1017
          %v1022 = vmul.f32 %v990, %v1011
          %v1023 = vmul.f32 %v991, %v1021
          %v1025 = vperm.slane %v967, 0
          %v1027 = vmul.f32 %v1022, %v1025
          %v1028 = vmul.f32 %v1023, %v1025
          %v1030 = vperm.slane %v968, 0
          %v1032 = vadd.f32 %v1027, %v1030
          %v1033 = vadd.f32 %v1028, %v1030
          %v1034 = vpack.c.bf16 %v1033, %v1032
          %v1035 = vld [vmem:[#allocation15] sm:$0xff]
          %v1036 = vld [vmem:[#allocation15 + $0x8] sm:$0xff]
          %v1037 = vld [vmem:[#allocation15 + $0x10] sm:$0xff]
          %v1038 = vld [vmem:[#allocation15 + $0x18] sm:$0xff]
          %v1039 = vld [vmem:[#allocation15 + $0x20] sm:$0xff]
          %v1040 = vld [vmem:[#allocation15 + $0x28] sm:$0xff]
          %v1041 = vld [vmem:[#allocation15 + $0x30] sm:$0xff]
          %v1042 = vld [vmem:[#allocation15 + $0x38] sm:$0xff]
          %v1043 = vld [vmem:[#allocation15 + $0x40] sm:$0xff]
          %v1044 = vld [vmem:[#allocation15 + $0x48] sm:$0xff]
          %v1045 = vld [vmem:[#allocation15 + $0x50] sm:$0xff]
          %v1046 = vld [vmem:[#allocation15 + $0x58] sm:$0xff]
          %v1047 = vld [vmem:[#allocation15 + $0x60] sm:$0xff]
          %v1048 = vld [vmem:[#allocation15 + $0x68] sm:$0xff]
          %v1049 = vld [vmem:[#allocation15 + $0x70] sm:$0xff]
          %v1050 = vld [vmem:[#allocation15 + $0x78] sm:$0xff]
          %v1051 = vld [vmem:[%s7] sm:$0x3]
          %v1053 = vperm.slane %v1051, 0
          %v1054 = vperm.slane %v1051, 1
          %v1073 = vunpack.c.l.b16 %v1035
          %v1074 = vunpack.c.h.b16 %v1035
          %v1075 = vunpack.c.l.b16 %v1036
          %v1076 = vunpack.c.h.b16 %v1036
          %v1077 = vunpack.c.l.b16 %v1037
          %v1078 = vunpack.c.h.b16 %v1037
          %v1079 = vunpack.c.l.b16 %v1038
          %v1080 = vunpack.c.h.b16 %v1038
          %v1081 = vunpack.c.l.b16 %v1039
          %v1082 = vunpack.c.h.b16 %v1039
          %v1083 = vunpack.c.l.b16 %v1040
          %v1084 = vunpack.c.h.b16 %v1040
          %v1085 = vunpack.c.l.b16 %v1041
          %v1086 = vunpack.c.h.b16 %v1041
          %v1087 = vunpack.c.l.b16 %v1042
          %v1088 = vunpack.c.h.b16 %v1042
          %v1089 = vunpack.c.l.b16 %v1043
          %v1090 = vunpack.c.h.b16 %v1043
          %v1091 = vunpack.c.l.b16 %v1044
          %v1092 = vunpack.c.h.b16 %v1044
          %v1093 = vunpack.c.l.b16 %v1045
          %v1094 = vunpack.c.h.b16 %v1045
          %v1095 = vunpack.c.l.b16 %v1046
          %v1096 = vunpack.c.h.b16 %v1046
          %v1097 = vunpack.c.l.b16 %v1047
          %v1098 = vunpack.c.h.b16 %v1047
          %v1099 = vunpack.c.l.b16 %v1048
          %v1100 = vunpack.c.h.b16 %v1048
          %v1101 = vunpack.c.l.b16 %v1049
          %v1102 = vunpack.c.h.b16 %v1049
          %v1103 = vunpack.c.l.b16 %v1050
          %v1104 = vunpack.c.h.b16 %v1050
          %v1105 = vpack.c.b16 %v1075, %v1073
          %v1106 = vpack.c.b16 %v1076, %v1074
          %v1107 = vpack.c.b16 %v1079, %v1077
          %v1108 = vpack.c.b16 %v1080, %v1078
          %v1109 = vpack.c.b16 %v1083, %v1081
          %v1110 = vpack.c.b16 %v1084, %v1082
          %v1111 = vpack.c.b16 %v1087, %v1085
          %v1112 = vpack.c.b16 %v1088, %v1086
          %v1113 = vpack.c.b16 %v1091, %v1089
          %v1114 = vpack.c.b16 %v1092, %v1090
          %v1115 = vpack.c.b16 %v1095, %v1093
          %v1116 = vpack.c.b16 %v1096, %v1094
          %v1117 = vpack.c.b16 %v1099, %v1097
          %v1118 = vpack.c.b16 %v1100, %v1098
          %v1119 = vpack.c.b16 %v1103, %v1101
          %v1120 = vpack.c.b16 %v1104, %v1102
          %1137 = vmatpush.bf16.msra.mxu0 %v1119
          %1138 = vmatpush.bf16.msra.mxu0 %v1117
          %1139 = vmatpush.bf16.msra.mxu0 %v1115
          %1140 = vmatpush.bf16.msra.mxu0 %v1113
          %1141 = vmatpush.bf16.msra.mxu0 %v1111
          %1142 = vmatpush.bf16.msra.mxu0 %v1109
          %1143 = vmatpush.bf16.msra.mxu0 %v1107
          %1144 = vmatpush.bf16.msra.mxu0 %v1105
          %1145 = vmatmul.bf16.gmra.mxu0 %v1034
          %v1146 = vpop.f32.mrf.mxu0
          %v1147 = vadd.f32 %v1053, %v1146
          %v1148 = vpop.f32.mrf.mxu0
          %v1149 = vadd.f32 %v1053, %v1148
          %1150 = vdwg.mxu0
          %1151 = vmatpush.bf16.msra.mxu0 %v1120
          %1152 = vmatpush.bf16.msra.mxu0 %v1118
          %1153 = vmatpush.bf16.msra.mxu0 %v1116
          %1154 = vmatpush.bf16.msra.mxu0 %v1114
          %1155 = vmatpush.bf16.msra.mxu0 %v1112
          %1156 = vmatpush.bf16.msra.mxu0 %v1110
          %1157 = vmatpush.bf16.msra.mxu0 %v1108
          %1158 = vmatpush.bf16.msra.mxu0 %v1106
          %1159 = vmatmul.bf16.gmra.mxu0 %v1034
          %v1160 = vpop.f32.mrf.mxu0
          %v1161 = vadd.f32 %v1054, %v1160
          %v1162 = vpop.f32.mrf.mxu0
          %v1163 = vadd.f32 %v1054, %v1162
          %1164 = vdwg.mxu0
          %v1165 = vpack.c.bf16 %v1161, %v1147
          %v1166 = vpack.c.bf16 %v1163, %v1149
          %1167 = vst [vmem:[#allocation2] sm:$0xff] %v1165
          %1168 = vst [vmem:[#allocation2 + $0x8] sm:$0xff] %v1166
          %v1169 = vld [vmem:[#allocation9] sm:$0xf]
          %v1170 = vld [vmem:[#allocation9 + $0x4] sm:$0xf]
          %v1171 = vld [vmem:[#allocation19] sm:$0xff]
          %v1172 = vld [vmem:[#allocation19 + $0x8] sm:$0xff]
          %v1173 = vld [vmem:[#allocation19 + $0x10] sm:$0xff]
          %v1174 = vld [vmem:[#allocation19 + $0x18] sm:$0xff]
          %v1175 = vld [vmem:[#allocation19 + $0x20] sm:$0xff]
          %v1176 = vld [vmem:[#allocation19 + $0x28] sm:$0xff]
          %v1177 = vld [vmem:[#allocation19 + $0x30] sm:$0xff]
          %v1178 = vld [vmem:[#allocation19 + $0x38] sm:$0xff]
          %v1179 = vld [vmem:[#allocation19 + $0x40] sm:$0xff]
          %v1180 = vld [vmem:[#allocation19 + $0x48] sm:$0xff]
          %v1181 = vld [vmem:[#allocation19 + $0x50] sm:$0xff]
          %v1182 = vld [vmem:[#allocation19 + $0x58] sm:$0xff]
          %v1183 = vld [vmem:[#allocation19 + $0x60] sm:$0xff]
          %v1184 = vld [vmem:[#allocation19 + $0x68] sm:$0xff]
          %v1185 = vld [vmem:[#allocation19 + $0x70] sm:$0xff]
          %v1186 = vld [vmem:[#allocation19 + $0x78] sm:$0xff]
          %v1187 = vld [vmem:[%s13] sm:$0x3]
          %v1189 = vperm.slane %v1187, 0
          %v1190 = vperm.slane %v1187, 1
          %v1195 = vunpack.c.l.b16 %v1169
          %v1196 = vunpack.c.l.b16 %v1170
          %v1197 = vpack.c.b16 %v1196, %v1195
          %v1215 = vunpack.c.l.b16 %v1171
          %v1216 = vunpack.c.h.b16 %v1171
          %v1217 = vunpack.c.l.b16 %v1172
          %v1218 = vunpack.c.h.b16 %v1172
          %v1219 = vunpack.c.l.b16 %v1173
          %v1220 = vunpack.c.h.b16 %v1173
          %v1221 = vunpack.c.l.b16 %v1174
          %v1222 = vunpack.c.h.b16 %v1174
          %v1223 = vunpack.c.l.b16 %v1175
          %v1224 = vunpack.c.h.b16 %v1175
          %v1225 = vunpack.c.l.b16 %v1176
          %v1226 = vunpack.c.h.b16 %v1176
          %v1227 = vunpack.c.l.b16 %v1177
          %v1228 = vunpack.c.h.b16 %v1177
          %v1229 = vunpack.c.l.b16 %v1178
          %v1230 = vunpack.c.h.b16 %v1178
          %v1231 = vunpack.c.l.b16 %v1179
          %v1232 = vunpack.c.h.b16 %v1179
          %v1233 = vunpack.c.l.b16 %v1180
          %v1234 = vunpack.c.h.b16 %v1180
          %v1235 = vunpack.c.l.b16 %v1181
          %v1236 = vunpack.c.h.b16 %v1181
          %v1237 = vunpack.c.l.b16 %v1182
          %v1238 = vunpack.c.h.b16 %v1182
          %v1239 = vunpack.c.l.b16 %v1183
          %v1240 = vunpack.c.h.b16 %v1183
          %v1241 = vunpack.c.l.b16 %v1184
          %v1242 = vunpack.c.h.b16 %v1184
          %v1243 = vunpack.c.l.b16 %v1185
          %v1244 = vunpack.c.h.b16 %v1185
          %v1245 = vunpack.c.l.b16 %v1186
          %v1246 = vunpack.c.h.b16 %v1186
          %v1247 = vpack.c.b16 %v1217, %v1215
          %v1248 = vpack.c.b16 %v1218, %v1216
          %v1249 = vpack.c.b16 %v1221, %v1219
          %v1250 = vpack.c.b16 %v1222, %v1220
          %v1251 = vpack.c.b16 %v1225, %v1223
          %v1252 = vpack.c.b16 %v1226, %v1224
          %v1253 = vpack.c.b16 %v1229, %v1227
          %v1254 = vpack.c.b16 %v1230, %v1228
          %v1255 = vpack.c.b16 %v1233, %v1231
          %v1256 = vpack.c.b16 %v1234, %v1232
          %v1257 = vpack.c.b16 %v1237, %v1235
          %v1258 = vpack.c.b16 %v1238, %v1236
          %v1259 = vpack.c.b16 %v1241, %v1239
          %v1260 = vpack.c.b16 %v1242, %v1240
          %v1261 = vpack.c.b16 %v1245, %v1243
          %v1262 = vpack.c.b16 %v1246, %v1244
          %1279 = vmatpush.bf16.msra.mxu0 %v1261
          %1280 = vmatpush.bf16.msra.mxu0 %v1259
          %1281 = vmatpush.bf16.msra.mxu0 %v1257
          %1282 = vmatpush.bf16.msra.mxu0 %v1255
          %1283 = vmatpush.bf16.msra.mxu0 %v1253
          %1284 = vmatpush.bf16.msra.mxu0 %v1251
          %1285 = vmatpush.bf16.msra.mxu0 %v1249
          %1286 = vmatpush.bf16.msra.mxu0 %v1247
          %1287 = vmatmul.bf16.gmra.mxu0 %v1197
          %v1288 = vpop.f32.mrf.mxu0
          %v1289 = vadd.f32 %v1189, %v1288
          %v1290 = vpop.f32.mrf.mxu0
          %v1291 = vadd.f32 %v1189, %v1290
          %1292 = vdwg.mxu0
          %1293 = vmatpush.bf16.msra.mxu0 %v1262
          %1294 = vmatpush.bf16.msra.mxu0 %v1260
          %1295 = vmatpush.bf16.msra.mxu0 %v1258
          %1296 = vmatpush.bf16.msra.mxu0 %v1256
          %1297 = vmatpush.bf16.msra.mxu0 %v1254
          %1298 = vmatpush.bf16.msra.mxu0 %v1252
          %1299 = vmatpush.bf16.msra.mxu0 %v1250
          %1300 = vmatpush.bf16.msra.mxu0 %v1248
          %1301 = vmatmul.bf16.gmra.mxu0 %v1197
          %v1302 = vpop.f32.mrf.mxu0
          %v1303 = vadd.f32 %v1190, %v1302
          %v1304 = vpop.f32.mrf.mxu0
          %v1305 = vadd.f32 %v1190, %v1304
          %1306 = vdwg.mxu0
          %v1307 = vpack.c.bf16 %v1303, %v1289
          %v1308 = vpack.c.bf16 %v1305, %v1291
          %1309 = vst [vmem:[#allocation3] sm:$0xff] %v1307
          %1310 = vst [vmem:[#allocation3 + $0x8] sm:$0xff] %v1308
        $region164: #{tpu_custom_call.1} parent=107 // pred_fallthru
          _
        %v1311 = vld [vmem:[%s831] sm:$0xff]
        %v1312 = vld [vmem:[%s831 + $0x8] sm:$0xff]
        %v1313 = vld [vmem:[%s851] sm:$0x3]
        %v1314 = vld [vmem:[%s851 + $0x2] sm:$0x3]
        %v1315 = vunpack.c.0.s8 %v1313
        %v1316 = vunpack.c.0.s8 %v1314
        %vm1317 = vcmp.ne.s32.totalorder %v1315, 0
        %vm1318 = vcmp.ne.s32.totalorder %v1316, 0
        %v1319 = vsel %vm1317, 0.0, -1e+09
        %v1320 = vsel %vm1318, 0.0, -1e+09
        %1321 = vadd.xlane.f32.xlu0 %v1311
        %v1322 = vpop.xlane.xlu0 %1321
        %1323 = vadd.xlane.f32.xlu0 %v1312
        %v1324 = vpop.xlane.xlu0 %1323
        %v1325 = vrcp.pop 128.0
        %v1326 = vmul.f32 128.0, %v1325
        %v1327 = vsub.f32 1.0, %v1326
        %v1328 = vmul.f32 %v1325, %v1327
        %v1329 = vadd.f32 %v1325, %v1328
        %vm1330 = vweird.f32 %v1325
        %v1331 = vsel %vm1330, %v1325, %v1329
        %v1332 = vmul.f32 %v1322, %v1331
        %v1333 = vmul.f32 %v1324, %v1331
        %v1334 = vsub.f32 %v1311, %v1332
        %v1335 = vsub.f32 %v1312, %v1333
        %v1336 = vmul.f32 %v1334, %v1334
        %v1337 = vmul.f32 %v1335, %v1335
        %1338 = vadd.xlane.f32.xlu0 %v1336
        %v1339 = vpop.xlane.xlu0 %1338
        %1340 = vadd.xlane.f32.xlu0 %v1337
        %v1341 = vpop.xlane.xlu0 %1340
        %v1342 = vmul.f32 %v1339, %v1331
        %v1343 = vmul.f32 %v1341, %v1331
        %v1344 = vadd.f32 %v1342, 1e-05
        %v1345 = vadd.f32 %v1343, 1e-05
        %v1346 = vrsqrt.pop %v1344
        %v1347 = vmul.f32 %v1346, %v1344
        %v1348 = vmul.f32 %v1347, %v1346
        %v1349 = vmul.f32 0.5, %v1348
        %v1350 = vsub.f32 1.5, %v1349
        %v1351 = vmul.f32 %v1346, %v1350
        %vm1352 = vweird.f32 %v1344
        %vm1353 = vweird.f32 %v1346
        %vm1354 = vmor %vm1352, %vm1353
        %v1355 = vsel %vm1354, %v1346, %v1351
        %v1356 = vrsqrt.pop %v1345
        %v1357 = vmul.f32 %v1356, %v1345
        %v1358 = vmul.f32 %v1357, %v1356
        %v1359 = vmul.f32 0.5, %v1358
        %v1360 = vsub.f32 1.5, %v1359
        %v1361 = vmul.f32 %v1356, %v1360
        %vm1362 = vweird.f32 %v1345
        %vm1363 = vweird.f32 %v1356
        %vm1364 = vmor %vm1362, %vm1363
        %v1365 = vsel %vm1364, %v1356, %v1361
        %v1366 = vmul.f32 %v1334, %v1355
        %v1367 = vmul.f32 %v1335, %v1365
        %v1369 = vperm.slane %v967, 0
        %v1371 = vmul.f32 %v1366, %v1369
        %v1372 = vmul.f32 %v1367, %v1369
        %v1374 = vperm.slane %v968, 0
        %v1376 = vadd.f32 %v1371, %v1374
        %v1377 = vadd.f32 %v1372, %v1374
        %v1378 = vpack.c.bf16 %v1377, %v1376
        %v1379 = vld [vmem:[#allocation12] sm:$0xf]
        %v1380 = vld [vmem:[#allocation12 + $0x4] sm:$0xf]
        %v1381 = vld [vmem:[#allocation12 + $0x8] sm:$0xf]
        %v1382 = vld [vmem:[#allocation12 + $0xc] sm:$0xf]
        %v1383 = vld [vmem:[#allocation12 + $0x10] sm:$0xf]
        %v1384 = vld [vmem:[#allocation12 + $0x14] sm:$0xf]
        %v1385 = vld [vmem:[#allocation12 + $0x18] sm:$0xf]
        %v1386 = vld [vmem:[#allocation12 + $0x1c] sm:$0xf]
        %v1387 = vld [vmem:[#allocation12 + $0x20] sm:$0xf]
        %v1388 = vld [vmem:[#allocation12 + $0x24] sm:$0xf]
        %v1389 = vld [vmem:[#allocation12 + $0x28] sm:$0xf]
        %v1390 = vld [vmem:[#allocation12 + $0x2c] sm:$0xf]
        %v1391 = vld [vmem:[#allocation12 + $0x30] sm:$0xf]
        %v1392 = vld [vmem:[#allocation12 + $0x34] sm:$0xf]
        %v1393 = vld [vmem:[#allocation12 + $0x38] sm:$0xf]
        %v1394 = vld [vmem:[#allocation12 + $0x3c] sm:$0xf]
        %v1395 = vld [vmem:[#allocation13] sm:$0x1]
        %v1397 = vperm.slane %v1395, 0
        %v1415 = vunpack.c.l.b16 %v1379
        %v1416 = vunpack.c.l.b16 %v1380
        %v1417 = vunpack.c.l.b16 %v1381
        %v1418 = vunpack.c.l.b16 %v1382
        %v1419 = vunpack.c.l.b16 %v1383
        %v1420 = vunpack.c.l.b16 %v1384
        %v1421 = vunpack.c.l.b16 %v1385
        %v1422 = vunpack.c.l.b16 %v1386
        %v1423 = vunpack.c.l.b16 %v1387
        %v1424 = vunpack.c.l.b16 %v1388
        %v1425 = vunpack.c.l.b16 %v1389
        %v1426 = vunpack.c.l.b16 %v1390
        %v1427 = vunpack.c.l.b16 %v1391
        %v1428 = vunpack.c.l.b16 %v1392
        %v1429 = vunpack.c.l.b16 %v1393
        %v1430 = vunpack.c.l.b16 %v1394
        %v1431 = vpack.c.b16 %v1416, %v1415
        %v1432 = vpack.c.b16 %v1418, %v1417
        %v1433 = vpack.c.b16 %v1420, %v1419
        %v1434 = vpack.c.b16 %v1422, %v1421
        %v1435 = vpack.c.b16 %v1424, %v1423
        %v1436 = vpack.c.b16 %v1426, %v1425
        %v1437 = vpack.c.b16 %v1428, %v1427
        %v1438 = vpack.c.b16 %v1430, %v1429
        %1447 = vmatpush.bf16.msra.mxu0 %v1438
        %1448 = vmatpush.bf16.msra.mxu0 %v1437
        %1449 = vmatpush.bf16.msra.mxu0 %v1436
        %1450 = vmatpush.bf16.msra.mxu0 %v1435
        %1451 = vmatpush.bf16.msra.mxu0 %v1434
        %1452 = vmatpush.bf16.msra.mxu0 %v1433
        %1453 = vmatpush.bf16.msra.mxu0 %v1432
        %1454 = vmatpush.bf16.msra.mxu0 %v1431
        %1455 = vmatmul.bf16.gmra.mxu0 %v1378
        %v1456 = vpop.f32.mrf.mxu0
        %v1457 = vadd.f32 %v1397, %v1456
        %v1458 = vpop.f32.mrf.mxu0
        %v1459 = vadd.f32 %v1397, %v1458
        %1460 = vdwg.mxu0
        %v1461 = vld [vmem:[%s9] sm:$0x1]
        %v1462 = vpack.c.bf16 %v1457, %v1457
        %v1463 = vpack.c.bf16 %v1459, %v1459
        %v1464 = vld [vmem:[#allocation2] sm:$0xf]
        %v1465 = vld [vmem:[#allocation2 + $0x8] sm:$0xf]
        %v1466 = vld [vmem:[#allocation2 + $0x4] sm:$0xf]
        %v1467 = vld [vmem:[#allocation2 + $0xc] sm:$0xf]
        %v1470 = vunpack.c.l.b16 %v1462
        %v1471 = vunpack.c.l.b16 %v1463
        %v1472 = vpack.c.b16 %v1471, %v1470
        %v1475 = vunpack.c.l.b16 %v1464
        %v1476 = vunpack.c.l.b16 %v1465
        %v1477 = vpack.c.b16 %v1476, %v1475
        %vm1478 = vcmask 261120
        %v1480 = vsel %vm1478, %v1472, 0
        %v1483 = vsel %vm1478, %v1477, 0
        %1485 = vmatpush.bf16.xpose.msra.mxu0 0
        %1486 = vmatpush.bf16.xpose.msra.mxu0 0
        %1487 = vmatpush.bf16.xpose.msra.mxu0 0
        %1488 = vmatpush.bf16.xpose.msra.mxu0 0
        %1489 = vmatpush.bf16.xpose.msra.mxu0 0
        %1490 = vmatpush.bf16.xpose.msra.mxu0 0
        %1491 = vmatpush.bf16.xpose.msra.mxu0 0
        %1492 = vmatpush.bf16.xpose.msra.mxu0 %v1483
        %1493 = vmatmul.bf16.gmra.mxu0 %v1480
        %v1494 = vpop.f32.mrf.mxu0
        %v1495 = vadd.f32 %v1319, %v1494
        %v1496 = vpop.f32.mrf.mxu0
        %v1497 = vadd.f32 %v1320, %v1496
        %1498 = vdwg.mxu0
        %vm1499 = vcmask 130048
        %v1500 = vsel %vm1499, %v1495, -inf
        %1501 = vmax.xlane.f32.xlu0 %v1500
        %v1502 = vpop.xlane.xlu0 %1501
        %v1503 = vsel %vm1499, %v1497, -inf
        %1504 = vmax.xlane.f32.xlu0 %v1503
        %v1505 = vpop.xlane.xlu0 %1504
        %v1506 = vsub.f32 %v1495, %v1502
        %v1507 = vsub.f32 %v1497, %v1505
        %v1508 = vmul.f32 %v1506, 1.442695
        %v1509 = vpow.pop %v1508
        %v1510 = vmul.f32 %v1507, 1.442695
        %v1511 = vpow.pop %v1510
        %v1512 = vsel %vm1499, %v1509, 0.0
        %1513 = vadd.xlane.f32.xlu0 %v1512
        %v1514 = vpop.xlane.xlu0 %1513
        %v1515 = vsel %vm1499, %v1511, 0.0
        %1516 = vadd.xlane.f32.xlu0 %v1515
        %v1517 = vpop.xlane.xlu0 %1516
        %v1518 = vrcp.pop %v1514
        %v1519 = vrcp.pop %v1517
        %v1520 = vmul.f32 %v1509, %v1518
        %v1521 = vmul.f32 %v1511, %v1519
        %v1522 = vpack.c.bf16 %v1521, %v1520
        %v1525 = vunpack.c.l.b16 %v1466
        %v1526 = vunpack.c.l.b16 %v1467
        %v1527 = vpack.c.b16 %v1526, %v1525
        %v1530 = vsel %vm1499, %v1522, 0
        %1532 = vmatpush.bf16.msra.mxu0 0
        %1533 = vmatpush.bf16.msra.mxu0 0
        %1534 = vmatpush.bf16.msra.mxu0 0
        %1535 = vmatpush.bf16.msra.mxu0 0
        %1536 = vmatpush.bf16.msra.mxu0 0
        %1537 = vmatpush.bf16.msra.mxu0 0
        %1538 = vmatpush.bf16.msra.mxu0 0
        %1539 = vmatpush.bf16.msra.mxu0 %v1527
        %1540 = vmatmul.bf16.gmra.mxu0 %v1530
        %v1541 = vpop.f32.mrf.mxu0
        %v1542 = vadd.f32 0.0, %v1541
        %v1543 = vpop.f32.mrf.mxu0
        %v1544 = vadd.f32 0.0, %v1543
        %1545 = vdwg.mxu0
        %v1546 = vpack.c.bf16 %v1544, %v1542
        %v1547 = vld [vmem:[#allocation16] sm:$0xf]
        %v1548 = vld [vmem:[#allocation16 + $0x4] sm:$0xf]
        %v1549 = vld [vmem:[#allocation16 + $0x8] sm:$0xf]
        %v1550 = vld [vmem:[#allocation16 + $0xc] sm:$0xf]
        %1551 = vrot.lane.b32.xlu0 %v1472, 96
        %v1552 = vpop.permute.xlu0 %1551
        %1553 = vrot.lane.b32.xlu0 %v1477, 96
        %v1554 = vpop.permute.xlu0 %1553
        %v1556 = vsel %vm1478, %v1552, 0
        %v1559 = vsel %vm1478, %v1554, 0
        %1561 = vmatpush.bf16.xpose.msra.mxu0 0
        %1562 = vmatpush.bf16.xpose.msra.mxu0 0
        %1563 = vmatpush.bf16.xpose.msra.mxu0 0
        %1564 = vmatpush.bf16.xpose.msra.mxu0 0
        %1565 = vmatpush.bf16.xpose.msra.mxu0 0
        %1566 = vmatpush.bf16.xpose.msra.mxu0 0
        %1567 = vmatpush.bf16.xpose.msra.mxu0 0
        %1568 = vmatpush.bf16.xpose.msra.mxu0 %v1559
        %1569 = vmatmul.bf16.gmra.mxu0 %v1556
        %v1570 = vpop.f32.mrf.mxu0
        %v1571 = vadd.f32 %v1319, %v1570
        %v1572 = vpop.f32.mrf.mxu0
        %v1573 = vadd.f32 %v1320, %v1572
        %1574 = vdwg.mxu0
        %v1575 = vsel %vm1499, %v1571, -inf
        %1576 = vmax.xlane.f32.xlu0 %v1575
        %v1577 = vpop.xlane.xlu0 %1576
        %v1578 = vsel %vm1499, %v1573, -inf
        %1579 = vmax.xlane.f32.xlu0 %v1578
        %v1580 = vpop.xlane.xlu0 %1579
        %v1581 = vsub.f32 %v1571, %v1577
        %v1582 = vsub.f32 %v1573, %v1580
        %v1583 = vmul.f32 %v1581, 1.442695
        %v1584 = vpow.pop %v1583
        %v1585 = vmul.f32 %v1582, 1.442695
        %v1586 = vpow.pop %v1585
        %v1587 = vsel %vm1499, %v1584, 0.0
        %1588 = vadd.xlane.f32.xlu0 %v1587
        %v1589 = vpop.xlane.xlu0 %1588
        %v1590 = vsel %vm1499, %v1586, 0.0
        %1591 = vadd.xlane.f32.xlu0 %v1590
        %v1592 = vpop.xlane.xlu0 %1591
        %v1593 = vrcp.pop %v1589
        %v1594 = vrcp.pop %v1592
        %v1595 = vmul.f32 %v1584, %v1593
        %v1596 = vmul.f32 %v1586, %v1594
        %v1597 = vpack.c.bf16 %v1596, %v1595
        %1598 = vrot.lane.b32.xlu0 %v1527, 96
        %v1599 = vpop.permute.xlu0 %1598
        %v1602 = vsel %vm1499, %v1597, 0
        %1604 = vmatpush.bf16.msra.mxu0 0
        %1605 = vmatpush.bf16.msra.mxu0 0
        %1606 = vmatpush.bf16.msra.mxu0 0
        %1607 = vmatpush.bf16.msra.mxu0 0
        %1608 = vmatpush.bf16.msra.mxu0 0
        %1609 = vmatpush.bf16.msra.mxu0 0
        %1610 = vmatpush.bf16.msra.mxu0 0
        %1611 = vmatpush.bf16.msra.mxu0 %v1599
        %1612 = vmatmul.bf16.gmra.mxu0 %v1602
        %v1613 = vpop.f32.mrf.mxu0
        %v1614 = vadd.f32 0.0, %v1613
        %v1615 = vpop.f32.mrf.mxu0
        %v1616 = vadd.f32 0.0, %v1615
        %1617 = vdwg.mxu0
        %v1618 = vpack.c.bf16 %v1616, %v1614
        %v1619 = vld [vmem:[#allocation16 + $0x10] sm:$0xf]
        %v1620 = vld [vmem:[#allocation16 + $0x14] sm:$0xf]
        %v1621 = vld [vmem:[#allocation16 + $0x18] sm:$0xf]
        %v1622 = vld [vmem:[#allocation16 + $0x1c] sm:$0xf]
        %v1627 = vunpack.c.l.b16 %v1619
        %v1628 = vunpack.c.l.b16 %v1620
        %v1629 = vunpack.c.l.b16 %v1621
        %v1630 = vunpack.c.l.b16 %v1622
        %v1631 = vpack.c.b16 %v1628, %v1627
        %v1632 = vpack.c.b16 %v1630, %v1629
        %v1636 = vsel %vm1478, %v1618, 0
        %1638 = vmatpush.bf16.msra.mxu0 0
        %1639 = vmatpush.bf16.msra.mxu0 0
        %1640 = vmatpush.bf16.msra.mxu0 0
        %1641 = vmatpush.bf16.msra.mxu0 0
        %1642 = vmatpush.bf16.msra.mxu0 0
        %1643 = vmatpush.bf16.msra.mxu0 0
        %1644 = vmatpush.bf16.msra.mxu0 %v1632
        %1645 = vmatpush.bf16.msra.mxu0 %v1631
        %1646 = vmatmul.bf16.gmra.mxu0 %v1636
        %v1647 = vpop.f32.mrf.mxu0
        %v1648 = vadd.f32 0.0, %v1647
        %v1649 = vpop.f32.mrf.mxu0
        %v1650 = vadd.f32 0.0, %v1649
        %1651 = vdwg.mxu0
        %v1656 = vunpack.c.l.b16 %v1547
        %v1657 = vunpack.c.l.b16 %v1548
        %v1658 = vunpack.c.l.b16 %v1549
        %v1659 = vunpack.c.l.b16 %v1550
        %v1660 = vpack.c.b16 %v1657, %v1656
        %v1661 = vpack.c.b16 %v1659, %v1658
        %v1665 = vsel %vm1478, %v1546, 0
        %1667 = vmatpush.bf16.msra.mxu0 0
        %1668 = vmatpush.bf16.msra.mxu0 0
        %1669 = vmatpush.bf16.msra.mxu0 0
        %1670 = vmatpush.bf16.msra.mxu0 0
        %1671 = vmatpush.bf16.msra.mxu0 0
        %1672 = vmatpush.bf16.msra.mxu0 0
        %1673 = vmatpush.bf16.msra.mxu0 %v1661
        %1674 = vmatpush.bf16.msra.mxu0 %v1660
        %1675 = vmatmul.bf16.gmra.mxu0 %v1665
        %v1676 = vpop.f32.mrf.mxu0
        %v1677 = vadd.f32 %v1648, %v1676
        %v1678 = vpop.f32.mrf.mxu0
        %v1679 = vadd.f32 %v1650, %v1678
        %1680 = vdwg.mxu0
        %1681 = vrot.lane.b32.xlu0 %v1472, 64
        %v1682 = vpop.permute.xlu0 %1681
        %1683 = vrot.lane.b32.xlu0 %v1477, 64
        %v1684 = vpop.permute.xlu0 %1683
        %v1686 = vsel %vm1478, %v1682, 0
        %v1689 = vsel %vm1478, %v1684, 0
        %1691 = vmatpush.bf16.xpose.msra.mxu0 0
        %1692 = vmatpush.bf16.xpose.msra.mxu0 0
        %1693 = vmatpush.bf16.xpose.msra.mxu0 0
        %1694 = vmatpush.bf16.xpose.msra.mxu0 0
        %1695 = vmatpush.bf16.xpose.msra.mxu0 0
        %1696 = vmatpush.bf16.xpose.msra.mxu0 0
        %1697 = vmatpush.bf16.xpose.msra.mxu0 0
        %1698 = vmatpush.bf16.xpose.msra.mxu0 %v1689
        %1699 = vmatmul.bf16.gmra.mxu0 %v1686
        %v1700 = vpop.f32.mrf.mxu0
        %v1701 = vadd.f32 %v1319, %v1700
        %v1702 = vpop.f32.mrf.mxu0
        %v1703 = vadd.f32 %v1320, %v1702
        %1704 = vdwg.mxu0
        %v1705 = vsel %vm1499, %v1701, -inf
        %1706 = vmax.xlane.f32.xlu0 %v1705
        %v1707 = vpop.xlane.xlu0 %1706
        %v1708 = vsel %vm1499, %v1703, -inf
        %1709 = vmax.xlane.f32.xlu0 %v1708
        %v1710 = vpop.xlane.xlu0 %1709
        %v1711 = vsub.f32 %v1701, %v1707
        %v1712 = vsub.f32 %v1703, %v1710
        %v1713 = vmul.f32 %v1711, 1.442695
        %v1714 = vpow.pop %v1713
        %v1715 = vmul.f32 %v1712, 1.442695
        %v1716 = vpow.pop %v1715
        %v1717 = vsel %vm1499, %v1714, 0.0
        %1718 = vadd.xlane.f32.xlu0 %v1717
        %v1719 = vpop.xlane.xlu0 %1718
        %v1720 = vsel %vm1499, %v1716, 0.0
        %1721 = vadd.xlane.f32.xlu0 %v1720
        %v1722 = vpop.xlane.xlu0 %1721
        %v1723 = vrcp.pop %v1719
        %v1724 = vrcp.pop %v1722
        %v1725 = vmul.f32 %v1714, %v1723
        %v1726 = vmul.f32 %v1716, %v1724
        %v1727 = vpack.c.bf16 %v1726, %v1725
        %1728 = vrot.lane.b32.xlu0 %v1527, 64
        %v1729 = vpop.permute.xlu0 %1728
        %v1732 = vsel %vm1499, %v1727, 0
        %1734 = vmatpush.bf16.msra.mxu0 0
        %1735 = vmatpush.bf16.msra.mxu0 0
        %1736 = vmatpush.bf16.msra.mxu0 0
        %1737 = vmatpush.bf16.msra.mxu0 0
        %1738 = vmatpush.bf16.msra.mxu0 0
        %1739 = vmatpush.bf16.msra.mxu0 0
        %1740 = vmatpush.bf16.msra.mxu0 0
        %1741 = vmatpush.bf16.msra.mxu0 %v1729
        %1742 = vmatmul.bf16.gmra.mxu0 %v1732
        %v1743 = vpop.f32.mrf.mxu0
        %v1744 = vadd.f32 0.0, %v1743
        %v1745 = vpop.f32.mrf.mxu0
        %v1746 = vadd.f32 0.0, %v1745
        %1747 = vdwg.mxu0
        %v1748 = vpack.c.bf16 %v1746, %v1744
        %v1749 = vld [vmem:[#allocation16 + $0x20] sm:$0xf]
        %v1750 = vld [vmem:[#allocation16 + $0x24] sm:$0xf]
        %v1751 = vld [vmem:[#allocation16 + $0x28] sm:$0xf]
        %v1752 = vld [vmem:[#allocation16 + $0x2c] sm:$0xf]
        %v1757 = vunpack.c.l.b16 %v1749
        %v1758 = vunpack.c.l.b16 %v1750
        %v1759 = vunpack.c.l.b16 %v1751
        %v1760 = vunpack.c.l.b16 %v1752
        %v1761 = vpack.c.b16 %v1758, %v1757
        %v1762 = vpack.c.b16 %v1760, %v1759
        %v1766 = vsel %vm1478, %v1748, 0
        %1768 = vmatpush.bf16.msra.mxu0 0
        %1769 = vmatpush.bf16.msra.mxu0 0
        %1770 = vmatpush.bf16.msra.mxu0 0
        %1771 = vmatpush.bf16.msra.mxu0 0
        %1772 = vmatpush.bf16.msra.mxu0 0
        %1773 = vmatpush.bf16.msra.mxu0 0
        %1774 = vmatpush.bf16.msra.mxu0 %v1762
        %1775 = vmatpush.bf16.msra.mxu0 %v1761
        %1776 = vmatmul.bf16.gmra.mxu0 %v1766
        %v1777 = vpop.f32.mrf.mxu0
        %v1778 = vadd.f32 0.0, %v1777
        %v1779 = vpop.f32.mrf.mxu0
        %v1780 = vadd.f32 0.0, %v1779
        %1781 = vdwg.mxu0
        %v1782 = vadd.f32 %v1677, %v1778
        %v1783 = vadd.f32 %v1679, %v1780
        %1784 = vrot.lane.b32.xlu0 %v1472, 32
        %v1785 = vpop.permute.xlu0 %1784
        %1786 = vrot.lane.b32.xlu0 %v1477, 32
        %v1787 = vpop.permute.xlu0 %1786
        %v1789 = vsel %vm1478, %v1785, 0
        %v1792 = vsel %vm1478, %v1787, 0
        %1794 = vmatpush.bf16.xpose.msra.mxu0 0
        %1795 = vmatpush.bf16.xpose.msra.mxu0 0
        %1796 = vmatpush.bf16.xpose.msra.mxu0 0
        %1797 = vmatpush.bf16.xpose.msra.mxu0 0
        %1798 = vmatpush.bf16.xpose.msra.mxu0 0
        %1799 = vmatpush.bf16.xpose.msra.mxu0 0
        %1800 = vmatpush.bf16.xpose.msra.mxu0 0
        %1801 = vmatpush.bf16.xpose.msra.mxu0 %v1792
        %1802 = vmatmul.bf16.gmra.mxu0 %v1789
        %v1803 = vpop.f32.mrf.mxu0
        %v1804 = vadd.f32 %v1319, %v1803
        %v1805 = vpop.f32.mrf.mxu0
        %v1806 = vadd.f32 %v1320, %v1805
        %1807 = vdwg.mxu0
        %v1808 = vsel %vm1499, %v1804, -inf
        %1809 = vmax.xlane.f32.xlu0 %v1808
        %v1810 = vpop.xlane.xlu0 %1809
        %v1811 = vsel %vm1499, %v1806, -inf
        %1812 = vmax.xlane.f32.xlu0 %v1811
        %v1813 = vpop.xlane.xlu0 %1812
        %v1814 = vsub.f32 %v1804, %v1810
        %v1815 = vsub.f32 %v1806, %v1813
        %v1816 = vmul.f32 %v1814, 1.442695
        %v1817 = vpow.pop %v1816
        %v1818 = vmul.f32 %v1815, 1.442695
        %v1819 = vpow.pop %v1818
        %v1820 = vsel %vm1499, %v1817, 0.0
        %1821 = vadd.xlane.f32.xlu0 %v1820
        %v1822 = vpop.xlane.xlu0 %1821
        %v1823 = vsel %vm1499, %v1819, 0.0
        %1824 = vadd.xlane.f32.xlu0 %v1823
        %v1825 = vpop.xlane.xlu0 %1824
        %v1826 = vrcp.pop %v1822
        %v1827 = vrcp.pop %v1825
        %v1828 = vmul.f32 %v1817, %v1826
        %v1829 = vmul.f32 %v1819, %v1827
        %v1830 = vpack.c.bf16 %v1829, %v1828
        %1831 = vrot.lane.b32.xlu0 %v1527, 32
        %v1832 = vpop.permute.xlu0 %1831
        %v1835 = vsel %vm1499, %v1830, 0
        %1837 = vmatpush.bf16.msra.mxu0 0
        %1838 = vmatpush.bf16.msra.mxu0 0
        %1839 = vmatpush.bf16.msra.mxu0 0
        %1840 = vmatpush.bf16.msra.mxu0 0
        %1841 = vmatpush.bf16.msra.mxu0 0
        %1842 = vmatpush.bf16.msra.mxu0 0
        %1843 = vmatpush.bf16.msra.mxu0 0
        %1844 = vmatpush.bf16.msra.mxu0 %v1832
        %1845 = vmatmul.bf16.gmra.mxu0 %v1835
        %v1846 = vpop.f32.mrf.mxu0
        %v1847 = vadd.f32 0.0, %v1846
        %v1848 = vpop.f32.mrf.mxu0
        %v1849 = vadd.f32 0.0, %v1848
        %1850 = vdwg.mxu0
        %v1851 = vpack.c.bf16 %v1849, %v1847
        %v1852 = vld [vmem:[#allocation16 + $0x30] sm:$0xf]
        %v1853 = vld [vmem:[#allocation16 + $0x34] sm:$0xf]
        %v1854 = vld [vmem:[#allocation16 + $0x38] sm:$0xf]
        %v1855 = vld [vmem:[#allocation16 + $0x3c] sm:$0xf]
        %v1860 = vunpack.c.l.b16 %v1852
        %v1861 = vunpack.c.l.b16 %v1853
        %v1862 = vunpack.c.l.b16 %v1854
        %v1863 = vunpack.c.l.b16 %v1855
        %v1864 = vpack.c.b16 %v1861, %v1860
        %v1865 = vpack.c.b16 %v1863, %v1862
        %v1869 = vsel %vm1478, %v1851, 0
        %1871 = vmatpush.bf16.msra.mxu0 0
        %1872 = vmatpush.bf16.msra.mxu0 0
        %1873 = vmatpush.bf16.msra.mxu0 0
        %1874 = vmatpush.bf16.msra.mxu0 0
        %1875 = vmatpush.bf16.msra.mxu0 0
        %1876 = vmatpush.bf16.msra.mxu0 0
        %1877 = vmatpush.bf16.msra.mxu0 %v1865
        %1878 = vmatpush.bf16.msra.mxu0 %v1864
        %1879 = vmatmul.bf16.gmra.mxu0 %v1869
        %v1880 = vpop.f32.mrf.mxu0
        %v1881 = vadd.f32 0.0, %v1880
        %v1882 = vpop.f32.mrf.mxu0
        %v1883 = vadd.f32 0.0, %v1882
        %1884 = vdwg.mxu0
        %v1885 = vadd.f32 %v1782, %v1881
        %v1886 = vadd.f32 %v1783, %v1883
        %v1888 = vperm.slane %v1461, 0
        %v1890 = vadd.f32 %v1885, %v1888
        %v1891 = vadd.f32 %v1886, %v1888
        %v1892 = vadd.f32 %v1890, %v1311
        %v1893 = vadd.f32 %v1891, %v1312
        %1894 = vadd.xlane.f32.xlu0 %v1892
        %v1895 = vpop.xlane.xlu0 %1894
        %1896 = vadd.xlane.f32.xlu0 %v1893
        %v1897 = vpop.xlane.xlu0 %1896
        %v1898 = vmul.f32 %v1895, %v1331
        %v1899 = vmul.f32 %v1897, %v1331
        %v1900 = vsub.f32 %v1892, %v1898
        %v1901 = vsub.f32 %v1893, %v1899
        %v1902 = vmul.f32 %v1900, %v1900
        %v1903 = vmul.f32 %v1901, %v1901
        %1904 = vadd.xlane.f32.xlu0 %v1902
        %v1905 = vpop.xlane.xlu0 %1904
        %1906 = vadd.xlane.f32.xlu0 %v1903
        %v1907 = vpop.xlane.xlu0 %1906
        %v1908 = vmul.f32 %v1905, %v1331
        %v1909 = vmul.f32 %v1907, %v1331
        %v1910 = vadd.f32 %v1908, 1e-05
        %v1911 = vadd.f32 %v1909, 1e-05
        %v1912 = vrsqrt.pop %v1910
        %v1913 = vmul.f32 %v1912, %v1910
        %v1914 = vmul.f32 %v1913, %v1912
        %v1915 = vmul.f32 0.5, %v1914
        %v1916 = vsub.f32 1.5, %v1915
        %v1917 = vmul.f32 %v1912, %v1916
        %vm1918 = vweird.f32 %v1910
        %vm1919 = vweird.f32 %v1912
        %vm1920 = vmor %vm1918, %vm1919
        %v1921 = vsel %vm1920, %v1912, %v1917
        %v1922 = vrsqrt.pop %v1911
        %v1923 = vmul.f32 %v1922, %v1911
        %v1924 = vmul.f32 %v1923, %v1922
        %v1925 = vmul.f32 0.5, %v1924
        %v1926 = vsub.f32 1.5, %v1925
        %v1927 = vmul.f32 %v1922, %v1926
        %vm1928 = vweird.f32 %v1911
        %vm1929 = vweird.f32 %v1922
        %vm1930 = vmor %vm1928, %vm1929
        %v1931 = vsel %vm1930, %v1922, %v1927
        %v1932 = vmul.f32 %v1900, %v1921
        %v1933 = vmul.f32 %v1901, %v1931
        %v1934 = vmul.f32 %v1932, %v1369
        %v1935 = vmul.f32 %v1933, %v1369
        %v1936 = vadd.f32 %v1934, %v1374
        %v1937 = vadd.f32 %v1935, %v1374
        %v1938 = vpack.c.bf16 %v1937, %v1936
        %v1939 = vld [vmem:[#allocation18] sm:$0xf]
        %v1940 = vld [vmem:[#allocation18 + $0x4] sm:$0xf]
        %v1941 = vld [vmem:[#allocation18 + $0x8] sm:$0xf]
        %v1942 = vld [vmem:[#allocation18 + $0xc] sm:$0xf]
        %v1943 = vld [vmem:[#allocation18 + $0x10] sm:$0xf]
        %v1944 = vld [vmem:[#allocation18 + $0x14] sm:$0xf]
        %v1945 = vld [vmem:[#allocation18 + $0x18] sm:$0xf]
        %v1946 = vld [vmem:[#allocation18 + $0x1c] sm:$0xf]
        %v1947 = vld [vmem:[#allocation18 + $0x20] sm:$0xf]
        %v1948 = vld [vmem:[#allocation18 + $0x24] sm:$0xf]
        %v1949 = vld [vmem:[#allocation18 + $0x28] sm:$0xf]
        %v1950 = vld [vmem:[#allocation18 + $0x2c] sm:$0xf]
        %v1951 = vld [vmem:[#allocation18 + $0x30] sm:$0xf]
        %v1952 = vld [vmem:[#allocation18 + $0x34] sm:$0xf]
        %v1953 = vld [vmem:[#allocation18 + $0x38] sm:$0xf]
        %v1954 = vld [vmem:[#allocation18 + $0x3c] sm:$0xf]
        %v1955 = vld [vmem:[%s11] sm:$0x1]
        %v1957 = vperm.slane %v1955, 0
        %v1975 = vunpack.c.l.b16 %v1939
        %v1976 = vunpack.c.l.b16 %v1940
        %v1977 = vunpack.c.l.b16 %v1941
        %v1978 = vunpack.c.l.b16 %v1942
        %v1979 = vunpack.c.l.b16 %v1943
        %v1980 = vunpack.c.l.b16 %v1944
        %v1981 = vunpack.c.l.b16 %v1945
        %v1982 = vunpack.c.l.b16 %v1946
        %v1983 = vunpack.c.l.b16 %v1947
        %v1984 = vunpack.c.l.b16 %v1948
        %v1985 = vunpack.c.l.b16 %v1949
        %v1986 = vunpack.c.l.b16 %v1950
        %v1987 = vunpack.c.l.b16 %v1951
        %v1988 = vunpack.c.l.b16 %v1952
        %v1989 = vunpack.c.l.b16 %v1953
        %v1990 = vunpack.c.l.b16 %v1954
        %v1991 = vpack.c.b16 %v1976, %v1975
        %v1992 = vpack.c.b16 %v1978, %v1977
        %v1993 = vpack.c.b16 %v1980, %v1979
        %v1994 = vpack.c.b16 %v1982, %v1981
        %v1995 = vpack.c.b16 %v1984, %v1983
        %v1996 = vpack.c.b16 %v1986, %v1985
        %v1997 = vpack.c.b16 %v1988, %v1987
        %v1998 = vpack.c.b16 %v1990, %v1989
        %2007 = vmatpush.bf16.msra.mxu0 %v1998
        %2008 = vmatpush.bf16.msra.mxu0 %v1997
        %2009 = vmatpush.bf16.msra.mxu0 %v1996
        %2010 = vmatpush.bf16.msra.mxu0 %v1995
        %2011 = vmatpush.bf16.msra.mxu0 %v1994
        %2012 = vmatpush.bf16.msra.mxu0 %v1993
        %2013 = vmatpush.bf16.msra.mxu0 %v1992
        %2014 = vmatpush.bf16.msra.mxu0 %v1991
        %2015 = vmatmul.bf16.gmra.mxu0 %v1938
        %v2016 = vpop.f32.mrf.mxu0
        %v2017 = vadd.f32 %v1957, %v2016
        %v2018 = vpop.f32.mrf.mxu0
        %v2019 = vadd.f32 %v1957, %v2018
        %2020 = vdwg.mxu0
        %v2021 = vld [vmem:[%s15] sm:$0x1]
        %v2022 = vpack.c.bf16 %v2017, %v2017
        %v2023 = vpack.c.bf16 %v2019, %v2019
        %v2024 = vld [vmem:[#allocation3] sm:$0xf]
        %v2025 = vld [vmem:[#allocation3 + $0x8] sm:$0xf]
        %v2026 = vld [vmem:[#allocation3 + $0x4] sm:$0xf]
        %v2027 = vld [vmem:[#allocation3 + $0xc] sm:$0xf]
        %v2030 = vunpack.c.l.b16 %v2022
        %v2031 = vunpack.c.l.b16 %v2023
        %v2032 = vpack.c.b16 %v2031, %v2030
        %v2035 = vunpack.c.l.b16 %v2024
        %v2036 = vunpack.c.l.b16 %v2025
        %v2037 = vpack.c.b16 %v2036, %v2035
        %v2039 = vsel %vm1478, %v2032, 0
        %v2042 = vsel %vm1478, %v2037, 0
        %2044 = vmatpush.bf16.xpose.msra.mxu0 0
        %2045 = vmatpush.bf16.xpose.msra.mxu0 0
        %2046 = vmatpush.bf16.xpose.msra.mxu0 0
        %2047 = vmatpush.bf16.xpose.msra.mxu0 0
        %2048 = vmatpush.bf16.xpose.msra.mxu0 0
        %2049 = vmatpush.bf16.xpose.msra.mxu0 0
        %2050 = vmatpush.bf16.xpose.msra.mxu0 0
        %2051 = vmatpush.bf16.xpose.msra.mxu0 %v2042
        %2052 = vmatmul.bf16.gmra.mxu0 %v2039
        %v2053 = vpop.f32.mrf.mxu0
        %v2054 = vadd.f32 0.0, %v2053
        %v2055 = vpop.f32.mrf.mxu0
        %v2056 = vadd.f32 0.0, %v2055
        %2057 = vdwg.mxu0
        %v2058 = vsel %vm1499, %v2054, -inf
        %2059 = vmax.xlane.f32.xlu0 %v2058
        %v2060 = vpop.xlane.xlu0 %2059
        %v2061 = vsel %vm1499, %v2056, -inf
        %2062 = vmax.xlane.f32.xlu0 %v2061
        %v2063 = vpop.xlane.xlu0 %2062
        %v2064 = vsub.f32 %v2054, %v2060
        %v2065 = vsub.f32 %v2056, %v2063
        %v2066 = vmul.f32 %v2064, 1.442695
        %v2067 = vpow.pop %v2066
        %v2068 = vmul.f32 %v2065, 1.442695
        %v2069 = vpow.pop %v2068
        %v2070 = vsel %vm1499, %v2067, 0.0
        %2071 = vadd.xlane.f32.xlu0 %v2070
        %v2072 = vpop.xlane.xlu0 %2071
        %v2073 = vsel %vm1499, %v2069, 0.0
        %2074 = vadd.xlane.f32.xlu0 %v2073
        %v2075 = vpop.xlane.xlu0 %2074
        %v2076 = vrcp.pop %v2072
        %v2077 = vrcp.pop %v2075
        %v2078 = vmul.f32 %v2067, %v2076
        %v2079 = vmul.f32 %v2069, %v2077
        %v2080 = vpack.c.bf16 %v2079, %v2078
        %v2083 = vunpack.c.l.b16 %v2026
        %v2084 = vunpack.c.l.b16 %v2027
        %v2085 = vpack.c.b16 %v2084, %v2083
        %v2088 = vsel %vm1499, %v2080, 0
        %2090 = vmatpush.bf16.msra.mxu0 0
        %2091 = vmatpush.bf16.msra.mxu0 0
        %2092 = vmatpush.bf16.msra.mxu0 0
        %2093 = vmatpush.bf16.msra.mxu0 0
        %2094 = vmatpush.bf16.msra.mxu0 0
        %2095 = vmatpush.bf16.msra.mxu0 0
        %2096 = vmatpush.bf16.msra.mxu0 0
        %2097 = vmatpush.bf16.msra.mxu0 %v2085
        %2098 = vmatmul.bf16.gmra.mxu0 %v2088
        %v2099 = vpop.f32.mrf.mxu0
        %v2100 = vadd.f32 0.0, %v2099
        %v2101 = vpop.f32.mrf.mxu0
        %v2102 = vadd.f32 0.0, %v2101
        %2103 = vdwg.mxu0
        %v2104 = vpack.c.bf16 %v2102, %v2100
        %v2105 = vld [vmem:[#allocation21] sm:$0xf]
        %v2106 = vld [vmem:[#allocation21 + $0x4] sm:$0xf]
        %v2107 = vld [vmem:[#allocation21 + $0x8] sm:$0xf]
        %v2108 = vld [vmem:[#allocation21 + $0xc] sm:$0xf]
        %2109 = vrot.lane.b32.xlu0 %v2032, 96
        %v2110 = vpop.permute.xlu0 %2109
        %2111 = vrot.lane.b32.xlu0 %v2037, 96
        %v2112 = vpop.permute.xlu0 %2111
        %v2114 = vsel %vm1478, %v2110, 0
        %v2117 = vsel %vm1478, %v2112, 0
        %2119 = vmatpush.bf16.xpose.msra.mxu0 0
        %2120 = vmatpush.bf16.xpose.msra.mxu0 0
        %2121 = vmatpush.bf16.xpose.msra.mxu0 0
        %2122 = vmatpush.bf16.xpose.msra.mxu0 0
        %2123 = vmatpush.bf16.xpose.msra.mxu0 0
        %2124 = vmatpush.bf16.xpose.msra.mxu0 0
        %2125 = vmatpush.bf16.xpose.msra.mxu0 0
        %2126 = vmatpush.bf16.xpose.msra.mxu0 %v2117
        %2127 = vmatmul.bf16.gmra.mxu0 %v2114
        %v2128 = vpop.f32.mrf.mxu0
        %v2129 = vadd.f32 0.0, %v2128
        %v2130 = vpop.f32.mrf.mxu0
        %v2131 = vadd.f32 0.0, %v2130
        %2132 = vdwg.mxu0
        %v2133 = vsel %vm1499, %v2129, -inf
        %2134 = vmax.xlane.f32.xlu0 %v2133
        %v2135 = vpop.xlane.xlu0 %2134
        %v2136 = vsel %vm1499, %v2131, -inf
        %2137 = vmax.xlane.f32.xlu0 %v2136
        %v2138 = vpop.xlane.xlu0 %2137
        %v2139 = vsub.f32 %v2129, %v2135
        %v2140 = vsub.f32 %v2131, %v2138
        %v2141 = vmul.f32 %v2139, 1.442695
        %v2142 = vpow.pop %v2141
        %v2143 = vmul.f32 %v2140, 1.442695
        %v2144 = vpow.pop %v2143
        %v2145 = vsel %vm1499, %v2142, 0.0
        %2146 = vadd.xlane.f32.xlu0 %v2145
        %v2147 = vpop.xlane.xlu0 %2146
        %v2148 = vsel %vm1499, %v2144, 0.0
        %2149 = vadd.xlane.f32.xlu0 %v2148
        %v2150 = vpop.xlane.xlu0 %2149
        %v2151 = vrcp.pop %v2147
        %v2152 = vrcp.pop %v2150
        %v2153 = vmul.f32 %v2142, %v2151
        %v2154 = vmul.f32 %v2144, %v2152
        %v2155 = vpack.c.bf16 %v2154, %v2153
        %2156 = vrot.lane.b32.xlu0 %v2085, 96
        %v2157 = vpop.permute.xlu0 %2156
        %v2160 = vsel %vm1499, %v2155, 0
        %2162 = vmatpush.bf16.msra.mxu0 0
        %2163 = vmatpush.bf16.msra.mxu0 0
        %2164 = vmatpush.bf16.msra.mxu0 0
        %2165 = vmatpush.bf16.msra.mxu0 0
        %2166 = vmatpush.bf16.msra.mxu0 0
        %2167 = vmatpush.bf16.msra.mxu0 0
        %2168 = vmatpush.bf16.msra.mxu0 0
        %2169 = vmatpush.bf16.msra.mxu0 %v2157
        %2170 = vmatmul.bf16.gmra.mxu0 %v2160
        %v2171 = vpop.f32.mrf.mxu0
        %v2172 = vadd.f32 0.0, %v2171
        %v2173 = vpop.f32.mrf.mxu0
        %v2174 = vadd.f32 0.0, %v2173
        %2175 = vdwg.mxu0
        %v2176 = vpack.c.bf16 %v2174, %v2172
        %v2177 = vld [vmem:[#allocation21 + $0x10] sm:$0xf]
        %v2178 = vld [vmem:[#allocation21 + $0x14] sm:$0xf]
        %v2179 = vld [vmem:[#allocation21 + $0x18] sm:$0xf]
        %v2180 = vld [vmem:[#allocation21 + $0x1c] sm:$0xf]
        %v2185 = vunpack.c.l.b16 %v2177
        %v2186 = vunpack.c.l.b16 %v2178
        %v2187 = vunpack.c.l.b16 %v2179
        %v2188 = vunpack.c.l.b16 %v2180
        %v2189 = vpack.c.b16 %v2186, %v2185
        %v2190 = vpack.c.b16 %v2188, %v2187
        %v2194 = vsel %vm1478, %v2176, 0
        %2196 = vmatpush.bf16.msra.mxu0 0
        %2197 = vmatpush.bf16.msra.mxu0 0
        %2198 = vmatpush.bf16.msra.mxu0 0
        %2199 = vmatpush.bf16.msra.mxu0 0
        %2200 = vmatpush.bf16.msra.mxu0 0
        %2201 = vmatpush.bf16.msra.mxu0 0
        %2202 = vmatpush.bf16.msra.mxu0 %v2190
        %2203 = vmatpush.bf16.msra.mxu0 %v2189
        %2204 = vmatmul.bf16.gmra.mxu0 %v2194
        %v2205 = vpop.f32.mrf.mxu0
        %v2206 = vadd.f32 0.0, %v2205
        %v2207 = vpop.f32.mrf.mxu0
        %v2208 = vadd.f32 0.0, %v2207
        %2209 = vdwg.mxu0
        %v2214 = vunpack.c.l.b16 %v2105
        %v2215 = vunpack.c.l.b16 %v2106
        %v2216 = vunpack.c.l.b16 %v2107
        %v2217 = vunpack.c.l.b16 %v2108
        %v2218 = vpack.c.b16 %v2215, %v2214
        %v2219 = vpack.c.b16 %v2217, %v2216
        %v2223 = vsel %vm1478, %v2104, 0
        %2225 = vmatpush.bf16.msra.mxu0 0
        %2226 = vmatpush.bf16.msra.mxu0 0
        %2227 = vmatpush.bf16.msra.mxu0 0
        %2228 = vmatpush.bf16.msra.mxu0 0
        %2229 = vmatpush.bf16.msra.mxu0 0
        %2230 = vmatpush.bf16.msra.mxu0 0
        %2231 = vmatpush.bf16.msra.mxu0 %v2219
        %2232 = vmatpush.bf16.msra.mxu0 %v2218
        %2233 = vmatmul.bf16.gmra.mxu0 %v2223
        %v2234 = vpop.f32.mrf.mxu0
        %v2235 = vadd.f32 %v2206, %v2234
        %v2236 = vpop.f32.mrf.mxu0
        %v2237 = vadd.f32 %v2208, %v2236
        %2238 = vdwg.mxu0
        %2239 = vrot.lane.b32.xlu0 %v2032, 64
        %v2240 = vpop.permute.xlu0 %2239
        %2241 = vrot.lane.b32.xlu0 %v2037, 64
        %v2242 = vpop.permute.xlu0 %2241
        %v2244 = vsel %vm1478, %v2240, 0
        %v2247 = vsel %vm1478, %v2242, 0
        %2249 = vmatpush.bf16.xpose.msra.mxu0 0
        %2250 = vmatpush.bf16.xpose.msra.mxu0 0
        %2251 = vmatpush.bf16.xpose.msra.mxu0 0
        %2252 = vmatpush.bf16.xpose.msra.mxu0 0
        %2253 = vmatpush.bf16.xpose.msra.mxu0 0
        %2254 = vmatpush.bf16.xpose.msra.mxu0 0
        %2255 = vmatpush.bf16.xpose.msra.mxu0 0
        %2256 = vmatpush.bf16.xpose.msra.mxu0 %v2247
        %2257 = vmatmul.bf16.gmra.mxu0 %v2244
        %v2258 = vpop.f32.mrf.mxu0
        %v2259 = vadd.f32 0.0, %v2258
        %v2260 = vpop.f32.mrf.mxu0
        %v2261 = vadd.f32 0.0, %v2260
        %2262 = vdwg.mxu0
        %v2263 = vsel %vm1499, %v2259, -inf
        %2264 = vmax.xlane.f32.xlu0 %v2263
        %v2265 = vpop.xlane.xlu0 %2264
        %v2266 = vsel %vm1499, %v2261, -inf
        %2267 = vmax.xlane.f32.xlu0 %v2266
        %v2268 = vpop.xlane.xlu0 %2267
        %v2269 = vsub.f32 %v2259, %v2265
        %v2270 = vsub.f32 %v2261, %v2268
        %v2271 = vmul.f32 %v2269, 1.442695
        %v2272 = vpow.pop %v2271
        %v2273 = vmul.f32 %v2270, 1.442695
        %v2274 = vpow.pop %v2273
        %v2275 = vsel %vm1499, %v2272, 0.0
        %2276 = vadd.xlane.f32.xlu0 %v2275
        %v2277 = vpop.xlane.xlu0 %2276
        %v2278 = vsel %vm1499, %v2274, 0.0
        %2279 = vadd.xlane.f32.xlu0 %v2278
        %v2280 = vpop.xlane.xlu0 %2279
        %v2281 = vrcp.pop %v2277
        %v2282 = vrcp.pop %v2280
        %v2283 = vmul.f32 %v2272, %v2281
        %v2284 = vmul.f32 %v2274, %v2282
        %v2285 = vpack.c.bf16 %v2284, %v2283
        %2286 = vrot.lane.b32.xlu0 %v2085, 64
        %v2287 = vpop.permute.xlu0 %2286
        %v2290 = vsel %vm1499, %v2285, 0
        %2292 = vmatpush.bf16.msra.mxu0 0
        %2293 = vmatpush.bf16.msra.mxu0 0
        %2294 = vmatpush.bf16.msra.mxu0 0
        %2295 = vmatpush.bf16.msra.mxu0 0
        %2296 = vmatpush.bf16.msra.mxu0 0
        %2297 = vmatpush.bf16.msra.mxu0 0
        %2298 = vmatpush.bf16.msra.mxu0 0
        %2299 = vmatpush.bf16.msra.mxu0 %v2287
        %2300 = vmatmul.bf16.gmra.mxu0 %v2290
        %v2301 = vpop.f32.mrf.mxu0
        %v2302 = vadd.f32 0.0, %v2301
        %v2303 = vpop.f32.mrf.mxu0
        %v2304 = vadd.f32 0.0, %v2303
        %2305 = vdwg.mxu0
        %v2306 = vpack.c.bf16 %v2304, %v2302
        %v2307 = vld [vmem:[#allocation21 + $0x20] sm:$0xf]
        %v2308 = vld [vmem:[#allocation21 + $0x24] sm:$0xf]
        %v2309 = vld [vmem:[#allocation21 + $0x28] sm:$0xf]
        %v2310 = vld [vmem:[#allocation21 + $0x2c] sm:$0xf]
        %v2315 = vunpack.c.l.b16 %v2307
        %v2316 = vunpack.c.l.b16 %v2308
        %v2317 = vunpack.c.l.b16 %v2309
        %v2318 = vunpack.c.l.b16 %v2310
        %v2319 = vpack.c.b16 %v2316, %v2315
        %v2320 = vpack.c.b16 %v2318, %v2317
        %v2324 = vsel %vm1478, %v2306, 0
        %2326 = vmatpush.bf16.msra.mxu0 0
        %2327 = vmatpush.bf16.msra.mxu0 0
        %2328 = vmatpush.bf16.msra.mxu0 0
        %2329 = vmatpush.bf16.msra.mxu0 0
        %2330 = vmatpush.bf16.msra.mxu0 0
        %2331 = vmatpush.bf16.msra.mxu0 0
        %2332 = vmatpush.bf16.msra.mxu0 %v2320
        %2333 = vmatpush.bf16.msra.mxu0 %v2319
        %2334 = vmatmul.bf16.gmra.mxu0 %v2324
        %v2335 = vpop.f32.mrf.mxu0
        %v2336 = vadd.f32 0.0, %v2335
        %v2337 = vpop.f32.mrf.mxu0
        %v2338 = vadd.f32 0.0, %v2337
        %2339 = vdwg.mxu0
        %v2340 = vadd.f32 %v2235, %v2336
        %v2341 = vadd.f32 %v2237, %v2338
        %2342 = vrot.lane.b32.xlu0 %v2032, 32
        %v2343 = vpop.permute.xlu0 %2342
        %2344 = vrot.lane.b32.xlu0 %v2037, 32
        %v2345 = vpop.permute.xlu0 %2344
        %v2347 = vsel %vm1478, %v2343, 0
        %v2350 = vsel %vm1478, %v2345, 0
        %2352 = vmatpush.bf16.xpose.msra.mxu0 0
        %2353 = vmatpush.bf16.xpose.msra.mxu0 0
        %2354 = vmatpush.bf16.xpose.msra.mxu0 0
        %2355 = vmatpush.bf16.xpose.msra.mxu0 0
        %2356 = vmatpush.bf16.xpose.msra.mxu0 0
        %2357 = vmatpush.bf16.xpose.msra.mxu0 0
        %2358 = vmatpush.bf16.xpose.msra.mxu0 0
        %2359 = vmatpush.bf16.xpose.msra.mxu0 %v2350
        %2360 = vmatmul.bf16.gmra.mxu0 %v2347
        %v2361 = vpop.f32.mrf.mxu0
        %v2362 = vadd.f32 0.0, %v2361
        %v2363 = vpop.f32.mrf.mxu0
        %v2364 = vadd.f32 0.0, %v2363
        %2365 = vdwg.mxu0
        %v2366 = vsel %vm1499, %v2362, -inf
        %2367 = vmax.xlane.f32.xlu0 %v2366
        %v2368 = vpop.xlane.xlu0 %2367
        %v2369 = vsel %vm1499, %v2364, -inf
        %2370 = vmax.xlane.f32.xlu0 %v2369
        %v2371 = vpop.xlane.xlu0 %2370
        %v2372 = vsub.f32 %v2362, %v2368
        %v2373 = vsub.f32 %v2364, %v2371
        %v2374 = vmul.f32 %v2372, 1.442695
        %v2375 = vpow.pop %v2374
        %v2376 = vmul.f32 %v2373, 1.442695
        %v2377 = vpow.pop %v2376
        %v2378 = vsel %vm1499, %v2375, 0.0
        %2379 = vadd.xlane.f32.xlu0 %v2378
        %v2380 = vpop.xlane.xlu0 %2379
        %v2381 = vsel %vm1499, %v2377, 0.0
        %2382 = vadd.xlane.f32.xlu0 %v2381
        %v2383 = vpop.xlane.xlu0 %2382
        %v2384 = vrcp.pop %v2380
        %v2385 = vrcp.pop %v2383
        %v2386 = vmul.f32 %v2375, %v2384
        %v2387 = vmul.f32 %v2377, %v2385
        %v2388 = vpack.c.bf16 %v2387, %v2386
        %2389 = vrot.lane.b32.xlu0 %v2085, 32
        %v2390 = vpop.permute.xlu0 %2389
        %v2393 = vsel %vm1499, %v2388, 0
        %2395 = vmatpush.bf16.msra.mxu0 0
        %2396 = vmatpush.bf16.msra.mxu0 0
        %2397 = vmatpush.bf16.msra.mxu0 0
        %2398 = vmatpush.bf16.msra.mxu0 0
        %2399 = vmatpush.bf16.msra.mxu0 0
        %2400 = vmatpush.bf16.msra.mxu0 0
        %2401 = vmatpush.bf16.msra.mxu0 0
        %2402 = vmatpush.bf16.msra.mxu0 %v2390
        %2403 = vmatmul.bf16.gmra.mxu0 %v2393
        %v2404 = vpop.f32.mrf.mxu0
        %v2405 = vadd.f32 0.0, %v2404
        %v2406 = vpop.f32.mrf.mxu0
        %v2407 = vadd.f32 0.0, %v2406
        %2408 = vdwg.mxu0
        %v2409 = vpack.c.bf16 %v2407, %v2405
        %v2410 = vld [vmem:[#allocation21 + $0x30] sm:$0xf]
        %v2411 = vld [vmem:[#allocation21 + $0x34] sm:$0xf]
        %v2412 = vld [vmem:[#allocation21 + $0x38] sm:$0xf]
        %v2413 = vld [vmem:[#allocation21 + $0x3c] sm:$0xf]
        %v2418 = vunpack.c.l.b16 %v2410
        %v2419 = vunpack.c.l.b16 %v2411
        %v2420 = vunpack.c.l.b16 %v2412
        %v2421 = vunpack.c.l.b16 %v2413
        %v2422 = vpack.c.b16 %v2419, %v2418
        %v2423 = vpack.c.b16 %v2421, %v2420
        %v2427 = vsel %vm1478, %v2409, 0
        %2429 = vmatpush.bf16.msra.mxu0 0
        %2430 = vmatpush.bf16.msra.mxu0 0
        %2431 = vmatpush.bf16.msra.mxu0 0
        %2432 = vmatpush.bf16.msra.mxu0 0
        %2433 = vmatpush.bf16.msra.mxu0 0
        %2434 = vmatpush.bf16.msra.mxu0 0
        %2435 = vmatpush.bf16.msra.mxu0 %v2423
        %2436 = vmatpush.bf16.msra.mxu0 %v2422
        %2437 = vmatmul.bf16.gmra.mxu0 %v2427
        %v2438 = vpop.f32.mrf.mxu0
        %v2439 = vadd.f32 0.0, %v2438
        %v2440 = vpop.f32.mrf.mxu0
        %v2441 = vadd.f32 0.0, %v2440
        %2442 = vdwg.mxu0
        %v2443 = vadd.f32 %v2340, %v2439
        %v2444 = vadd.f32 %v2341, %v2441
        %v2446 = vperm.slane %v2021, 0
        %v2448 = vadd.f32 %v2443, %v2446
        %v2449 = vadd.f32 %v2444, %v2446
        %v2450 = vadd.f32 %v2448, %v1892
        %v2451 = vadd.f32 %v2449, %v1893
        %2452 = vadd.xlane.f32.xlu0 %v2450
        %v2453 = vpop.xlane.xlu0 %2452
        %2454 = vadd.xlane.f32.xlu0 %v2451
        %v2455 = vpop.xlane.xlu0 %2454
        %v2456 = vmul.f32 %v2453, %v1331
        %v2457 = vmul.f32 %v2455, %v1331
        %v2458 = vsub.f32 %v2450, %v2456
        %v2459 = vsub.f32 %v2451, %v2457
        %v2460 = vmul.f32 %v2458, %v2458
        %v2461 = vmul.f32 %v2459, %v2459
        %2462 = vadd.xlane.f32.xlu0 %v2460
        %v2463 = vpop.xlane.xlu0 %2462
        %2464 = vadd.xlane.f32.xlu0 %v2461
        %v2465 = vpop.xlane.xlu0 %2464
        %v2466 = vmul.f32 %v2463, %v1331
        %v2467 = vmul.f32 %v2465, %v1331
        %v2468 = vadd.f32 %v2466, 1e-05
        %v2469 = vadd.f32 %v2467, 1e-05
        %v2470 = vrsqrt.pop %v2468
        %v2471 = vmul.f32 %v2470, %v2468
        %v2472 = vmul.f32 %v2471, %v2470
        %v2473 = vmul.f32 0.5, %v2472
        %v2474 = vsub.f32 1.5, %v2473
        %v2475 = vmul.f32 %v2470, %v2474
        %vm2476 = vweird.f32 %v2468
        %vm2477 = vweird.f32 %v2470
        %vm2478 = vmor %vm2476, %vm2477
        %v2479 = vsel %vm2478, %v2470, %v2475
        %v2480 = vrsqrt.pop %v2469
        %v2481 = vmul.f32 %v2480, %v2469
        %v2482 = vmul.f32 %v2481, %v2480
        %v2483 = vmul.f32 0.5, %v2482
        %v2484 = vsub.f32 1.5, %v2483
        %v2485 = vmul.f32 %v2480, %v2484
        %vm2486 = vweird.f32 %v2469
        %vm2487 = vweird.f32 %v2480
        %vm2488 = vmor %vm2486, %vm2487
        %v2489 = vsel %vm2488, %v2480, %v2485
        %v2490 = vmul.f32 %v2458, %v2479
        %v2491 = vmul.f32 %v2459, %v2489
        %v2492 = vmul.f32 %v2490, %v1369
        %v2493 = vmul.f32 %v2491, %v1369
        %v2494 = vadd.f32 %v2492, %v1374
        %v2495 = vadd.f32 %v2493, %v1374
        %v2496 = vpack.c.bf16 %v2495, %v2494
        %v2497 = vld [vmem:[#allocation22] sm:$0xff]
        %v2498 = vld [vmem:[#allocation22 + $0x8] sm:$0xff]
        %v2499 = vld [vmem:[#allocation22 + $0x10] sm:$0xff]
        %v2500 = vld [vmem:[#allocation22 + $0x18] sm:$0xff]
        %v2501 = vld [vmem:[#allocation22 + $0x20] sm:$0xff]
        %v2502 = vld [vmem:[#allocation22 + $0x28] sm:$0xff]
        %v2503 = vld [vmem:[#allocation22 + $0x30] sm:$0xff]
        %v2504 = vld [vmem:[#allocation22 + $0x38] sm:$0xff]
        %v2505 = vld [vmem:[#allocation22 + $0x40] sm:$0xff]
        %v2506 = vld [vmem:[#allocation22 + $0x48] sm:$0xff]
        %v2507 = vld [vmem:[#allocation22 + $0x50] sm:$0xff]
        %v2508 = vld [vmem:[#allocation22 + $0x58] sm:$0xff]
        %v2509 = vld [vmem:[#allocation22 + $0x60] sm:$0xff]
        %v2510 = vld [vmem:[#allocation22 + $0x68] sm:$0xff]
        %v2511 = vld [vmem:[#allocation22 + $0x70] sm:$0xff]
        %v2512 = vld [vmem:[#allocation22 + $0x78] sm:$0xff]
        %v2513 = vld [vmem:[%s19] sm:$0x3]
        %v2515 = vperm.slane %v2513, 0
        %v2516 = vperm.slane %v2513, 1
        %v2535 = vunpack.c.l.b16 %v2497
        %v2536 = vunpack.c.h.b16 %v2497
        %v2537 = vunpack.c.l.b16 %v2498
        %v2538 = vunpack.c.h.b16 %v2498
        %v2539 = vunpack.c.l.b16 %v2499
        %v2540 = vunpack.c.h.b16 %v2499
        %v2541 = vunpack.c.l.b16 %v2500
        %v2542 = vunpack.c.h.b16 %v2500
        %v2543 = vunpack.c.l.b16 %v2501
        %v2544 = vunpack.c.h.b16 %v2501
        %v2545 = vunpack.c.l.b16 %v2502
        %v2546 = vunpack.c.h.b16 %v2502
        %v2547 = vunpack.c.l.b16 %v2503
        %v2548 = vunpack.c.h.b16 %v2503
        %v2549 = vunpack.c.l.b16 %v2504
        %v2550 = vunpack.c.h.b16 %v2504
        %v2551 = vunpack.c.l.b16 %v2505
        %v2552 = vunpack.c.h.b16 %v2505
        %v2553 = vunpack.c.l.b16 %v2506
        %v2554 = vunpack.c.h.b16 %v2506
        %v2555 = vunpack.c.l.b16 %v2507
        %v2556 = vunpack.c.h.b16 %v2507
        %v2557 = vunpack.c.l.b16 %v2508
        %v2558 = vunpack.c.h.b16 %v2508
        %v2559 = vunpack.c.l.b16 %v2509
        %v2560 = vunpack.c.h.b16 %v2509
        %v2561 = vunpack.c.l.b16 %v2510
        %v2562 = vunpack.c.h.b16 %v2510
        %v2563 = vunpack.c.l.b16 %v2511
        %v2564 = vunpack.c.h.b16 %v2511
        %v2565 = vunpack.c.l.b16 %v2512
        %v2566 = vunpack.c.h.b16 %v2512
        %v2567 = vpack.c.b16 %v2537, %v2535
        %v2568 = vpack.c.b16 %v2538, %v2536
        %v2569 = vpack.c.b16 %v2541, %v2539
        %v2570 = vpack.c.b16 %v2542, %v2540
        %v2571 = vpack.c.b16 %v2545, %v2543
        %v2572 = vpack.c.b16 %v2546, %v2544
        %v2573 = vpack.c.b16 %v2549, %v2547
        %v2574 = vpack.c.b16 %v2550, %v2548
        %v2575 = vpack.c.b16 %v2553, %v2551
        %v2576 = vpack.c.b16 %v2554, %v2552
        %v2577 = vpack.c.b16 %v2557, %v2555
        %v2578 = vpack.c.b16 %v2558, %v2556
        %v2579 = vpack.c.b16 %v2561, %v2559
        %v2580 = vpack.c.b16 %v2562, %v2560
        %v2581 = vpack.c.b16 %v2565, %v2563
        %v2582 = vpack.c.b16 %v2566, %v2564
        %2599 = vmatpush.bf16.msra.mxu0 %v2581
        %2600 = vmatpush.bf16.msra.mxu0 %v2579
        %2601 = vmatpush.bf16.msra.mxu0 %v2577
        %2602 = vmatpush.bf16.msra.mxu0 %v2575
        %2603 = vmatpush.bf16.msra.mxu0 %v2573
        %2604 = vmatpush.bf16.msra.mxu0 %v2571
        %2605 = vmatpush.bf16.msra.mxu0 %v2569
        %2606 = vmatpush.bf16.msra.mxu0 %v2567
        %2607 = vmatmul.bf16.gmra.mxu0 %v2496
        %v2608 = vpop.f32.mrf.mxu0
        %v2609 = vadd.f32 %v2515, %v2608
        %v2610 = vpop.f32.mrf.mxu0
        %v2611 = vadd.f32 %v2515, %v2610
        %2612 = vdwg.mxu0
        %2613 = vmatpush.bf16.msra.mxu0 %v2582
        %2614 = vmatpush.bf16.msra.mxu0 %v2580
        %2615 = vmatpush.bf16.msra.mxu0 %v2578
        %2616 = vmatpush.bf16.msra.mxu0 %v2576
        %2617 = vmatpush.bf16.msra.mxu0 %v2574
        %2618 = vmatpush.bf16.msra.mxu0 %v2572
        %2619 = vmatpush.bf16.msra.mxu0 %v2570
        %2620 = vmatpush.bf16.msra.mxu0 %v2568
        %2621 = vmatmul.bf16.gmra.mxu0 %v2496
        %v2622 = vpop.f32.mrf.mxu0
        %v2623 = vadd.f32 %v2516, %v2622
        %v2624 = vpop.f32.mrf.mxu0
        %v2625 = vadd.f32 %v2516, %v2624
        %2626 = vdwg.mxu0
        %v2627 = vmax.f32 %v2609, 0.0
        %v2628 = vmax.f32 %v2623, 0.0
        %v2629 = vmax.f32 %v2611, 0.0
        %v2630 = vmax.f32 %v2625, 0.0
        %v2631 = vpack.c.bf16 %v2629, %v2627
        %v2632 = vpack.c.bf16 %v2630, %v2628
        %v2633 = vld [vmem:[#allocation24] sm:$0xf]
        %v2634 = vld [vmem:[#allocation24 + $0x4] sm:$0xf]
        %v2635 = vld [vmem:[#allocation24 + $0x8] sm:$0xf]
        %v2636 = vld [vmem:[#allocation24 + $0xc] sm:$0xf]
        %v2637 = vld [vmem:[#allocation24 + $0x10] sm:$0xf]
        %v2638 = vld [vmem:[#allocation24 + $0x14] sm:$0xf]
        %v2639 = vld [vmem:[#allocation24 + $0x18] sm:$0xf]
        %v2640 = vld [vmem:[#allocation24 + $0x1c] sm:$0xf]
        %v2641 = vld [vmem:[#allocation24 + $0x20] sm:$0xf]
        %v2642 = vld [vmem:[#allocation24 + $0x24] sm:$0xf]
        %v2643 = vld [vmem:[#allocation24 + $0x28] sm:$0xf]
        %v2644 = vld [vmem:[#allocation24 + $0x2c] sm:$0xf]
        %v2645 = vld [vmem:[#allocation24 + $0x30] sm:$0xf]
        %v2646 = vld [vmem:[#allocation24 + $0x34] sm:$0xf]
        %v2647 = vld [vmem:[#allocation24 + $0x38] sm:$0xf]
        %v2648 = vld [vmem:[#allocation24 + $0x3c] sm:$0xf]
        %v2649 = vld [vmem:[#allocation24 + $0x40] sm:$0xf]
        %v2650 = vld [vmem:[#allocation24 + $0x44] sm:$0xf]
        %v2651 = vld [vmem:[#allocation24 + $0x48] sm:$0xf]
        %v2652 = vld [vmem:[#allocation24 + $0x4c] sm:$0xf]
        %v2653 = vld [vmem:[#allocation24 + $0x50] sm:$0xf]
        %v2654 = vld [vmem:[#allocation24 + $0x54] sm:$0xf]
        %v2655 = vld [vmem:[#allocation24 + $0x58] sm:$0xf]
        %v2656 = vld [vmem:[#allocation24 + $0x5c] sm:$0xf]
        %v2657 = vld [vmem:[#allocation24 + $0x60] sm:$0xf]
        %v2658 = vld [vmem:[#allocation24 + $0x64] sm:$0xf]
        %v2659 = vld [vmem:[#allocation24 + $0x68] sm:$0xf]
        %v2660 = vld [vmem:[#allocation24 + $0x6c] sm:$0xf]
        %v2661 = vld [vmem:[#allocation24 + $0x70] sm:$0xf]
        %v2662 = vld [vmem:[#allocation24 + $0x74] sm:$0xf]
        %v2663 = vld [vmem:[#allocation24 + $0x78] sm:$0xf]
        %v2664 = vld [vmem:[#allocation24 + $0x7c] sm:$0xf]
        %v2665 = vld [vmem:[%s21] sm:$0x1]
        %v2667 = vperm.slane %v2665, 0
        %v2701 = vunpack.c.l.b16 %v2633
        %v2702 = vunpack.c.l.b16 %v2634
        %v2703 = vunpack.c.l.b16 %v2635
        %v2704 = vunpack.c.l.b16 %v2636
        %v2705 = vunpack.c.l.b16 %v2637
        %v2706 = vunpack.c.l.b16 %v2638
        %v2707 = vunpack.c.l.b16 %v2639
        %v2708 = vunpack.c.l.b16 %v2640
        %v2709 = vunpack.c.l.b16 %v2641
        %v2710 = vunpack.c.l.b16 %v2642
        %v2711 = vunpack.c.l.b16 %v2643
        %v2712 = vunpack.c.l.b16 %v2644
        %v2713 = vunpack.c.l.b16 %v2645
        %v2714 = vunpack.c.l.b16 %v2646
        %v2715 = vunpack.c.l.b16 %v2647
        %v2716 = vunpack.c.l.b16 %v2648
        %v2717 = vunpack.c.l.b16 %v2649
        %v2718 = vunpack.c.l.b16 %v2650
        %v2719 = vunpack.c.l.b16 %v2651
        %v2720 = vunpack.c.l.b16 %v2652
        %v2721 = vunpack.c.l.b16 %v2653
        %v2722 = vunpack.c.l.b16 %v2654
        %v2723 = vunpack.c.l.b16 %v2655
        %v2724 = vunpack.c.l.b16 %v2656
        %v2725 = vunpack.c.l.b16 %v2657
        %v2726 = vunpack.c.l.b16 %v2658
        %v2727 = vunpack.c.l.b16 %v2659
        %v2728 = vunpack.c.l.b16 %v2660
        %v2729 = vunpack.c.l.b16 %v2661
        %v2730 = vunpack.c.l.b16 %v2662
        %v2731 = vunpack.c.l.b16 %v2663
        %v2732 = vunpack.c.l.b16 %v2664
        %v2733 = vpack.c.b16 %v2702, %v2701
        %v2734 = vpack.c.b16 %v2704, %v2703
        %v2735 = vpack.c.b16 %v2706, %v2705
        %v2736 = vpack.c.b16 %v2708, %v2707
        %v2737 = vpack.c.b16 %v2710, %v2709
        %v2738 = vpack.c.b16 %v2712, %v2711
        %v2739 = vpack.c.b16 %v2714, %v2713
        %v2740 = vpack.c.b16 %v2716, %v2715
        %v2741 = vpack.c.b16 %v2718, %v2717
        %v2742 = vpack.c.b16 %v2720, %v2719
        %v2743 = vpack.c.b16 %v2722, %v2721
        %v2744 = vpack.c.b16 %v2724, %v2723
        %v2745 = vpack.c.b16 %v2726, %v2725
        %v2746 = vpack.c.b16 %v2728, %v2727
        %v2747 = vpack.c.b16 %v2730, %v2729
        %v2748 = vpack.c.b16 %v2732, %v2731
        %2765 = vmatpush.bf16.msra.mxu0 %v2740
        %2766 = vmatpush.bf16.msra.mxu0 %v2739
        %2767 = vmatpush.bf16.msra.mxu0 %v2738
        %2768 = vmatpush.bf16.msra.mxu0 %v2737
        %2769 = vmatpush.bf16.msra.mxu0 %v2736
        %2770 = vmatpush.bf16.msra.mxu0 %v2735
        %2771 = vmatpush.bf16.msra.mxu0 %v2734
        %2772 = vmatpush.bf16.msra.mxu0 %v2733
        %2773 = vmatmul.bf16.gmra.mxu0 %v2631
        %v2774 = vpop.f32.mrf.mxu0
        %v2775 = vadd.f32 %v2667, %v2774
        %v2776 = vpop.f32.mrf.mxu0
        %v2777 = vadd.f32 %v2667, %v2776
        %2778 = vdwg.mxu0
        %2779 = vmatpush.bf16.msra.mxu0 %v2748
        %2780 = vmatpush.bf16.msra.mxu0 %v2747
        %2781 = vmatpush.bf16.msra.mxu0 %v2746
        %2782 = vmatpush.bf16.msra.mxu0 %v2745
        %2783 = vmatpush.bf16.msra.mxu0 %v2744
        %2784 = vmatpush.bf16.msra.mxu0 %v2743
        %2785 = vmatpush.bf16.msra.mxu0 %v2742
        %2786 = vmatpush.bf16.msra.mxu0 %v2741
        %2787 = vmatmul.bf16.gmra.mxu0 %v2632
        %v2788 = vpop.f32.mrf.mxu0
        %v2789 = vadd.f32 %v2775, %v2788
        %v2790 = vpop.f32.mrf.mxu0
        %v2791 = vadd.f32 %v2777, %v2790
        %2792 = vdwg.mxu0
        %v2793 = vadd.f32 %v2789, %v2450
        %v2794 = vadd.f32 %v2791, %v2451
        %2795 = vst [vmem:[%s962] sm:$0xff] %v2793
        %2796 = vst [vmem:[%s962 + $0x8] sm:$0xff] %v2794
        %s2797 = sand.u32 %s555, 1
        %s2798 = scalar_lea.sflag [#allocation6], %s2797
        %s2799 = sand.u32 %s555, 1
        %s2800 = smul.addr %s2799, 16
        %s2801 = scalar_lea.vmem [#allocation25], %s2800
        // Predicated region
        $region165: #{tpu_custom_call.1} parent=107 // pred_check
          %p2802 = pneg %p565
        $region166: #{tpu_custom_call.1} parent=107 // pred_check_branch
          %2804 = sbr.rel (%p2802) target = $region168
        $region167: #{tpu_custom_call.1} parent=107 // pred_region
          %s2805 = smul.u32 2, %s52
          %2807 = vsyncadd %s2798, 0
          %s2808 = smul.addr %s51, 2
          %s2809 = sadd.s32 %s2805, %s2808
          %s2810 = smul.addr %s2809, 8
          %s2811 = scalar_lea.hbm %s22, %s2810
          %s2812 = sshll.u32 %s2801, 4
          %s2813 = int_to_ptr.vmem [resolvable:$true] %s2812
          %s2814 = sshll.u32 %s2811, 4
          %s2815 = int_to_ptr.hbm [resolvable:$true] %s2814
          %2820 = dma.vmem_to_hbm [thread:$0]  %s2813, 256, %s2815, %s2798, 128, 128, 8
        $region168: #{tpu_custom_call.1} parent=107 // pred_fallthru
          _
      $region108: #{tpu_custom_call.1} parent=5 // pred_fallthru
        _
      %p2821 = scmp.le.s32.totalorder 2, %s42
      // Predicated region
      $region169: #{tpu_custom_call.1} parent=5 // pred_check
        %p2822 = pneg %p2821
      $region170: #{tpu_custom_call.1} parent=5 // pred_check_branch
        %2824 = sbr.rel (%p2822) target = $region172
      $region171: #{tpu_custom_call.1} parent=5 // pred_region
        %s2825 = ssub.s32 %s42, 2
        // Predicated region
        $region173: #{tpu_custom_call.1} parent=171 // pred_check
          %p2826 = pneg %p571
        $region174: #{tpu_custom_call.1} parent=171 // pred_check_branch
          %2828 = sbr.rel (%p2826) target = $region176
        $region175: #{tpu_custom_call.1} parent=171 // pred_region
          %s2829 = sand.u32 %s556, 1
          %s2830 = scalar_lea.sflag [#allocation6], %s2829
          %s2831 = sand.u32 %s556, 1
          %s2832 = smul.addr %s2831, 16
          %s2833 = scalar_lea.vmem [#allocation25], %s2832
          %2835 = dma.done %s2830, 256
        $region176: #{tpu_custom_call.1} parent=171 // pred_fallthru
          _
      $region172: #{tpu_custom_call.1} parent=5 // pred_fallthru
        _
    $region6: #{tpu_custom_call.1} parent=1 // loop_footer
      %s46 = sadd.s32 1, %s42
    $region7: #{tpu_custom_call.1} parent=1 // loop_footer_branch
      %41 = sbr.rel target = $region3
    $region8: #{tpu_custom_call.1} parent=1 // loop_exit
      _
    %2836 = vsyncpa [#allocation5], 1
    %s2837 = scalar_lea.sflag [#allocation5], 1
    %2838 = vsyncpa %s2837, 1
    %2839 = vsyncpa [#allocation8], 1
    %2840 = vsyncpa [#allocation11], 1
    %s2841 = scalar_lea.sflag [#allocation11], 1
    %2842 = vsyncpa %s2841, 1
    %2843 = vsyncpa [#allocation14], 1
    %2844 = vsyncpa [#allocation17], 1
    %2845 = vsyncpa [#allocation20], 1
    %2846 = vsyncpa [#allocation23], 1
    %2847 = vsyncpa [#allocation6], 1
    %s2848 = scalar_lea.sflag [#allocation6], 1
    %2849 = vsyncpa %s2848, 1

</llo_original>
